<compile_context>
chip_gen: v7x
topology: tpu7x:2x2x1
jax: 0.10.0
libtpu: 0.0.40
codegen_flags: <defaults>
</compile_context>

<pallas_src>
import math
from functools import partial

import jax
import jax.numpy as jnp
import numpy as np
from jax.experimental import pallas as pl
from jax.experimental.pallas import tpu as pltpu


def _l2_normalize(a, eps=1e-12):
    # matches torch.nn.functional.normalize(dim=-1): x / max(||x||_2, eps)
    n = jnp.sqrt(jnp.sum(a * a, axis=-1, keepdims=True))
    return a / jnp.maximum(n, eps)


def _rep_rows(a, reps):
    """(R, W) -> (reps*R, W) sublane replication: out[j*R + i, :] = a[i, :]."""
    r, w = a.shape
    return jnp.broadcast_to(a[None, :, :], (reps, r, w)).reshape(reps * r, w)


def self_attention_kernel(x_ref, wqkv_ref, bqkv_ref, wm_ref, bm_ref, hm_ref,
                          pmt_t_ref, o_ref, qkvn_ref,
                          *, num_heads, head_dim, seq_len, group):
    f32 = jnp.float32
    bf16 = jnp.bfloat16
    H, hd, L, G = num_heads, head_dim, seq_len, group
    C = H * hd
    eps2 = 1e-24  # (F.normalize eps = 1e-12) ** 2

    # ---- Fused q|k|v projection: ONE (G*L, C) @ (C, 3C) MXU matmul (f32 operands: the
    #      un-normalized inputs set overall accuracy and the MXU has plenty of slack). ----
    x = x_ref[...].astype(f32)                                                   # (G*L, C)
    qkv = jnp.dot(x, wqkv_ref[...], preferred_element_type=f32) + bqkv_ref[...]  # (G*L, 3C)

    # Per-head sum of squares for all 3*H heads via one (G*L,3C)@(3C,3C) block-mask matmul.
    # The q-columns of hm carry 1/scale^2, so rsqrt yields scale * q/||q|| for free
    # (scale = log2(e)/sqrt(hd): softmax temperature + exp->exp2 base change folded into q).
    ss = jnp.dot(qkv * qkv, hm_ref[...], preferred_element_type=f32)
    qkvn_ref[...] = qkv * jax.lax.rsqrt(jnp.maximum(ss, eps2))   # normalized q|k|v (q pre-scaled)

    # Loop invariants hoisted once (JAX does not CSE broadcasts inside loops).
    pmt_t = pmt_t_ref[...]                                       # (H*L, C) 0/1 head mask
    pmt_t_b = pmt_t.astype(bf16)
    wm = wm_ref[...]                                             # (C, C)
    bm_b = jnp.broadcast_to(bm_ref[...], (L, C))                 # (L, C)

    def slab(g, carry):
        # One (b, t) slab = L rows.  fori_loop (not a Python for) bounds live ranges so the
        # packed per-slab k/v/p tensors never spill the 64-entry vreg file (review item 5).
        row0 = pl.multiple_of(g * L, L)                          # L = 16 -> sublane aligned
        kv = qkvn_ref[pl.ds(row0, L), :]                         # (L, 3C) normalized rows
        qg = kv[:, :C].astype(bf16)                              # (L, C), already * log2e/sqrt(hd)

        # Pack heads along the 128-wide axis: index k = h*L + m keeps only head h's channels.
        # Sublane replication + pmt^T mask (no 8-way lane concat); k gets one 2-D transpose so
        # every attention contraction below is a standard (M,K)@(K,N) MXU matmul.
        k_pack = (_rep_rows(kv[:, C:2 * C], H) * pmt_t).T.astype(bf16)   # (C, H*L)
        v_packt = (_rep_rows(kv[:, 2 * C:], H) * pmt_t).astype(bf16)     # (H*L, C)

        # Lane-dense (L, H*L) scores.  q and k are unit-normalized per head, so the exp2
        # argument is bounded by log2(e)/sqrt(hd) ~= 0.72 and the softmax max-subtraction is
        # safe to drop.  (If the normalization is ever removed, reinstate the running max!)
        s = jnp.dot(qg, k_pack, preferred_element_type=f32)              # (L, H*L)
        p = jnp.exp2(s).astype(bf16)                                     # drop1 = identity (eval)

        o_num = jnp.dot(p, v_packt, preferred_element_type=f32)          # (L, C)
        denom = jnp.dot(p, pmt_t_b, preferred_element_type=f32)          # (L, C) per-head row sums
        # EUP vrcp, ~2^-12 relative error -> covered by the relaxed test tolerance.
        attn = o_num * pl.reciprocal(denom, approx=True)

        out = jnp.dot(attn, wm, preferred_element_type=f32) + bm_b       # drop2 = identity (eval)
        o_ref[pl.ds(row0, L), :] = out.astype(o_ref.dtype)
        return carry

    jax.lax.fori_loop(0, G, slab, 0, unroll=True)


def self_attention_pallas(x, params, num_heads, group_size=None):
    b, t, l, c = x.shape
    assert c % num_heads == 0
    head_dim = c // num_heads
    n = b * t

    # Review item 1: single grid step by default (best on single-TC v5e/v6e and a safe default
    # on v7x).  Pass e.g. group_size=n//2 to split slabs across v7x's two TensorCores only if
    # a measurement shows that wins.
    group = n if group_size is None else math.gcd(n, group_size)
    rows_blk = group * l
    assert rows_blk % 8 == 0, "block sublane dim must be a multiple of 8"

    wq, bq, wkv, bkv, wm, bm = params

    # Fused q|k|v projection weights (host-side concat is free).  Column order q|k|v matches
    # the PyTorch chunk(2) split of self.kv (k = first c columns, v = last c columns).
    wqkv = jnp.concatenate([wq, wkv], axis=1)                    # (c, 3c)
    bqkv = jnp.concatenate([bq, bkv]).reshape(1, 3 * c)          # (1, 3c)
    bm2 = bm.reshape(1, c)

    # Constant masks (built once on host).
    # hm: block-diagonal per-head mask over the fused 3c channels, used for the per-head
    # sum-of-squares matmul.  Its q-columns are scaled by 1/scale^2 so the in-kernel rsqrt
    # produces scale * q/||q||, folding log2(e)/sqrt(head_dim) into q at zero cost.
    scale = math.log2(math.e) / math.sqrt(head_dim)
    grp = np.arange(3 * c) // head_dim
    hm = (grp[:, None] == grp[None, :]).astype(np.float32)
    hm[:, :c] *= 1.0 / (scale * scale)
    hm = jnp.asarray(hm)
    # pmt_t[h*l + m, ch] = 1 iff channel ch belongs to head h (head pack/unpack mask).
    ch_head = np.arange(c) // head_dim
    row_head = np.arange(num_heads * l) // l
    pmt_t = jnp.asarray((row_head[:, None] == ch_head[None, :]).astype(np.float32))

    x2 = x.reshape(n * l, c)

    kernel = partial(self_attention_kernel, num_heads=num_heads, head_dim=head_dim,
                     seq_len=l, group=group)

    full = lambda i: (0, 0)
    out2 = pl.pallas_call(
        kernel,
        out_shape=jax.ShapeDtypeStruct((n * l, c), x.dtype),
        grid=(n // group,),
        in_specs=[
            pl.BlockSpec((rows_blk, c), lambda i: (i, 0)),        # x rows (group slabs)
            pl.BlockSpec((c, 3 * c), full),                       # wqkv
            pl.BlockSpec((1, 3 * c), full),                       # bqkv
            pl.BlockSpec((c, c), full),                           # wm
            pl.BlockSpec((1, c), full),                           # bm
            pl.BlockSpec((3 * c, 3 * c), full),                   # hm  (per-head norm mask)
            pl.BlockSpec((num_heads * l, c), full),               # pmt_t (head pack mask^T)
        ],
        out_specs=pl.BlockSpec((rows_blk, c), lambda i: (i, 0)),
        scratch_shapes=[pltpu.VMEM((rows_blk, 3 * c), jnp.float32)],
        compiler_params=pltpu.CompilerParams(
            dimension_semantics=("parallel",)),
    )(x2, wqkv, bqkv, wm, bm2, hm, pmt_t)

    return out2.reshape(b, t, l, c)


def self_attention_reference(x, params, num_heads):
    """Pure-JAX reference mirroring the PyTorch forward (eval mode)."""
    b, t, l, c = x.shape
    hd = c // num_heads
    wq, bq, wkv, bkv, wm, bm = params

    q = x @ wq + bq                                   # (b,t,l,c)
    q = q.reshape(b, t, l, num_heads, hd).transpose(0, 1, 3, 2, 4)
    q = _l2_normalize(q)

    kv = x @ wkv + bkv                                # (b,t,l,2c)
    kv = kv.reshape(b, t, l, 2 * num_heads, hd).transpose(0, 1, 3, 2, 4)
    k, v = kv[:, :, :num_heads], kv[:, :, num_heads:]
    k = _l2_normalize(k)
    v = _l2_normalize(v)                              # the PyTorch module normalizes v as well

    atten = q @ jnp.swapaxes(k, -2, -1)               # (b,t,H,l,l)  (drop1 = identity)
    atten = jax.nn.softmax(atten / math.sqrt(hd), axis=-1)
    out = atten @ v                                   # (b,t,H,l,hd)
    out = out.transpose(0, 1, 3, 2, 4).reshape(b, t, l, c)
    return out @ wm + bm                              # drop2 = identity


if __name__ == "__main__":
    B, T, L, C = 2, 4, 16, 32
    NUM_HEADS = 8

    key = jax.random.PRNGKey(0)
    kx, kwq, kbq, kwkv, kbkv, kwm, kbm = jax.random.split(key, 7)

    x = jax.random.normal(kx, (B, T, L, C), dtype=jnp.float32)

    s = 1.0 / math.sqrt(C)
    params = (
        jax.random.uniform(kwq, (C, C), jnp.float32, -s, s),        # wq  (in, out)
        jax.random.uniform(kbq, (C,), jnp.float32, -s, s),          # bq
        jax.random.uniform(kwkv, (C, 2 * C), jnp.float32, -s, s),   # wkv (in, 2*out)
        jax.random.uniform(kbkv, (2 * C,), jnp.float32, -s, s),     # bkv
        jax.random.uniform(kwm, (C, C), jnp.float32, -s, s),        # wm  (in, out)
        jax.random.uniform(kbm, (C,), jnp.float32, -s, s),          # bm
    )

    out = self_attention_pallas(x, params, NUM_HEADS)
    out = jax.block_until_ready(out)

    ref = jax.block_until_ready(self_attention_reference(x, params, NUM_HEADS))
    # Tolerance relaxed vs 1e-5: pl.reciprocal(approx=True) (~2^-12 rel err) and bf16 MXU
    # operands on the attention contractions (reviewer-sanctioned); projections stay f32 so
    # the observed error remains well inside 2e-3.
    np.testing.assert_allclose(np.asarray(out), np.asarray(ref), atol=2e-3, rtol=2e-3)

    print("KERNEL_OK")
</pallas_src>

<mosaic_0001>
module attributes {stable_mosaic.version = 11 : i64} {
  func.func @self_attention_kernel(%arg0: i32, %arg1: memref<128x32xf32, #tpu.memory_space<vmem>>, %arg2: memref<32x96xf32, #tpu.memory_space<vmem>>, %arg3: memref<1x96xf32, #tpu.memory_space<vmem>>, %arg4: memref<32x32xf32, #tpu.memory_space<vmem>>, %arg5: memref<1x32xf32, #tpu.memory_space<vmem>>, %arg6: memref<96x96xf32, #tpu.memory_space<vmem>>, %arg7: memref<128x32xf32, #tpu.memory_space<vmem>>, %arg8: memref<128x32xf32, #tpu.memory_space<vmem>>, %arg9: memref<128x96xf32, #tpu.memory_space<vmem>>) attributes {dimension_semantics = [#tpu.dimension_semantics<parallel>], iteration_bounds = array<i64: 1>, scalar_prefetch = 0 : i64, scratch_operands = 1 : i64, tpu.core_type = #tpu.core_type<tc>, window_params = [{transform_indices = @transform_0, window_bounds = array<i64: 128, 32>}, {pipeline_mode = #tpu.pipeline_mode<synchronous>, transform_indices = @transform_1, window_bounds = array<i64: 32, 96>}, {pipeline_mode = #tpu.pipeline_mode<synchronous>, transform_indices = @transform_2, window_bounds = array<i64: 1, 96>}, {pipeline_mode = #tpu.pipeline_mode<synchronous>, transform_indices = @transform_3, window_bounds = array<i64: 32, 32>}, {pipeline_mode = #tpu.pipeline_mode<synchronous>, transform_indices = @transform_4, window_bounds = array<i64: 1, 32>}, {pipeline_mode = #tpu.pipeline_mode<synchronous>, transform_indices = @transform_5, window_bounds = array<i64: 96, 96>}, {pipeline_mode = #tpu.pipeline_mode<synchronous>, transform_indices = @transform_6, window_bounds = array<i64: 128, 32>}, {transform_indices = @transform_7, window_bounds = array<i64: 128, 32>}]} {
    %c0 = arith.constant 0 : index
    %c0_0 = arith.constant 0 : index
    %0 = vector.load %arg1[%c0, %c0_0] : memref<128x32xf32, #tpu.memory_space<vmem>>, vector<128x32xf32>
    %c0_1 = arith.constant 0 : index
    %c0_2 = arith.constant 0 : index
    %1 = vector.load %arg2[%c0_1, %c0_2] : memref<32x96xf32, #tpu.memory_space<vmem>>, vector<32x96xf32>
    %cst = arith.constant dense<0.000000e+00> : vector<128x96xf32>
    %2 = tpu.matmul %0, %1, %cst {dimension_numbers = #tpu.dot_dimension_numbers<[1], [0], [0], [1], [0, 0, 1, 1], [], []>} : vector<128x32xf32>, vector<32x96xf32>, vector<128x96xf32> -> vector<128x96xf32>
    %c0_3 = arith.constant 0 : index
    %c0_4 = arith.constant 0 : index
    %3 = vector.load %arg3[%c0_3, %c0_4] : memref<1x96xf32, #tpu.memory_space<vmem>>, vector<1x96xf32>
    %4 = vector.broadcast %3 : vector<1x96xf32> to vector<128x96xf32>
    %5 = arith.addf %2, %4 : vector<128x96xf32>
    %6 = arith.mulf %5, %5 : vector<128x96xf32>
    %c0_5 = arith.constant 0 : index
    %c0_6 = arith.constant 0 : index
    %7 = vector.load %arg6[%c0_5, %c0_6] : memref<96x96xf32, #tpu.memory_space<vmem>>, vector<96x96xf32>
    %cst_7 = arith.constant dense<0.000000e+00> : vector<128x96xf32>
    %8 = tpu.matmul %6, %7, %cst_7 {dimension_numbers = #tpu.dot_dimension_numbers<[1], [0], [0], [1], [0, 0, 1, 1], [], []>} : vector<128x96xf32>, vector<96x96xf32>, vector<128x96xf32> -> vector<128x96xf32>
    %cst_8 = arith.constant 1.000000e-24 : f32
    %9 = vector.broadcast %cst_8 : f32 to vector<128x96xf32>
    %10 = arith.maximumf %8, %9 : vector<128x96xf32>
    %11 = math.rsqrt %10 : vector<128x96xf32>
    %12 = arith.mulf %5, %11 : vector<128x96xf32>
    %c0_9 = arith.constant 0 : index
    %c0_10 = arith.constant 0 : index
    %13 = vector.load %arg9[%c0_9, %c0_10] : memref<128x96xf32, #tpu.memory_space<vmem>>, vector<128x96xf32>
    tpu.vector_store %arg9[%c0_9, %c0_10], %12 {strides = array<i32>} : memref<128x96xf32, #tpu.memory_space<vmem>>, vector<128x96xf32>,
    %c0_11 = arith.constant 0 : index
    %c0_12 = arith.constant 0 : index
    %14 = vector.load %arg7[%c0_11, %c0_12] : memref<128x32xf32, #tpu.memory_space<vmem>>, vector<128x32xf32>
    %15 = arith.truncf %14 : vector<128x32xf32> to vector<128x32xbf16>
    %c0_13 = arith.constant 0 : index
    %c0_14 = arith.constant 0 : index
    %16 = vector.load %arg4[%c0_13, %c0_14] : memref<32x32xf32, #tpu.memory_space<vmem>>, vector<32x32xf32>
    %c0_15 = arith.constant 0 : index
    %c0_16 = arith.constant 0 : index
    %17 = vector.load %arg5[%c0_15, %c0_16] : memref<1x32xf32, #tpu.memory_space<vmem>>, vector<1x32xf32>
    %18 = vector.shape_cast %17 : vector<1x32xf32> to vector<1x32xf32>
    %19 = vector.broadcast %18 : vector<1x32xf32> to vector<16x32xf32>
    %c0_i32 = arith.constant 0 : i32
    %c16_i32 = arith.constant 16 : i32
    %20 = arith.muli %c0_i32, %c16_i32 : i32
    %21 = tpu.assume_multiple %20, 16 : i32
    %22 = arith.index_cast %21 : i32 to index
    %c0_17 = arith.constant 0 : index
    %23 = vector.load %arg9[%22, %c0_17] : memref<128x96xf32, #tpu.memory_space<vmem>>, vector<16x96xf32>
    %24 = vector.extract_strided_slice %23 {offsets = [0, 0], sizes = [16, 32], strides = [1, 1]} : vector<16x96xf32> to vector<16x32xf32>
    %25 = arith.truncf %24 : vector<16x32xf32> to vector<16x32xbf16>
    %26 = vector.extract_strided_slice %23 {offsets = [0, 32], sizes = [16, 32], strides = [1, 1]} : vector<16x96xf32> to vector<16x32xf32>
    %27 = vector.shape_cast %26 : vector<16x32xf32> to vector<1x16x32xf32>
    %28 = vector.shape_cast %27 : vector<1x16x32xf32> to vector<1x16x32xf32>
    %29 = vector.broadcast %28 : vector<1x16x32xf32> to vector<8x16x32xf32>
    %30 = vector.shape_cast %29 : vector<8x16x32xf32> to vector<128x32xf32>
    %31 = arith.mulf %30, %14 : vector<128x32xf32>
    %32 = tpu.transpose %31, [1, 0] : vector<128x32xf32> -> vector<32x128xf32>
    %33 = arith.truncf %32 : vector<32x128xf32> to vector<32x128xbf16>
    %34 = vector.extract_strided_slice %23 {offsets = [0, 64], sizes = [16, 32], strides = [1, 1]} : vector<16x96xf32> to vector<16x32xf32>
    %35 = vector.shape_cast %34 : vector<16x32xf32> to vector<1x16x32xf32>
    %36 = vector.shape_cast %35 : vector<1x16x32xf32> to vector<1x16x32xf32>
    %37 = vector.broadcast %36 : vector<1x16x32xf32> to vector<8x16x32xf32>
    %38 = vector.shape_cast %37 : vector<8x16x32xf32> to vector<128x32xf32>
    %39 = arith.mulf %38, %14 : vector<128x32xf32>
    %40 = arith.truncf %39 : vector<128x32xf32> to vector<128x32xbf16>
    %cst_18 = arith.constant dense<0.000000e+00> : vector<16x128xf32>
    %41 = tpu.matmul %25, %33, %cst_18 {dimension_numbers = #tpu.dot_dimension_numbers<[1], [0], [0], [1], [0, 0, 1, 1], [], []>} : vector<16x32xbf16>, vector<32x128xbf16>, vector<16x128xf32> -> vector<16x128xf32>
    %42 = math.exp2 %41 : vector<16x128xf32>
    %43 = arith.truncf %42 : vector<16x128xf32> to vector<16x128xbf16>
    %cst_19 = arith.constant dense<0.000000e+00> : vector<16x32xf32>
    %44 = tpu.matmul %43, %40, %cst_19 {dimension_numbers = #tpu.dot_dimension_numbers<[1], [0], [0], [1], [0, 0, 1, 1], [], []>} : vector<16x128xbf16>, vector<128x32xbf16>, vector<16x32xf32> -> vector<16x32xf32>
    %cst_20 = arith.constant dense<0.000000e+00> : vector<16x32xf32>
    %45 = tpu.matmul %43, %15, %cst_20 {dimension_numbers = #tpu.dot_dimension_numbers<[1], [0], [0], [1], [0, 0, 1, 1], [], []>} : vector<16x128xbf16>, vector<128x32xbf16>, vector<16x32xf32> -> vector<16x32xf32>
    %46 = tpu.reciprocal %45 {approx = true} : vector<16x32xf32> -> vector<16x32xf32>
    %47 = arith.mulf %44, %46 : vector<16x32xf32>
    %cst_21 = arith.constant dense<0.000000e+00> : vector<16x32xf32>
    %48 = tpu.matmul %47, %16, %cst_21 {dimension_numbers = #tpu.dot_dimension_numbers<[1], [0], [0], [1], [0, 0, 1, 1], [], []>} : vector<16x32xf32>, vector<32x32xf32>, vector<16x32xf32> -> vector<16x32xf32>
    %49 = arith.addf %48, %19 : vector<16x32xf32>
    %50 = arith.index_cast %21 : i32 to index
    %c0_22 = arith.constant 0 : index
    %51 = vector.load %arg8[%50, %c0_22] : memref<128x32xf32, #tpu.memory_space<vmem>>, vector<16x32xf32>
    tpu.vector_store %arg8[%50, %c0_22], %49 {strides = array<i32>} : memref<128x32xf32, #tpu.memory_space<vmem>>, vector<16x32xf32>,
    %c1_i32 = arith.constant 1 : i32
    %c16_i32_23 = arith.constant 16 : i32
    %52 = arith.muli %c1_i32, %c16_i32_23 : i32
    %53 = tpu.assume_multiple %52, 16 : i32
    %54 = arith.index_cast %53 : i32 to index
    %c0_24 = arith.constant 0 : index
    %55 = vector.load %arg9[%54, %c0_24] : memref<128x96xf32, #tpu.memory_space<vmem>>, vector<16x96xf32>
    %56 = vector.extract_strided_slice %55 {offsets = [0, 0], sizes = [16, 32], strides = [1, 1]} : vector<16x96xf32> to vector<16x32xf32>
    %57 = arith.truncf %56 : vector<16x32xf32> to vector<16x32xbf16>
    %58 = vector.extract_strided_slice %55 {offsets = [0, 32], sizes = [16, 32], strides = [1, 1]} : vector<16x96xf32> to vector<16x32xf32>
    %59 = vector.shape_cast %58 : vector<16x32xf32> to vector<1x16x32xf32>
    %60 = vector.shape_cast %59 : vector<1x16x32xf32> to vector<1x16x32xf32>
    %61 = vector.broadcast %60 : vector<1x16x32xf32> to vector<8x16x32xf32>
    %62 = vector.shape_cast %61 : vector<8x16x32xf32> to vector<128x32xf32>
    %63 = arith.mulf %62, %14 : vector<128x32xf32>
    %64 = tpu.transpose %63, [1, 0] : vector<128x32xf32> -> vector<32x128xf32>
    %65 = arith.truncf %64 : vector<32x128xf32> to vector<32x128xbf16>
    %66 = vector.extract_strided_slice %55 {offsets = [0, 64], sizes = [16, 32], strides = [1, 1]} : vector<16x96xf32> to vector<16x32xf32>
    %67 = vector.shape_cast %66 : vector<16x32xf32> to vector<1x16x32xf32>
    %68 = vector.shape_cast %67 : vector<1x16x32xf32> to vector<1x16x32xf32>
    %69 = vector.broadcast %68 : vector<1x16x32xf32> to vector<8x16x32xf32>
    %70 = vector.shape_cast %69 : vector<8x16x32xf32> to vector<128x32xf32>
    %71 = arith.mulf %70, %14 : vector<128x32xf32>
    %72 = arith.truncf %71 : vector<128x32xf32> to vector<128x32xbf16>
    %cst_25 = arith.constant dense<0.000000e+00> : vector<16x128xf32>
    %73 = tpu.matmul %57, %65, %cst_25 {dimension_numbers = #tpu.dot_dimension_numbers<[1], [0], [0], [1], [0, 0, 1, 1], [], []>} : vector<16x32xbf16>, vector<32x128xbf16>, vector<16x128xf32> -> vector<16x128xf32>
    %74 = math.exp2 %73 : vector<16x128xf32>
    %75 = arith.truncf %74 : vector<16x128xf32> to vector<16x128xbf16>
    %cst_26 = arith.constant dense<0.000000e+00> : vector<16x32xf32>
    %76 = tpu.matmul %75, %72, %cst_26 {dimension_numbers = #tpu.dot_dimension_numbers<[1], [0], [0], [1], [0, 0, 1, 1], [], []>} : vector<16x128xbf16>, vector<128x32xbf16>, vector<16x32xf32> -> vector<16x32xf32>
    %cst_27 = arith.constant dense<0.000000e+00> : vector<16x32xf32>
    %77 = tpu.matmul %75, %15, %cst_27 {dimension_numbers = #tpu.dot_dimension_numbers<[1], [0], [0], [1], [0, 0, 1, 1], [], []>} : vector<16x128xbf16>, vector<128x32xbf16>, vector<16x32xf32> -> vector<16x32xf32>
    %78 = tpu.reciprocal %77 {approx = true} : vector<16x32xf32> -> vector<16x32xf32>
    %79 = arith.mulf %76, %78 : vector<16x32xf32>
    %cst_28 = arith.constant dense<0.000000e+00> : vector<16x32xf32>
    %80 = tpu.matmul %79, %16, %cst_28 {dimension_numbers = #tpu.dot_dimension_numbers<[1], [0], [0], [1], [0, 0, 1, 1], [], []>} : vector<16x32xf32>, vector<32x32xf32>, vector<16x32xf32> -> vector<16x32xf32>
    %81 = arith.addf %80, %19 : vector<16x32xf32>
    %82 = arith.index_cast %53 : i32 to index
    %c0_29 = arith.constant 0 : index
    %83 = vector.load %arg8[%82, %c0_29] : memref<128x32xf32, #tpu.memory_space<vmem>>, vector<16x32xf32>
    tpu.vector_store %arg8[%82, %c0_29], %81 {strides = array<i32>} : memref<128x32xf32, #tpu.memory_space<vmem>>, vector<16x32xf32>,
    %c2_i32 = arith.constant 2 : i32
    %c16_i32_30 = arith.constant 16 : i32
    %84 = arith.muli %c2_i32, %c16_i32_30 : i32
    %85 = tpu.assume_multiple %84, 16 : i32
    %86 = arith.index_cast %85 : i32 to index
    %c0_31 = arith.constant 0 : index
    %87 = vector.load %arg9[%86, %c0_31] : memref<128x96xf32, #tpu.memory_space<vmem>>, vector<16x96xf32>
    %88 = vector.extract_strided_slice %87 {offsets = [0, 0], sizes = [16, 32], strides = [1, 1]} : vector<16x96xf32> to vector<16x32xf32>
    %89 = arith.truncf %88 : vector<16x32xf32> to vector<16x32xbf16>
    %90 = vector.extract_strided_slice %87 {offsets = [0, 32], sizes = [16, 32], strides = [1, 1]} : vector<16x96xf32> to vector<16x32xf32>
    %91 = vector.shape_cast %90 : vector<16x32xf32> to vector<1x16x32xf32>
    %92 = vector.shape_cast %91 : vector<1x16x32xf32> to vector<1x16x32xf32>
    %93 = vector.broadcast %92 : vector<1x16x32xf32> to vector<8x16x32xf32>
    %94 = vector.shape_cast %93 : vector<8x16x32xf32> to vector<128x32xf32>
    %95 = arith.mulf %94, %14 : vector<128x32xf32>
    %96 = tpu.transpose %95, [1, 0] : vector<128x32xf32> -> vector<32x128xf32>
    %97 = arith.truncf %96 : vector<32x128xf32> to vector<32x128xbf16>
    %98 = vector.extract_strided_slice %87 {offsets = [0, 64], sizes = [16, 32], strides = [1, 1]} : vector<16x96xf32> to vector<16x32xf32>
    %99 = vector.shape_cast %98 : vector<16x32xf32> to vector<1x16x32xf32>
    %100 = vector.shape_cast %99 : vector<1x16x32xf32> to vector<1x16x32xf32>
    %101 = vector.broadcast %100 : vector<1x16x32xf32> to vector<8x16x32xf32>
    %102 = vector.shape_cast %101 : vector<8x16x32xf32> to vector<128x32xf32>
    %103 = arith.mulf %102, %14 : vector<128x32xf32>
    %104 = arith.truncf %103 : vector<128x32xf32> to vector<128x32xbf16>
    %cst_32 = arith.constant dense<0.000000e+00> : vector<16x128xf32>
    %105 = tpu.matmul %89, %97, %cst_32 {dimension_numbers = #tpu.dot_dimension_numbers<[1], [0], [0], [1], [0, 0, 1, 1], [], []>} : vector<16x32xbf16>, vector<32x128xbf16>, vector<16x128xf32> -> vector<16x128xf32>
    %106 = math.exp2 %105 : vector<16x128xf32>
    %107 = arith.truncf %106 : vector<16x128xf32> to vector<16x128xbf16>
    %cst_33 = arith.constant dense<0.000000e+00> : vector<16x32xf32>
    %108 = tpu.matmul %107, %104, %cst_33 {dimension_numbers = #tpu.dot_dimension_numbers<[1], [0], [0], [1], [0, 0, 1, 1], [], []>} : vector<16x128xbf16>, vector<128x32xbf16>, vector<16x32xf32> -> vector<16x32xf32>
    %cst_34 = arith.constant dense<0.000000e+00> : vector<16x32xf32>
    %109 = tpu.matmul %107, %15, %cst_34 {dimension_numbers = #tpu.dot_dimension_numbers<[1], [0], [0], [1], [0, 0, 1, 1], [], []>} : vector<16x128xbf16>, vector<128x32xbf16>, vector<16x32xf32> -> vector<16x32xf32>
    %110 = tpu.reciprocal %109 {approx = true} : vector<16x32xf32> -> vector<16x32xf32>
    %111 = arith.mulf %108, %110 : vector<16x32xf32>
    %cst_35 = arith.constant dense<0.000000e+00> : vector<16x32xf32>
    %112 = tpu.matmul %111, %16, %cst_35 {dimension_numbers = #tpu.dot_dimension_numbers<[1], [0], [0], [1], [0, 0, 1, 1], [], []>} : vector<16x32xf32>, vector<32x32xf32>, vector<16x32xf32> -> vector<16x32xf32>
    %113 = arith.addf %112, %19 : vector<16x32xf32>
    %114 = arith.index_cast %85 : i32 to index
    %c0_36 = arith.constant 0 : index
    %115 = vector.load %arg8[%114, %c0_36] : memref<128x32xf32, #tpu.memory_space<vmem>>, vector<16x32xf32>
    tpu.vector_store %arg8[%114, %c0_36], %113 {strides = array<i32>} : memref<128x32xf32, #tpu.memory_space<vmem>>, vector<16x32xf32>,
    %c3_i32 = arith.constant 3 : i32
    %c16_i32_37 = arith.constant 16 : i32
    %116 = arith.muli %c3_i32, %c16_i32_37 : i32
    %117 = tpu.assume_multiple %116, 16 : i32
    %118 = arith.index_cast %117 : i32 to index
    %c0_38 = arith.constant 0 : index
    %119 = vector.load %arg9[%118, %c0_38] : memref<128x96xf32, #tpu.memory_space<vmem>>, vector<16x96xf32>
    %120 = vector.extract_strided_slice %119 {offsets = [0, 0], sizes = [16, 32], strides = [1, 1]} : vector<16x96xf32> to vector<16x32xf32>
    %121 = arith.truncf %120 : vector<16x32xf32> to vector<16x32xbf16>
    %122 = vector.extract_strided_slice %119 {offsets = [0, 32], sizes = [16, 32], strides = [1, 1]} : vector<16x96xf32> to vector<16x32xf32>
    %123 = vector.shape_cast %122 : vector<16x32xf32> to vector<1x16x32xf32>
    %124 = vector.shape_cast %123 : vector<1x16x32xf32> to vector<1x16x32xf32>
    %125 = vector.broadcast %124 : vector<1x16x32xf32> to vector<8x16x32xf32>
    %126 = vector.shape_cast %125 : vector<8x16x32xf32> to vector<128x32xf32>
    %127 = arith.mulf %126, %14 : vector<128x32xf32>
    %128 = tpu.transpose %127, [1, 0] : vector<128x32xf32> -> vector<32x128xf32>
    %129 = arith.truncf %128 : vector<32x128xf32> to vector<32x128xbf16>
    %130 = vector.extract_strided_slice %119 {offsets = [0, 64], sizes = [16, 32], strides = [1, 1]} : vector<16x96xf32> to vector<16x32xf32>
    %131 = vector.shape_cast %130 : vector<16x32xf32> to vector<1x16x32xf32>
    %132 = vector.shape_cast %131 : vector<1x16x32xf32> to vector<1x16x32xf32>
    %133 = vector.broadcast %132 : vector<1x16x32xf32> to vector<8x16x32xf32>
    %134 = vector.shape_cast %133 : vector<8x16x32xf32> to vector<128x32xf32>
    %135 = arith.mulf %134, %14 : vector<128x32xf32>
    %136 = arith.truncf %135 : vector<128x32xf32> to vector<128x32xbf16>
    %cst_39 = arith.constant dense<0.000000e+00> : vector<16x128xf32>
    %137 = tpu.matmul %121, %129, %cst_39 {dimension_numbers = #tpu.dot_dimension_numbers<[1], [0], [0], [1], [0, 0, 1, 1], [], []>} : vector<16x32xbf16>, vector<32x128xbf16>, vector<16x128xf32> -> vector<16x128xf32>
    %138 = math.exp2 %137 : vector<16x128xf32>
    %139 = arith.truncf %138 : vector<16x128xf32> to vector<16x128xbf16>
    %cst_40 = arith.constant dense<0.000000e+00> : vector<16x32xf32>
    %140 = tpu.matmul %139, %136, %cst_40 {dimension_numbers = #tpu.dot_dimension_numbers<[1], [0], [0], [1], [0, 0, 1, 1], [], []>} : vector<16x128xbf16>, vector<128x32xbf16>, vector<16x32xf32> -> vector<16x32xf32>
    %cst_41 = arith.constant dense<0.000000e+00> : vector<16x32xf32>
    %141 = tpu.matmul %139, %15, %cst_41 {dimension_numbers = #tpu.dot_dimension_numbers<[1], [0], [0], [1], [0, 0, 1, 1], [], []>} : vector<16x128xbf16>, vector<128x32xbf16>, vector<16x32xf32> -> vector<16x32xf32>
    %142 = tpu.reciprocal %141 {approx = true} : vector<16x32xf32> -> vector<16x32xf32>
    %143 = arith.mulf %140, %142 : vector<16x32xf32>
    %cst_42 = arith.constant dense<0.000000e+00> : vector<16x32xf32>
    %144 = tpu.matmul %143, %16, %cst_42 {dimension_numbers = #tpu.dot_dimension_numbers<[1], [0], [0], [1], [0, 0, 1, 1], [], []>} : vector<16x32xf32>, vector<32x32xf32>, vector<16x32xf32> -> vector<16x32xf32>
    %145 = arith.addf %144, %19 : vector<16x32xf32>
    %146 = arith.index_cast %117 : i32 to index
    %c0_43 = arith.constant 0 : index
    %147 = vector.load %arg8[%146, %c0_43] : memref<128x32xf32, #tpu.memory_space<vmem>>, vector<16x32xf32>
    tpu.vector_store %arg8[%146, %c0_43], %145 {strides = array<i32>} : memref<128x32xf32, #tpu.memory_space<vmem>>, vector<16x32xf32>,
    %c4_i32 = arith.constant 4 : i32
    %c16_i32_44 = arith.constant 16 : i32
    %148 = arith.muli %c4_i32, %c16_i32_44 : i32
    %149 = tpu.assume_multiple %148, 16 : i32
    %150 = arith.index_cast %149 : i32 to index
    %c0_45 = arith.constant 0 : index
    %151 = vector.load %arg9[%150, %c0_45] : memref<128x96xf32, #tpu.memory_space<vmem>>, vector<16x96xf32>
    %152 = vector.extract_strided_slice %151 {offsets = [0, 0], sizes = [16, 32], strides = [1, 1]} : vector<16x96xf32> to vector<16x32xf32>
    %153 = arith.truncf %152 : vector<16x32xf32> to vector<16x32xbf16>
    %154 = vector.extract_strided_slice %151 {offsets = [0, 32], sizes = [16, 32], strides = [1, 1]} : vector<16x96xf32> to vector<16x32xf32>
    %155 = vector.shape_cast %154 : vector<16x32xf32> to vector<1x16x32xf32>
    %156 = vector.shape_cast %155 : vector<1x16x32xf32> to vector<1x16x32xf32>
    %157 = vector.broadcast %156 : vector<1x16x32xf32> to vector<8x16x32xf32>
    %158 = vector.shape_cast %157 : vector<8x16x32xf32> to vector<128x32xf32>
    %159 = arith.mulf %158, %14 : vector<128x32xf32>
    %160 = tpu.transpose %159, [1, 0] : vector<128x32xf32> -> vector<32x128xf32>
    %161 = arith.truncf %160 : vector<32x128xf32> to vector<32x128xbf16>
    %162 = vector.extract_strided_slice %151 {offsets = [0, 64], sizes = [16, 32], strides = [1, 1]} : vector<16x96xf32> to vector<16x32xf32>
    %163 = vector.shape_cast %162 : vector<16x32xf32> to vector<1x16x32xf32>
    %164 = vector.shape_cast %163 : vector<1x16x32xf32> to vector<1x16x32xf32>
    %165 = vector.broadcast %164 : vector<1x16x32xf32> to vector<8x16x32xf32>
    %166 = vector.shape_cast %165 : vector<8x16x32xf32> to vector<128x32xf32>
    %167 = arith.mulf %166, %14 : vector<128x32xf32>
    %168 = arith.truncf %167 : vector<128x32xf32> to vector<128x32xbf16>
    %cst_46 = arith.constant dense<0.000000e+00> : vector<16x128xf32>
    %169 = tpu.matmul %153, %161, %cst_46 {dimension_numbers = #tpu.dot_dimension_numbers<[1], [0], [0], [1], [0, 0, 1, 1], [], []>} : vector<16x32xbf16>, vector<32x128xbf16>, vector<16x128xf32> -> vector<16x128xf32>
    %170 = math.exp2 %169 : vector<16x128xf32>
    %171 = arith.truncf %170 : vector<16x128xf32> to vector<16x128xbf16>
    %cst_47 = arith.constant dense<0.000000e+00> : vector<16x32xf32>
    %172 = tpu.matmul %171, %168, %cst_47 {dimension_numbers = #tpu.dot_dimension_numbers<[1], [0], [0], [1], [0, 0, 1, 1], [], []>} : vector<16x128xbf16>, vector<128x32xbf16>, vector<16x32xf32> -> vector<16x32xf32>
    %cst_48 = arith.constant dense<0.000000e+00> : vector<16x32xf32>
    %173 = tpu.matmul %171, %15, %cst_48 {dimension_numbers = #tpu.dot_dimension_numbers<[1], [0], [0], [1], [0, 0, 1, 1], [], []>} : vector<16x128xbf16>, vector<128x32xbf16>, vector<16x32xf32> -> vector<16x32xf32>
    %174 = tpu.reciprocal %173 {approx = true} : vector<16x32xf32> -> vector<16x32xf32>
    %175 = arith.mulf %172, %174 : vector<16x32xf32>
    %cst_49 = arith.constant dense<0.000000e+00> : vector<16x32xf32>
    %176 = tpu.matmul %175, %16, %cst_49 {dimension_numbers = #tpu.dot_dimension_numbers<[1], [0], [0], [1], [0, 0, 1, 1], [], []>} : vector<16x32xf32>, vector<32x32xf32>, vector<16x32xf32> -> vector<16x32xf32>
    %177 = arith.addf %176, %19 : vector<16x32xf32>
    %178 = arith.index_cast %149 : i32 to index
    %c0_50 = arith.constant 0 : index
    %179 = vector.load %arg8[%178, %c0_50] : memref<128x32xf32, #tpu.memory_space<vmem>>, vector<16x32xf32>
    tpu.vector_store %arg8[%178, %c0_50], %177 {strides = array<i32>} : memref<128x32xf32, #tpu.memory_space<vmem>>, vector<16x32xf32>,
    %c5_i32 = arith.constant 5 : i32
    %c16_i32_51 = arith.constant 16 : i32
    %180 = arith.muli %c5_i32, %c16_i32_51 : i32
    %181 = tpu.assume_multiple %180, 16 : i32
    %182 = arith.index_cast %181 : i32 to index
    %c0_52 = arith.constant 0 : index
    %183 = vector.load %arg9[%182, %c0_52] : memref<128x96xf32, #tpu.memory_space<vmem>>, vector<16x96xf32>
    %184 = vector.extract_strided_slice %183 {offsets = [0, 0], sizes = [16, 32], strides = [1, 1]} : vector<16x96xf32> to vector<16x32xf32>
    %185 = arith.truncf %184 : vector<16x32xf32> to vector<16x32xbf16>
    %186 = vector.extract_strided_slice %183 {offsets = [0, 32], sizes = [16, 32], strides = [1, 1]} : vector<16x96xf32> to vector<16x32xf32>
    %187 = vector.shape_cast %186 : vector<16x32xf32> to vector<1x16x32xf32>
    %188 = vector.shape_cast %187 : vector<1x16x32xf32> to vector<1x16x32xf32>
    %189 = vector.broadcast %188 : vector<1x16x32xf32> to vector<8x16x32xf32>
    %190 = vector.shape_cast %189 : vector<8x16x32xf32> to vector<128x32xf32>
    %191 = arith.mulf %190, %14 : vector<128x32xf32>
    %192 = tpu.transpose %191, [1, 0] : vector<128x32xf32> -> vector<32x128xf32>
    %193 = arith.truncf %192 : vector<32x128xf32> to vector<32x128xbf16>
    %194 = vector.extract_strided_slice %183 {offsets = [0, 64], sizes = [16, 32], strides = [1, 1]} : vector<16x96xf32> to vector<16x32xf32>
    %195 = vector.shape_cast %194 : vector<16x32xf32> to vector<1x16x32xf32>
    %196 = vector.shape_cast %195 : vector<1x16x32xf32> to vector<1x16x32xf32>
    %197 = vector.broadcast %196 : vector<1x16x32xf32> to vector<8x16x32xf32>
    %198 = vector.shape_cast %197 : vector<8x16x32xf32> to vector<128x32xf32>
    %199 = arith.mulf %198, %14 : vector<128x32xf32>
    %200 = arith.truncf %199 : vector<128x32xf32> to vector<128x32xbf16>
    %cst_53 = arith.constant dense<0.000000e+00> : vector<16x128xf32>
    %201 = tpu.matmul %185, %193, %cst_53 {dimension_numbers = #tpu.dot_dimension_numbers<[1], [0], [0], [1], [0, 0, 1, 1], [], []>} : vector<16x32xbf16>, vector<32x128xbf16>, vector<16x128xf32> -> vector<16x128xf32>
    %202 = math.exp2 %201 : vector<16x128xf32>
    %203 = arith.truncf %202 : vector<16x128xf32> to vector<16x128xbf16>
    %cst_54 = arith.constant dense<0.000000e+00> : vector<16x32xf32>
    %204 = tpu.matmul %203, %200, %cst_54 {dimension_numbers = #tpu.dot_dimension_numbers<[1], [0], [0], [1], [0, 0, 1, 1], [], []>} : vector<16x128xbf16>, vector<128x32xbf16>, vector<16x32xf32> -> vector<16x32xf32>
    %cst_55 = arith.constant dense<0.000000e+00> : vector<16x32xf32>
    %205 = tpu.matmul %203, %15, %cst_55 {dimension_numbers = #tpu.dot_dimension_numbers<[1], [0], [0], [1], [0, 0, 1, 1], [], []>} : vector<16x128xbf16>, vector<128x32xbf16>, vector<16x32xf32> -> vector<16x32xf32>
    %206 = tpu.reciprocal %205 {approx = true} : vector<16x32xf32> -> vector<16x32xf32>
    %207 = arith.mulf %204, %206 : vector<16x32xf32>
    %cst_56 = arith.constant dense<0.000000e+00> : vector<16x32xf32>
    %208 = tpu.matmul %207, %16, %cst_56 {dimension_numbers = #tpu.dot_dimension_numbers<[1], [0], [0], [1], [0, 0, 1, 1], [], []>} : vector<16x32xf32>, vector<32x32xf32>, vector<16x32xf32> -> vector<16x32xf32>
    %209 = arith.addf %208, %19 : vector<16x32xf32>
    %210 = arith.index_cast %181 : i32 to index
    %c0_57 = arith.constant 0 : index
    %211 = vector.load %arg8[%210, %c0_57] : memref<128x32xf32, #tpu.memory_space<vmem>>, vector<16x32xf32>
    tpu.vector_store %arg8[%210, %c0_57], %209 {strides = array<i32>} : memref<128x32xf32, #tpu.memory_space<vmem>>, vector<16x32xf32>,
    %c6_i32 = arith.constant 6 : i32
    %c16_i32_58 = arith.constant 16 : i32
    %212 = arith.muli %c6_i32, %c16_i32_58 : i32
    %213 = tpu.assume_multiple %212, 16 : i32
    %214 = arith.index_cast %213 : i32 to index
    %c0_59 = arith.constant 0 : index
    %215 = vector.load %arg9[%214, %c0_59] : memref<128x96xf32, #tpu.memory_space<vmem>>, vector<16x96xf32>
    %216 = vector.extract_strided_slice %215 {offsets = [0, 0], sizes = [16, 32], strides = [1, 1]} : vector<16x96xf32> to vector<16x32xf32>
    %217 = arith.truncf %216 : vector<16x32xf32> to vector<16x32xbf16>
    %218 = vector.extract_strided_slice %215 {offsets = [0, 32], sizes = [16, 32], strides = [1, 1]} : vector<16x96xf32> to vector<16x32xf32>
    %219 = vector.shape_cast %218 : vector<16x32xf32> to vector<1x16x32xf32>
    %220 = vector.shape_cast %219 : vector<1x16x32xf32> to vector<1x16x32xf32>
    %221 = vector.broadcast %220 : vector<1x16x32xf32> to vector<8x16x32xf32>
    %222 = vector.shape_cast %221 : vector<8x16x32xf32> to vector<128x32xf32>
    %223 = arith.mulf %222, %14 : vector<128x32xf32>
    %224 = tpu.transpose %223, [1, 0] : vector<128x32xf32> -> vector<32x128xf32>
    %225 = arith.truncf %224 : vector<32x128xf32> to vector<32x128xbf16>
    %226 = vector.extract_strided_slice %215 {offsets = [0, 64], sizes = [16, 32], strides = [1, 1]} : vector<16x96xf32> to vector<16x32xf32>
    %227 = vector.shape_cast %226 : vector<16x32xf32> to vector<1x16x32xf32>
    %228 = vector.shape_cast %227 : vector<1x16x32xf32> to vector<1x16x32xf32>
    %229 = vector.broadcast %228 : vector<1x16x32xf32> to vector<8x16x32xf32>
    %230 = vector.shape_cast %229 : vector<8x16x32xf32> to vector<128x32xf32>
    %231 = arith.mulf %230, %14 : vector<128x32xf32>
    %232 = arith.truncf %231 : vector<128x32xf32> to vector<128x32xbf16>
    %cst_60 = arith.constant dense<0.000000e+00> : vector<16x128xf32>
    %233 = tpu.matmul %217, %225, %cst_60 {dimension_numbers = #tpu.dot_dimension_numbers<[1], [0], [0], [1], [0, 0, 1, 1], [], []>} : vector<16x32xbf16>, vector<32x128xbf16>, vector<16x128xf32> -> vector<16x128xf32>
    %234 = math.exp2 %233 : vector<16x128xf32>
    %235 = arith.truncf %234 : vector<16x128xf32> to vector<16x128xbf16>
    %cst_61 = arith.constant dense<0.000000e+00> : vector<16x32xf32>
    %236 = tpu.matmul %235, %232, %cst_61 {dimension_numbers = #tpu.dot_dimension_numbers<[1], [0], [0], [1], [0, 0, 1, 1], [], []>} : vector<16x128xbf16>, vector<128x32xbf16>, vector<16x32xf32> -> vector<16x32xf32>
    %cst_62 = arith.constant dense<0.000000e+00> : vector<16x32xf32>
    %237 = tpu.matmul %235, %15, %cst_62 {dimension_numbers = #tpu.dot_dimension_numbers<[1], [0], [0], [1], [0, 0, 1, 1], [], []>} : vector<16x128xbf16>, vector<128x32xbf16>, vector<16x32xf32> -> vector<16x32xf32>
    %238 = tpu.reciprocal %237 {approx = true} : vector<16x32xf32> -> vector<16x32xf32>
    %239 = arith.mulf %236, %238 : vector<16x32xf32>
    %cst_63 = arith.constant dense<0.000000e+00> : vector<16x32xf32>
    %240 = tpu.matmul %239, %16, %cst_63 {dimension_numbers = #tpu.dot_dimension_numbers<[1], [0], [0], [1], [0, 0, 1, 1], [], []>} : vector<16x32xf32>, vector<32x32xf32>, vector<16x32xf32> -> vector<16x32xf32>
    %241 = arith.addf %240, %19 : vector<16x32xf32>
    %242 = arith.index_cast %213 : i32 to index
    %c0_64 = arith.constant 0 : index
    %243 = vector.load %arg8[%242, %c0_64] : memref<128x32xf32, #tpu.memory_space<vmem>>, vector<16x32xf32>
    tpu.vector_store %arg8[%242, %c0_64], %241 {strides = array<i32>} : memref<128x32xf32, #tpu.memory_space<vmem>>, vector<16x32xf32>,
    %c7_i32 = arith.constant 7 : i32
    %c16_i32_65 = arith.constant 16 : i32
    %244 = arith.muli %c7_i32, %c16_i32_65 : i32
    %245 = tpu.assume_multiple %244, 16 : i32
    %246 = arith.index_cast %245 : i32 to index
    %c0_66 = arith.constant 0 : index
    %247 = vector.load %arg9[%246, %c0_66] : memref<128x96xf32, #tpu.memory_space<vmem>>, vector<16x96xf32>
    %248 = vector.extract_strided_slice %247 {offsets = [0, 0], sizes = [16, 32], strides = [1, 1]} : vector<16x96xf32> to vector<16x32xf32>
    %249 = arith.truncf %248 : vector<16x32xf32> to vector<16x32xbf16>
    %250 = vector.extract_strided_slice %247 {offsets = [0, 32], sizes = [16, 32], strides = [1, 1]} : vector<16x96xf32> to vector<16x32xf32>
    %251 = vector.shape_cast %250 : vector<16x32xf32> to vector<1x16x32xf32>
    %252 = vector.shape_cast %251 : vector<1x16x32xf32> to vector<1x16x32xf32>
    %253 = vector.broadcast %252 : vector<1x16x32xf32> to vector<8x16x32xf32>
    %254 = vector.shape_cast %253 : vector<8x16x32xf32> to vector<128x32xf32>
    %255 = arith.mulf %254, %14 : vector<128x32xf32>
    %256 = tpu.transpose %255, [1, 0] : vector<128x32xf32> -> vector<32x128xf32>
    %257 = arith.truncf %256 : vector<32x128xf32> to vector<32x128xbf16>
    %258 = vector.extract_strided_slice %247 {offsets = [0, 64], sizes = [16, 32], strides = [1, 1]} : vector<16x96xf32> to vector<16x32xf32>
    %259 = vector.shape_cast %258 : vector<16x32xf32> to vector<1x16x32xf32>
    %260 = vector.shape_cast %259 : vector<1x16x32xf32> to vector<1x16x32xf32>
    %261 = vector.broadcast %260 : vector<1x16x32xf32> to vector<8x16x32xf32>
    %262 = vector.shape_cast %261 : vector<8x16x32xf32> to vector<128x32xf32>
    %263 = arith.mulf %262, %14 : vector<128x32xf32>
    %264 = arith.truncf %263 : vector<128x32xf32> to vector<128x32xbf16>
    %cst_67 = arith.constant dense<0.000000e+00> : vector<16x128xf32>
    %265 = tpu.matmul %249, %257, %cst_67 {dimension_numbers = #tpu.dot_dimension_numbers<[1], [0], [0], [1], [0, 0, 1, 1], [], []>} : vector<16x32xbf16>, vector<32x128xbf16>, vector<16x128xf32> -> vector<16x128xf32>
    %266 = math.exp2 %265 : vector<16x128xf32>
    %267 = arith.truncf %266 : vector<16x128xf32> to vector<16x128xbf16>
    %cst_68 = arith.constant dense<0.000000e+00> : vector<16x32xf32>
    %268 = tpu.matmul %267, %264, %cst_68 {dimension_numbers = #tpu.dot_dimension_numbers<[1], [0], [0], [1], [0, 0, 1, 1], [], []>} : vector<16x128xbf16>, vector<128x32xbf16>, vector<16x32xf32> -> vector<16x32xf32>
    %cst_69 = arith.constant dense<0.000000e+00> : vector<16x32xf32>
    %269 = tpu.matmul %267, %15, %cst_69 {dimension_numbers = #tpu.dot_dimension_numbers<[1], [0], [0], [1], [0, 0, 1, 1], [], []>} : vector<16x128xbf16>, vector<128x32xbf16>, vector<16x32xf32> -> vector<16x32xf32>
    %270 = tpu.reciprocal %269 {approx = true} : vector<16x32xf32> -> vector<16x32xf32>
    %271 = arith.mulf %268, %270 : vector<16x32xf32>
    %cst_70 = arith.constant dense<0.000000e+00> : vector<16x32xf32>
    %272 = tpu.matmul %271, %16, %cst_70 {dimension_numbers = #tpu.dot_dimension_numbers<[1], [0], [0], [1], [0, 0, 1, 1], [], []>} : vector<16x32xf32>, vector<32x32xf32>, vector<16x32xf32> -> vector<16x32xf32>
    %273 = arith.addf %272, %19 : vector<16x32xf32>
    %274 = arith.index_cast %245 : i32 to index
    %c0_71 = arith.constant 0 : index
    %275 = vector.load %arg8[%274, %c0_71] : memref<128x32xf32, #tpu.memory_space<vmem>>, vector<16x32xf32>
    tpu.vector_store %arg8[%274, %c0_71], %273 {strides = array<i32>} : memref<128x32xf32, #tpu.memory_space<vmem>>, vector<16x32xf32>,
    %c8_i32 = arith.constant 8 : i32
    return
  }
  func.func @transform_0(%arg0: i32) -> (i32, i32) {
    %c0_i32 = arith.constant 0 : i32
    %c0_i32_0 = arith.constant 0 : i32
    return %arg0, %c0_i32 : i32, i32
  }
  func.func @transform_1(%arg0: i32) -> (i32, i32) {
    %c0_i32 = arith.constant 0 : i32
    %c0_i32_0 = arith.constant 0 : i32
    %c0_i32_1 = arith.constant 0 : i32
    return %c0_i32, %c0_i32_0 : i32, i32
  }
  func.func @transform_2(%arg0: i32) -> (i32, i32) {
    %c0_i32 = arith.constant 0 : i32
    %c0_i32_0 = arith.constant 0 : i32
    %c0_i32_1 = arith.constant 0 : i32
    return %c0_i32, %c0_i32_0 : i32, i32
  }
  func.func @transform_3(%arg0: i32) -> (i32, i32) {
    %c0_i32 = arith.constant 0 : i32
    %c0_i32_0 = arith.constant 0 : i32
    %c0_i32_1 = arith.constant 0 : i32
    return %c0_i32, %c0_i32_0 : i32, i32
  }
  func.func @transform_4(%arg0: i32) -> (i32, i32) {
    %c0_i32 = arith.constant 0 : i32
    %c0_i32_0 = arith.constant 0 : i32
    %c0_i32_1 = arith.constant 0 : i32
    return %c0_i32, %c0_i32_0 : i32, i32
  }
  func.func @transform_5(%arg0: i32) -> (i32, i32) {
    %c0_i32 = arith.constant 0 : i32
    %c0_i32_0 = arith.constant 0 : i32
    %c0_i32_1 = arith.constant 0 : i32
    return %c0_i32, %c0_i32_0 : i32, i32
  }
  func.func @transform_6(%arg0: i32) -> (i32, i32) {
    %c0_i32 = arith.constant 0 : i32
    %c0_i32_0 = arith.constant 0 : i32
    %c0_i32_1 = arith.constant 0 : i32
    return %c0_i32, %c0_i32_0 : i32, i32
  }
  func.func @transform_7(%arg0: i32) -> (i32, i32) {
    %c0_i32 = arith.constant 0 : i32
    %c0_i32_0 = arith.constant 0 : i32
    return %arg0, %c0_i32 : i32, i32
  }
}

</mosaic_0001>

<llo_original>
// kernel: tpu_custom_call.1
$region0: #{tpu_custom_call.1}
  #allocation0 [shape = 'u32[]', space=smem, size = 0x4, offset = 0x4, fixed_abs, tag = 'smem constant byte address 0x4 - core index']
  #allocation1 [shape = 'u32[144,128]{1,0:T(1,128)}', space=vmem, size = 0x12000, scoped, tag = 'internal scratch']
  #allocation2 [shape = 'f32[128,96]{1,0:T(8,128)}', space=vmem, size = 0x10000, scoped, tag = 'scratch operand']
  %s0 = inlined_call_operand.vmem [shape: f32[128,32], index: 0, kind: input, shape index: {}]
  %s1 = inlined_call_operand.vmem [shape: f32[32,96], index: 1, kind: input, shape index: {}]
  %s2 = inlined_call_operand.vmem [shape: f32[1,96], index: 2, kind: input, shape index: {}]
  %s3 = inlined_call_operand.vmem [shape: f32[32,32], index: 3, kind: input, shape index: {}]
  %s4 = inlined_call_operand.vmem [shape: f32[1,32], index: 4, kind: input, shape index: {}]
  %s5 = inlined_call_operand.vmem [shape: f32[96,96], index: 5, kind: input, shape index: {}]
  %s6 = inlined_call_operand.vmem [shape: f32[128,32], index: 6, kind: input, shape index: {}]
  %s7 = inlined_call_operand.vmem [shape: f32[128,32], index: 7, kind: output, shape index: {}]
  %s8 = sld [smem:[#allocation0]]
  $region38: #{tpu_custom_call.1} parent=0
    _
  %s10 = ssub.s32 1, %s8
  %s11 = scalar_select 0, %s10, %s8
  // Predicated region
  $region2: #{tpu_custom_call.1} parent=0 // pred_check
    _
  $region3: #{tpu_custom_call.1} parent=0 // pred_check_branch
    %13 = sbr.rel (0) target = $region5
  $region4: #{tpu_custom_call.1} parent=0 // pred_region
    _
  $region5: #{tpu_custom_call.1} parent=0 // pred_fallthru
    _
  // Predicated region
  $region6: #{tpu_custom_call.1} parent=0 // pred_check
    _
  $region7: #{tpu_custom_call.1} parent=0 // pred_check_branch
    %15 = sbr.rel (0) target = $region9
  $region8: #{tpu_custom_call.1} parent=0 // pred_region
    _
  $region9: #{tpu_custom_call.1} parent=0 // pred_fallthru
    _
  // Predicated region
  $region10: #{tpu_custom_call.1} parent=0 // pred_check
    _
  $region11: #{tpu_custom_call.1} parent=0 // pred_check_branch
    %17 = sbr.rel (0) target = $region13
  $region12: #{tpu_custom_call.1} parent=0 // pred_region
    _
  $region13: #{tpu_custom_call.1} parent=0 // pred_fallthru
    _
  // Predicated region
  $region14: #{tpu_custom_call.1} parent=0 // pred_check
    _
  $region15: #{tpu_custom_call.1} parent=0 // pred_check_branch
    %19 = sbr.rel (0) target = $region17
  $region16: #{tpu_custom_call.1} parent=0 // pred_region
    _
  $region17: #{tpu_custom_call.1} parent=0 // pred_fallthru
    _
  // Predicated region
  $region18: #{tpu_custom_call.1} parent=0 // pred_check
    _
  $region19: #{tpu_custom_call.1} parent=0 // pred_check_branch
    %21 = sbr.rel (0) target = $region21
  $region20: #{tpu_custom_call.1} parent=0 // pred_region
    _
  $region21: #{tpu_custom_call.1} parent=0 // pred_fallthru
    _
  // Predicated region
  $region22: #{tpu_custom_call.1} parent=0 // pred_check
    _
  $region23: #{tpu_custom_call.1} parent=0 // pred_check_branch
    %23 = sbr.rel (0) target = $region25
  $region24: #{tpu_custom_call.1} parent=0 // pred_region
    _
  $region25: #{tpu_custom_call.1} parent=0 // pred_fallthru
    _
  // Predicated region
  $region26: #{tpu_custom_call.1} parent=0 // pred_check
    _
  $region27: #{tpu_custom_call.1} parent=0 // pred_check_branch
    %25 = sbr.rel (0) target = $region29
  $region28: #{tpu_custom_call.1} parent=0 // pred_region
    _
  $region29: #{tpu_custom_call.1} parent=0 // pred_fallthru
    _
  %v27 = vld [vmem:[%s0] sm:$0xff]
  %v28 = vld [vmem:[%s0 + $0x8] sm:$0xff]
  %v29 = vld [vmem:[%s0 + $0x10] sm:$0xff]
  %v30 = vld [vmem:[%s0 + $0x18] sm:$0xff]
  %v31 = vld [vmem:[%s0 + $0x20] sm:$0xff]
  %v32 = vld [vmem:[%s0 + $0x28] sm:$0xff]
  %v33 = vld [vmem:[%s0 + $0x30] sm:$0xff]
  %v34 = vld [vmem:[%s0 + $0x38] sm:$0xff]
  %v35 = vld [vmem:[%s0 + $0x40] sm:$0xff]
  %v36 = vld [vmem:[%s0 + $0x48] sm:$0xff]
  %v37 = vld [vmem:[%s0 + $0x50] sm:$0xff]
  %v38 = vld [vmem:[%s0 + $0x58] sm:$0xff]
  %v39 = vld [vmem:[%s0 + $0x60] sm:$0xff]
  %v40 = vld [vmem:[%s0 + $0x68] sm:$0xff]
  %v41 = vld [vmem:[%s0 + $0x70] sm:$0xff]
  %v42 = vld [vmem:[%s0 + $0x78] sm:$0xff]
  %v43 = vld [vmem:[%s1] sm:$0xff]
  %v44 = vld [vmem:[%s1 + $0x8] sm:$0xff]
  %v45 = vld [vmem:[%s1 + $0x10] sm:$0xff]
  %v46 = vld [vmem:[%s1 + $0x18] sm:$0xff]
  %v47 = vld [vmem:[%s2] sm:$0x1]
  %v49 = vlaneseq
  %v50 = vshrl.u32 %v49, 7
  %v51 = vsub.s32 0, %v50
  %v52 = vrot.slane %v47, %v51
  %vm54 = vcmask 261120
  %v56 = vsel %vm54, %v27, 0
  %v59 = vsel %vm54, %v28, 0
  %v62 = vsel %vm54, %v29, 0
  %v65 = vsel %vm54, %v30, 0
  %v68 = vsel %vm54, %v31, 0
  %v71 = vsel %vm54, %v32, 0
  %v74 = vsel %vm54, %v33, 0
  %v77 = vsel %vm54, %v34, 0
  %v80 = vsel %vm54, %v35, 0
  %v83 = vsel %vm54, %v36, 0
  %v86 = vsel %vm54, %v37, 0
  %v89 = vsel %vm54, %v38, 0
  %v92 = vsel %vm54, %v39, 0
  %v95 = vsel %vm54, %v40, 0
  %v98 = vsel %vm54, %v41, 0
  %v101 = vsel %vm54, %v42, 0
  %103 = vmatprep.subr.mxu0 0.0
  %104 = vmatpush1.msra.mxu0 %v43
  %105 = vmatprep.subr.mxu0 0.0
  %106 = vmatpush1.msra.mxu0 %v44
  %107 = vmatprep.subr.mxu0 0.0
  %108 = vmatpush1.msra.mxu0 %v45
  %109 = vmatprep.subr.mxu0 0.0
  %110 = vmatpush1.msra.mxu0 %v46
  %111 = vmatprep.subr.mxu0 0.0
  %112 = vmatpush1.msra.mxu0 0.0
  %113 = vmatprep.subr.mxu0 0.0
  %114 = vmatpush1.msra.mxu0 0.0
  %115 = vmatprep.subr.mxu0 0.0
  %116 = vmatpush1.msra.mxu0 0.0
  %117 = vmatprep.subr.mxu0 0.0
  %118 = vmatpush1.msra.mxu0 0.0
  %119 = vmatprep.subr.mxu0 0.0
  %120 = vmatpush1.msra.mxu0 0.0
  %121 = vmatprep.subr.mxu0 0.0
  %122 = vmatpush1.msra.mxu0 0.0
  %123 = vmatprep.subr.mxu0 0.0
  %124 = vmatpush1.msra.mxu0 0.0
  %125 = vmatprep.subr.mxu0 0.0
  %126 = vmatpush1.msra.mxu0 0.0
  %127 = vmatprep.subr.mxu0 0.0
  %128 = vmatpush1.msra.mxu0 0.0
  %129 = vmatprep.subr.mxu0 0.0
  %130 = vmatpush1.msra.mxu0 0.0
  %131 = vmatprep.subr.mxu0 0.0
  %132 = vmatpush1.msra.mxu0 0.0
  %133 = vmatprep.subr.mxu0 0.0
  %134 = vmatpush1.msra.mxu0 0.0
  %135 = vmatprep.subr.mxu0 0.0
  %136 = vmatpush1.msra.mxu0 0.0
  %137 = vmatprep.subr.mxu0 0.0
  %138 = vmatpush1.msra.mxu0 0.0
  %139 = vmatprep.subr.mxu0 0.0
  %140 = vmatpush1.msra.mxu0 0.0
  %141 = vmatprep.subr.mxu0 0.0
  %142 = vmatpush1.msra.mxu0 0.0
  %143 = vmatprep.subr.mxu0 0.0
  %144 = vmatpush1.msra.mxu0 0.0
  %145 = vmatprep.subr.mxu0 0.0
  %146 = vmatpush1.msra.mxu0 0.0
  %147 = vmatprep.subr.mxu0 0.0
  %148 = vmatpush1.msra.mxu0 0.0
  %149 = vmatprep.subr.mxu0 0.0
  %150 = vmatpush1.msra.mxu0 0.0
  %151 = vmatprep.subr.mxu0 0.0
  %152 = vmatpush1.msra.mxu0 0.0
  %153 = vmatprep.subr.mxu0 0.0
  %154 = vmatpush1.msra.mxu0 0.0
  %155 = vmatprep.subr.mxu0 0.0
  %156 = vmatpush1.msra.mxu0 0.0
  %157 = vmatprep.subr.mxu0 0.0
  %158 = vmatpush1.msra.mxu0 0.0
  %159 = vmatprep.subr.mxu0 0.0
  %160 = vmatpush1.msra.mxu0 0.0
  %161 = vmatprep.subr.mxu0 0.0
  %162 = vmatpush1.msra.mxu0 0.0
  %163 = vmatprep.subr.mxu0 0.0
  %164 = vmatpush1.msra.mxu0 0.0
  %165 = vmatprep.subr.mxu0 0.0
  %166 = vmatpush1.msra.mxu0 0.0
  %167 = vmatprep.mubr.f32.mxu0 0.0
  %168 = vmatmul.mubr.f32.gmra.mrb[0].mxu0 %v56
  %v169 = vpop.f32.mrb[0].mxu0
  %v170 = vadd.f32 %v52, %v169
  %v171 = vpop.f32.mrb[0].mxu0
  %172 = vmatprep.mubr.f32.mxu0 0.0
  %173 = vmatmul.mubr.f32.gmra.mrb[0].mxu0 %v59
  %v174 = vpop.f32.mrb[0].mxu0
  %v175 = vadd.f32 %v52, %v174
  %v176 = vpop.f32.mrb[0].mxu0
  %177 = vmatprep.mubr.f32.mxu0 0.0
  %178 = vmatmul.mubr.f32.gmra.mrb[0].mxu0 %v62
  %v179 = vpop.f32.mrb[0].mxu0
  %v180 = vadd.f32 %v52, %v179
  %v181 = vpop.f32.mrb[0].mxu0
  %182 = vmatprep.mubr.f32.mxu0 0.0
  %183 = vmatmul.mubr.f32.gmra.mrb[0].mxu0 %v65
  %v184 = vpop.f32.mrb[0].mxu0
  %v185 = vadd.f32 %v52, %v184
  %v186 = vpop.f32.mrb[0].mxu0
  %187 = vmatprep.mubr.f32.mxu0 0.0
  %188 = vmatmul.mubr.f32.gmra.mrb[0].mxu0 %v68
  %v189 = vpop.f32.mrb[0].mxu0
  %v190 = vadd.f32 %v52, %v189
  %v191 = vpop.f32.mrb[0].mxu0
  %192 = vmatprep.mubr.f32.mxu0 0.0
  %193 = vmatmul.mubr.f32.gmra.mrb[0].mxu0 %v71
  %v194 = vpop.f32.mrb[0].mxu0
  %v195 = vadd.f32 %v52, %v194
  %v196 = vpop.f32.mrb[0].mxu0
  %197 = vmatprep.mubr.f32.mxu0 0.0
  %198 = vmatmul.mubr.f32.gmra.mrb[0].mxu0 %v74
  %v199 = vpop.f32.mrb[0].mxu0
  %v200 = vadd.f32 %v52, %v199
  %v201 = vpop.f32.mrb[0].mxu0
  %202 = vmatprep.mubr.f32.mxu0 0.0
  %203 = vmatmul.mubr.f32.gmra.mrb[0].mxu0 %v77
  %v204 = vpop.f32.mrb[0].mxu0
  %v205 = vadd.f32 %v52, %v204
  %v206 = vpop.f32.mrb[0].mxu0
  %207 = vmatprep.mubr.f32.mxu0 0.0
  %208 = vmatmul.mubr.f32.gmra.mrb[0].mxu0 %v80
  %v209 = vpop.f32.mrb[0].mxu0
  %v210 = vadd.f32 %v52, %v209
  %v211 = vpop.f32.mrb[0].mxu0
  %212 = vmatprep.mubr.f32.mxu0 0.0
  %213 = vmatmul.mubr.f32.gmra.mrb[0].mxu0 %v83
  %v214 = vpop.f32.mrb[0].mxu0
  %v215 = vadd.f32 %v52, %v214
  %v216 = vpop.f32.mrb[0].mxu0
  %217 = vmatprep.mubr.f32.mxu0 0.0
  %218 = vmatmul.mubr.f32.gmra.mrb[0].mxu0 %v86
  %v219 = vpop.f32.mrb[0].mxu0
  %v220 = vadd.f32 %v52, %v219
  %v221 = vpop.f32.mrb[0].mxu0
  %222 = vmatprep.mubr.f32.mxu0 0.0
  %223 = vmatmul.mubr.f32.gmra.mrb[0].mxu0 %v89
  %v224 = vpop.f32.mrb[0].mxu0
  %v225 = vadd.f32 %v52, %v224
  %v226 = vpop.f32.mrb[0].mxu0
  %227 = vmatprep.mubr.f32.mxu0 0.0
  %228 = vmatmul.mubr.f32.gmra.mrb[0].mxu0 %v92
  %v229 = vpop.f32.mrb[0].mxu0
  %v230 = vadd.f32 %v52, %v229
  %v231 = vpop.f32.mrb[0].mxu0
  %232 = vmatprep.mubr.f32.mxu0 0.0
  %233 = vmatmul.mubr.f32.gmra.mrb[0].mxu0 %v95
  %v234 = vpop.f32.mrb[0].mxu0
  %v235 = vadd.f32 %v52, %v234
  %v236 = vpop.f32.mrb[0].mxu0
  %237 = vmatprep.mubr.f32.mxu0 0.0
  %238 = vmatmul.mubr.f32.gmra.mrb[0].mxu0 %v98
  %v239 = vpop.f32.mrb[0].mxu0
  %v240 = vadd.f32 %v52, %v239
  %v241 = vpop.f32.mrb[0].mxu0
  %242 = vmatprep.mubr.f32.mxu0 0.0
  %243 = vmatmul.mubr.f32.gmra.mrb[0].mxu0 %v101
  %v244 = vpop.f32.mrb[0].mxu0
  %v245 = vadd.f32 %v52, %v244
  %v246 = vpop.f32.mrb[0].mxu0
  %247 = vdwg.mxu0
  %v248 = vmul.f32 %v170, %v170
  %v249 = vmul.f32 %v175, %v175
  %v250 = vmul.f32 %v180, %v180
  %v251 = vmul.f32 %v185, %v185
  %v252 = vmul.f32 %v190, %v190
  %v253 = vmul.f32 %v195, %v195
  %v254 = vmul.f32 %v200, %v200
  %v255 = vmul.f32 %v205, %v205
  %v256 = vmul.f32 %v210, %v210
  %v257 = vmul.f32 %v215, %v215
  %v258 = vmul.f32 %v220, %v220
  %v259 = vmul.f32 %v225, %v225
  %v260 = vmul.f32 %v230, %v230
  %v261 = vmul.f32 %v235, %v235
  %v262 = vmul.f32 %v240, %v240
  %v263 = vmul.f32 %v245, %v245
  %v264 = vld [vmem:[%s5] sm:$0xff]
  %v265 = vld [vmem:[%s5 + $0x8] sm:$0xff]
  %v266 = vld [vmem:[%s5 + $0x10] sm:$0xff]
  %v267 = vld [vmem:[%s5 + $0x18] sm:$0xff]
  %v268 = vld [vmem:[%s5 + $0x20] sm:$0xff]
  %v269 = vld [vmem:[%s5 + $0x28] sm:$0xff]
  %v270 = vld [vmem:[%s5 + $0x30] sm:$0xff]
  %v271 = vld [vmem:[%s5 + $0x38] sm:$0xff]
  %v272 = vld [vmem:[%s5 + $0x40] sm:$0xff]
  %v273 = vld [vmem:[%s5 + $0x48] sm:$0xff]
  %v274 = vld [vmem:[%s5 + $0x50] sm:$0xff]
  %v275 = vld [vmem:[%s5 + $0x58] sm:$0xff]
  %vm276 = vcmask 785408
  %v278 = vsel %vm276, %v248, 0
  %v281 = vsel %vm276, %v249, 0
  %v284 = vsel %vm276, %v250, 0
  %v287 = vsel %vm276, %v251, 0
  %v290 = vsel %vm276, %v252, 0
  %v293 = vsel %vm276, %v253, 0
  %v296 = vsel %vm276, %v254, 0
  %v299 = vsel %vm276, %v255, 0
  %v302 = vsel %vm276, %v256, 0
  %v305 = vsel %vm276, %v257, 0
  %v308 = vsel %vm276, %v258, 0
  %v311 = vsel %vm276, %v259, 0
  %v314 = vsel %vm276, %v260, 0
  %v317 = vsel %vm276, %v261, 0
  %v320 = vsel %vm276, %v262, 0
  %v323 = vsel %vm276, %v263, 0
  %325 = vmatprep.subr.mxu0 0.0
  %326 = vmatpush1.msra.mxu0 %v264
  %327 = vmatprep.subr.mxu0 0.0
  %328 = vmatpush1.msra.mxu0 %v265
  %329 = vmatprep.subr.mxu0 0.0
  %330 = vmatpush1.msra.mxu0 %v266
  %331 = vmatprep.subr.mxu0 0.0
  %332 = vmatpush1.msra.mxu0 %v267
  %333 = vmatprep.subr.mxu0 0.0
  %334 = vmatpush1.msra.mxu0 %v268
  %335 = vmatprep.subr.mxu0 0.0
  %336 = vmatpush1.msra.mxu0 %v269
  %337 = vmatprep.subr.mxu0 0.0
  %338 = vmatpush1.msra.mxu0 %v270
  %339 = vmatprep.subr.mxu0 0.0
  %340 = vmatpush1.msra.mxu0 %v271
  %341 = vmatprep.subr.mxu0 0.0
  %342 = vmatpush1.msra.mxu0 %v272
  %343 = vmatprep.subr.mxu0 0.0
  %344 = vmatpush1.msra.mxu0 %v273
  %345 = vmatprep.subr.mxu0 0.0
  %346 = vmatpush1.msra.mxu0 %v274
  %347 = vmatprep.subr.mxu0 0.0
  %348 = vmatpush1.msra.mxu0 %v275
  %349 = vmatprep.subr.mxu0 0.0
  %350 = vmatpush1.msra.mxu0 0.0
  %351 = vmatprep.subr.mxu0 0.0
  %352 = vmatpush1.msra.mxu0 0.0
  %353 = vmatprep.subr.mxu0 0.0
  %354 = vmatpush1.msra.mxu0 0.0
  %355 = vmatprep.subr.mxu0 0.0
  %356 = vmatpush1.msra.mxu0 0.0
  %357 = vmatprep.subr.mxu0 0.0
  %358 = vmatpush1.msra.mxu0 0.0
  %359 = vmatprep.subr.mxu0 0.0
  %360 = vmatpush1.msra.mxu0 0.0
  %361 = vmatprep.subr.mxu0 0.0
  %362 = vmatpush1.msra.mxu0 0.0
  %363 = vmatprep.subr.mxu0 0.0
  %364 = vmatpush1.msra.mxu0 0.0
  %365 = vmatprep.subr.mxu0 0.0
  %366 = vmatpush1.msra.mxu0 0.0
  %367 = vmatprep.subr.mxu0 0.0
  %368 = vmatpush1.msra.mxu0 0.0
  %369 = vmatprep.subr.mxu0 0.0
  %370 = vmatpush1.msra.mxu0 0.0
  %371 = vmatprep.subr.mxu0 0.0
  %372 = vmatpush1.msra.mxu0 0.0
  %373 = vmatprep.subr.mxu0 0.0
  %374 = vmatpush1.msra.mxu0 0.0
  %375 = vmatprep.subr.mxu0 0.0
  %376 = vmatpush1.msra.mxu0 0.0
  %377 = vmatprep.subr.mxu0 0.0
  %378 = vmatpush1.msra.mxu0 0.0
  %379 = vmatprep.subr.mxu0 0.0
  %380 = vmatpush1.msra.mxu0 0.0
  %381 = vmatprep.subr.mxu0 0.0
  %382 = vmatpush1.msra.mxu0 0.0
  %383 = vmatprep.subr.mxu0 0.0
  %384 = vmatpush1.msra.mxu0 0.0
  %385 = vmatprep.subr.mxu0 0.0
  %386 = vmatpush1.msra.mxu0 0.0
  %387 = vmatprep.subr.mxu0 0.0
  %388 = vmatpush1.msra.mxu0 0.0
  %389 = vmatprep.mubr.f32.mxu0 0.0
  %390 = vmatmul.mubr.f32.gmra.mrb[0].mxu0 %v278
  %v391 = vpop.f32.mrb[0].mxu0
  %v392 = vadd.f32 0.0, %v391
  %v393 = vpop.f32.mrb[0].mxu0
  %394 = vmatprep.mubr.f32.mxu0 0.0
  %395 = vmatmul.mubr.f32.gmra.mrb[0].mxu0 %v281
  %v396 = vpop.f32.mrb[0].mxu0
  %v397 = vadd.f32 0.0, %v396
  %v398 = vpop.f32.mrb[0].mxu0
  %399 = vmatprep.mubr.f32.mxu0 0.0
  %400 = vmatmul.mubr.f32.gmra.mrb[0].mxu0 %v284
  %v401 = vpop.f32.mrb[0].mxu0
  %v402 = vadd.f32 0.0, %v401
  %v403 = vpop.f32.mrb[0].mxu0
  %404 = vmatprep.mubr.f32.mxu0 0.0
  %405 = vmatmul.mubr.f32.gmra.mrb[0].mxu0 %v287
  %v406 = vpop.f32.mrb[0].mxu0
  %v407 = vadd.f32 0.0, %v406
  %v408 = vpop.f32.mrb[0].mxu0
  %409 = vmatprep.mubr.f32.mxu0 0.0
  %410 = vmatmul.mubr.f32.gmra.mrb[0].mxu0 %v290
  %v411 = vpop.f32.mrb[0].mxu0
  %v412 = vadd.f32 0.0, %v411
  %v413 = vpop.f32.mrb[0].mxu0
  %414 = vmatprep.mubr.f32.mxu0 0.0
  %415 = vmatmul.mubr.f32.gmra.mrb[0].mxu0 %v293
  %v416 = vpop.f32.mrb[0].mxu0
  %v417 = vadd.f32 0.0, %v416
  %v418 = vpop.f32.mrb[0].mxu0
  %419 = vmatprep.mubr.f32.mxu0 0.0
  %420 = vmatmul.mubr.f32.gmra.mrb[0].mxu0 %v296
  %v421 = vpop.f32.mrb[0].mxu0
  %v422 = vadd.f32 0.0, %v421
  %v423 = vpop.f32.mrb[0].mxu0
  %424 = vmatprep.mubr.f32.mxu0 0.0
  %425 = vmatmul.mubr.f32.gmra.mrb[0].mxu0 %v299
  %v426 = vpop.f32.mrb[0].mxu0
  %v427 = vadd.f32 0.0, %v426
  %v428 = vpop.f32.mrb[0].mxu0
  %429 = vmatprep.mubr.f32.mxu0 0.0
  %430 = vmatmul.mubr.f32.gmra.mrb[0].mxu0 %v302
  %v431 = vpop.f32.mrb[0].mxu0
  %v432 = vadd.f32 0.0, %v431
  %v433 = vpop.f32.mrb[0].mxu0
  %434 = vmatprep.mubr.f32.mxu0 0.0
  %435 = vmatmul.mubr.f32.gmra.mrb[0].mxu0 %v305
  %v436 = vpop.f32.mrb[0].mxu0
  %v437 = vadd.f32 0.0, %v436
  %v438 = vpop.f32.mrb[0].mxu0
  %439 = vmatprep.mubr.f32.mxu0 0.0
  %440 = vmatmul.mubr.f32.gmra.mrb[0].mxu0 %v308
  %v441 = vpop.f32.mrb[0].mxu0
  %v442 = vadd.f32 0.0, %v441
  %v443 = vpop.f32.mrb[0].mxu0
  %444 = vmatprep.mubr.f32.mxu0 0.0
  %445 = vmatmul.mubr.f32.gmra.mrb[0].mxu0 %v311
  %v446 = vpop.f32.mrb[0].mxu0
  %v447 = vadd.f32 0.0, %v446
  %v448 = vpop.f32.mrb[0].mxu0
  %449 = vmatprep.mubr.f32.mxu0 0.0
  %450 = vmatmul.mubr.f32.gmra.mrb[0].mxu0 %v314
  %v451 = vpop.f32.mrb[0].mxu0
  %v452 = vadd.f32 0.0, %v451
  %v453 = vpop.f32.mrb[0].mxu0
  %454 = vmatprep.mubr.f32.mxu0 0.0
  %455 = vmatmul.mubr.f32.gmra.mrb[0].mxu0 %v317
  %v456 = vpop.f32.mrb[0].mxu0
  %v457 = vadd.f32 0.0, %v456
  %v458 = vpop.f32.mrb[0].mxu0
  %459 = vmatprep.mubr.f32.mxu0 0.0
  %460 = vmatmul.mubr.f32.gmra.mrb[0].mxu0 %v320
  %v461 = vpop.f32.mrb[0].mxu0
  %v462 = vadd.f32 0.0, %v461
  %v463 = vpop.f32.mrb[0].mxu0
  %464 = vmatprep.mubr.f32.mxu0 0.0
  %465 = vmatmul.mubr.f32.gmra.mrb[0].mxu0 %v323
  %v466 = vpop.f32.mrb[0].mxu0
  %v467 = vadd.f32 0.0, %v466
  %v468 = vpop.f32.mrb[0].mxu0
  %469 = vdwg.mxu0
  %v470 = vmax.f32 %v392, 1e-24
  %v471 = vmax.f32 %v397, 1e-24
  %v472 = vmax.f32 %v402, 1e-24
  %v473 = vmax.f32 %v407, 1e-24
  %v474 = vmax.f32 %v412, 1e-24
  %v475 = vmax.f32 %v417, 1e-24
  %v476 = vmax.f32 %v422, 1e-24
  %v477 = vmax.f32 %v427, 1e-24
  %v478 = vmax.f32 %v432, 1e-24
  %v479 = vmax.f32 %v437, 1e-24
  %v480 = vmax.f32 %v442, 1e-24
  %v481 = vmax.f32 %v447, 1e-24
  %v482 = vmax.f32 %v452, 1e-24
  %v483 = vmax.f32 %v457, 1e-24
  %v484 = vmax.f32 %v462, 1e-24
  %v485 = vmax.f32 %v467, 1e-24
  %v486 = vrsqrt.pop %v470
  %v487 = vrsqrt.pop %v471
  %v488 = vrsqrt.pop %v472
  %v489 = vrsqrt.pop %v473
  %v490 = vrsqrt.pop %v474
  %v491 = vrsqrt.pop %v475
  %v492 = vrsqrt.pop %v476
  %v493 = vrsqrt.pop %v477
  %v494 = vrsqrt.pop %v478
  %v495 = vrsqrt.pop %v479
  %v496 = vrsqrt.pop %v480
  %v497 = vrsqrt.pop %v481
  %v498 = vrsqrt.pop %v482
  %v499 = vrsqrt.pop %v483
  %v500 = vrsqrt.pop %v484
  %v501 = vrsqrt.pop %v485
  %v502 = vmul.f32 %v170, %v486
  %v503 = vmul.f32 %v175, %v487
  %v504 = vmul.f32 %v180, %v488
  %v505 = vmul.f32 %v185, %v489
  %v506 = vmul.f32 %v190, %v490
  %v507 = vmul.f32 %v195, %v491
  %v508 = vmul.f32 %v200, %v492
  %v509 = vmul.f32 %v205, %v493
  %v510 = vmul.f32 %v210, %v494
  %v511 = vmul.f32 %v215, %v495
  %v512 = vmul.f32 %v220, %v496
  %v513 = vmul.f32 %v225, %v497
  %v514 = vmul.f32 %v230, %v498
  %v515 = vmul.f32 %v235, %v499
  %v516 = vmul.f32 %v240, %v500
  %v517 = vmul.f32 %v245, %v501
  %518 = vst.msk [vmem:[#allocation2] sm:$0xff] %vm276, %v502
  %519 = vst.msk [vmem:[#allocation2 + $0x8] sm:$0xff] %vm276, %v503
  %520 = vst.msk [vmem:[#allocation2 + $0x10] sm:$0xff] %vm276, %v504
  %521 = vst.msk [vmem:[#allocation2 + $0x18] sm:$0xff] %vm276, %v505
  %522 = vst.msk [vmem:[#allocation2 + $0x20] sm:$0xff] %vm276, %v506
  %523 = vst.msk [vmem:[#allocation2 + $0x28] sm:$0xff] %vm276, %v507
  %524 = vst.msk [vmem:[#allocation2 + $0x30] sm:$0xff] %vm276, %v508
  %525 = vst.msk [vmem:[#allocation2 + $0x38] sm:$0xff] %vm276, %v509
  %526 = vst.msk [vmem:[#allocation2 + $0x40] sm:$0xff] %vm276, %v510
  %527 = vst.msk [vmem:[#allocation2 + $0x48] sm:$0xff] %vm276, %v511
  %528 = vst.msk [vmem:[#allocation2 + $0x50] sm:$0xff] %vm276, %v512
  %529 = vst.msk [vmem:[#allocation2 + $0x58] sm:$0xff] %vm276, %v513
  %530 = vst.msk [vmem:[#allocation2 + $0x60] sm:$0xff] %vm276, %v514
  %531 = vst.msk [vmem:[#allocation2 + $0x68] sm:$0xff] %vm276, %v515
  %532 = vst.msk [vmem:[#allocation2 + $0x70] sm:$0xff] %vm276, %v516
  %533 = vst.msk [vmem:[#allocation2 + $0x78] sm:$0xff] %vm276, %v517
  %v534 = vld [vmem:[%s6] sm:$0xff]
  %v535 = vld [vmem:[%s6 + $0x8] sm:$0xff]
  %v536 = vld [vmem:[%s6 + $0x10] sm:$0xff]
  %v537 = vld [vmem:[%s6 + $0x18] sm:$0xff]
  %v538 = vld [vmem:[%s6 + $0x20] sm:$0xff]
  %v539 = vld [vmem:[%s6 + $0x28] sm:$0xff]
  %v540 = vld [vmem:[%s6 + $0x30] sm:$0xff]
  %v541 = vld [vmem:[%s6 + $0x38] sm:$0xff]
  %v542 = vld [vmem:[%s6 + $0x40] sm:$0xff]
  %v543 = vld [vmem:[%s6 + $0x48] sm:$0xff]
  %v544 = vld [vmem:[%s6 + $0x50] sm:$0xff]
  %v545 = vld [vmem:[%s6 + $0x58] sm:$0xff]
  %v546 = vld [vmem:[%s6 + $0x60] sm:$0xff]
  %v547 = vld [vmem:[%s6 + $0x68] sm:$0xff]
  %v548 = vld [vmem:[%s6 + $0x70] sm:$0xff]
  %v549 = vld [vmem:[%s6 + $0x78] sm:$0xff]
  %v550 = vpack.c.bf16 %v535, %v534
  %v551 = vpack.c.bf16 %v537, %v536
  %v552 = vpack.c.bf16 %v539, %v538
  %v553 = vpack.c.bf16 %v541, %v540
  %v554 = vpack.c.bf16 %v543, %v542
  %v555 = vpack.c.bf16 %v545, %v544
  %v556 = vpack.c.bf16 %v547, %v546
  %v557 = vpack.c.bf16 %v549, %v548
  %v558 = vld [vmem:[%s3] sm:$0xff]
  %v559 = vld [vmem:[%s3 + $0x8] sm:$0xff]
  %v560 = vld [vmem:[%s3 + $0x10] sm:$0xff]
  %v561 = vld [vmem:[%s3 + $0x18] sm:$0xff]
  %v562 = vld [vmem:[%s4] sm:$0x1]
  %v564 = vlaneseq
  %v565 = vshrl.u32 %v564, 7
  %v566 = vsub.s32 0, %v565
  %v567 = vrot.slane %v562, %v566
  %v569 = vld [vmem:[#allocation2] sm:$0xff]
  %v570 = vld [vmem:[#allocation2 + $0x8] sm:$0xff]
  %v571 = vpack.c.bf16 %v570, %v569
  %588 = vrot.lane.b32.xlu0 %v534, 32
  %v589 = vpop.permute.xlu0 %588
  %590 = vrot.lane.b32.xlu0 %v535, 32
  %v591 = vpop.permute.xlu0 %590
  %592 = vrot.lane.b32.xlu0 %v536, 32
  %v593 = vpop.permute.xlu0 %592
  %594 = vrot.lane.b32.xlu0 %v537, 32
  %v595 = vpop.permute.xlu0 %594
  %596 = vrot.lane.b32.xlu0 %v538, 32
  %v597 = vpop.permute.xlu0 %596
  %598 = vrot.lane.b32.xlu0 %v539, 32
  %v599 = vpop.permute.xlu0 %598
  %600 = vrot.lane.b32.xlu0 %v540, 32
  %v601 = vpop.permute.xlu0 %600
  %602 = vrot.lane.b32.xlu0 %v541, 32
  %v603 = vpop.permute.xlu0 %602
  %604 = vrot.lane.b32.xlu0 %v542, 32
  %v605 = vpop.permute.xlu0 %604
  %606 = vrot.lane.b32.xlu0 %v543, 32
  %v607 = vpop.permute.xlu0 %606
  %608 = vrot.lane.b32.xlu0 %v544, 32
  %v609 = vpop.permute.xlu0 %608
  %610 = vrot.lane.b32.xlu0 %v545, 32
  %v611 = vpop.permute.xlu0 %610
  %612 = vrot.lane.b32.xlu0 %v546, 32
  %v613 = vpop.permute.xlu0 %612
  %614 = vrot.lane.b32.xlu0 %v547, 32
  %v615 = vpop.permute.xlu0 %614
  %616 = vrot.lane.b32.xlu0 %v548, 32
  %v617 = vpop.permute.xlu0 %616
  %618 = vrot.lane.b32.xlu0 %v549, 32
  %v619 = vpop.permute.xlu0 %618
  %v636 = vmul.f32 %v569, %v589
  %v637 = vmul.f32 %v570, %v591
  %v638 = vmul.f32 %v569, %v593
  %v639 = vmul.f32 %v570, %v595
  %v640 = vmul.f32 %v569, %v597
  %v641 = vmul.f32 %v570, %v599
  %v642 = vmul.f32 %v569, %v601
  %v643 = vmul.f32 %v570, %v603
  %v644 = vmul.f32 %v569, %v605
  %v645 = vmul.f32 %v570, %v607
  %v646 = vmul.f32 %v569, %v609
  %v647 = vmul.f32 %v570, %v611
  %v648 = vmul.f32 %v569, %v613
  %v649 = vmul.f32 %v570, %v615
  %v650 = vmul.f32 %v569, %v617
  %v651 = vmul.f32 %v570, %v619
  %668 = vrot.lane.b32.xlu0 %v636, 96
  %v669 = vpop.permute.xlu0 %668
  %670 = vrot.lane.b32.xlu0 %v637, 96
  %v671 = vpop.permute.xlu0 %670
  %672 = vrot.lane.b32.xlu0 %v638, 96
  %v673 = vpop.permute.xlu0 %672
  %674 = vrot.lane.b32.xlu0 %v639, 96
  %v675 = vpop.permute.xlu0 %674
  %676 = vrot.lane.b32.xlu0 %v640, 96
  %v677 = vpop.permute.xlu0 %676
  %678 = vrot.lane.b32.xlu0 %v641, 96
  %v679 = vpop.permute.xlu0 %678
  %680 = vrot.lane.b32.xlu0 %v642, 96
  %v681 = vpop.permute.xlu0 %680
  %682 = vrot.lane.b32.xlu0 %v643, 96
  %v683 = vpop.permute.xlu0 %682
  %684 = vrot.lane.b32.xlu0 %v644, 96
  %v685 = vpop.permute.xlu0 %684
  %686 = vrot.lane.b32.xlu0 %v645, 96
  %v687 = vpop.permute.xlu0 %686
  %688 = vrot.lane.b32.xlu0 %v646, 96
  %v689 = vpop.permute.xlu0 %688
  %690 = vrot.lane.b32.xlu0 %v647, 96
  %v691 = vpop.permute.xlu0 %690
  %692 = vrot.lane.b32.xlu0 %v648, 96
  %v693 = vpop.permute.xlu0 %692
  %694 = vrot.lane.b32.xlu0 %v649, 96
  %v695 = vpop.permute.xlu0 %694
  %696 = vrot.lane.b32.xlu0 %v650, 96
  %v697 = vpop.permute.xlu0 %696
  %698 = vrot.lane.b32.xlu0 %v651, 96
  %v699 = vpop.permute.xlu0 %698
  %716 = vxpose.xlu0.b32.start [1/16] %v669, 128
  %717 = vxpose.xlu0.b32.cont [2/16] %v671, 128
  %718 = vxpose.xlu0.b32.cont [3/16] %v673, 128
  %719 = vxpose.xlu0.b32.cont [4/16] %v675, 128
  %720 = vxpose.xlu0.b32.cont [5/16] %v677, 128
  %721 = vxpose.xlu0.b32.cont [6/16] %v679, 128
  %722 = vxpose.xlu0.b32.cont [7/16] %v681, 128
  %723 = vxpose.xlu0.b32.cont [8/16] %v683, 128
  %724 = vxpose.xlu0.b32.cont [9/16] %v685, 128
  %725 = vxpose.xlu0.b32.cont [10/16] %v687, 128
  %726 = vxpose.xlu0.b32.cont [11/16] %v689, 128
  %727 = vxpose.xlu0.b32.cont [12/16] %v691, 128
  %728 = vxpose.xlu0.b32.cont [13/16] %v693, 128
  %729 = vxpose.xlu0.b32.cont [14/16] %v695, 128
  %730 = vxpose.xlu0.b32.cont [15/16] %v697, 128
  %731 = vxpose.xlu0.b32.end [16/16] %v699, 128
  %v732 = vpop.trf.xlu0
  %v733 = vpop.trf.xlu0
  %v734 = vpop.trf.xlu0
  %v735 = vpop.trf.xlu0
  %v736 = vpop.trf.xlu0
  %v737 = vpop.trf.xlu0
  %v738 = vpop.trf.xlu0
  %v739 = vpop.trf.xlu0
  %v740 = vpop.trf.xlu0
  %v741 = vpop.trf.xlu0
  %v742 = vpop.trf.xlu0
  %v743 = vpop.trf.xlu0
  %v744 = vpop.trf.xlu0
  %v745 = vpop.trf.xlu0
  %v746 = vpop.trf.xlu0
  %v747 = vpop.trf.xlu0
  %v748 = vpack.c.bf16 %v733, %v732
  %v749 = vpack.c.bf16 %v735, %v734
  %750 = vrot.lane.b32.xlu0 %v534, 64
  %v751 = vpop.permute.xlu0 %750
  %752 = vrot.lane.b32.xlu0 %v535, 64
  %v753 = vpop.permute.xlu0 %752
  %754 = vrot.lane.b32.xlu0 %v536, 64
  %v755 = vpop.permute.xlu0 %754
  %756 = vrot.lane.b32.xlu0 %v537, 64
  %v757 = vpop.permute.xlu0 %756
  %758 = vrot.lane.b32.xlu0 %v538, 64
  %v759 = vpop.permute.xlu0 %758
  %760 = vrot.lane.b32.xlu0 %v539, 64
  %v761 = vpop.permute.xlu0 %760
  %762 = vrot.lane.b32.xlu0 %v540, 64
  %v763 = vpop.permute.xlu0 %762
  %764 = vrot.lane.b32.xlu0 %v541, 64
  %v765 = vpop.permute.xlu0 %764
  %766 = vrot.lane.b32.xlu0 %v542, 64
  %v767 = vpop.permute.xlu0 %766
  %768 = vrot.lane.b32.xlu0 %v543, 64
  %v769 = vpop.permute.xlu0 %768
  %770 = vrot.lane.b32.xlu0 %v544, 64
  %v771 = vpop.permute.xlu0 %770
  %772 = vrot.lane.b32.xlu0 %v545, 64
  %v773 = vpop.permute.xlu0 %772
  %774 = vrot.lane.b32.xlu0 %v546, 64
  %v775 = vpop.permute.xlu0 %774
  %776 = vrot.lane.b32.xlu0 %v547, 64
  %v777 = vpop.permute.xlu0 %776
  %778 = vrot.lane.b32.xlu0 %v548, 64
  %v779 = vpop.permute.xlu0 %778
  %780 = vrot.lane.b32.xlu0 %v549, 64
  %v781 = vpop.permute.xlu0 %780
  %v798 = vmul.f32 %v569, %v751
  %v799 = vmul.f32 %v570, %v753
  %v800 = vmul.f32 %v569, %v755
  %v801 = vmul.f32 %v570, %v757
  %v802 = vmul.f32 %v569, %v759
  %v803 = vmul.f32 %v570, %v761
  %v804 = vmul.f32 %v569, %v763
  %v805 = vmul.f32 %v570, %v765
  %v806 = vmul.f32 %v569, %v767
  %v807 = vmul.f32 %v570, %v769
  %v808 = vmul.f32 %v569, %v771
  %v809 = vmul.f32 %v570, %v773
  %v810 = vmul.f32 %v569, %v775
  %v811 = vmul.f32 %v570, %v777
  %v812 = vmul.f32 %v569, %v779
  %v813 = vmul.f32 %v570, %v781
  %v814 = vpack.c.bf16 %v799, %v798
  %v815 = vpack.c.bf16 %v801, %v800
  %v816 = vpack.c.bf16 %v803, %v802
  %v817 = vpack.c.bf16 %v805, %v804
  %v818 = vpack.c.bf16 %v807, %v806
  %v819 = vpack.c.bf16 %v809, %v808
  %v820 = vpack.c.bf16 %v811, %v810
  %v821 = vpack.c.bf16 %v813, %v812
  %v823 = vsel %vm54, %v571, 0
  %825 = vmatprep.subr.bf16.mxu0 0
  %826 = vmatpush1.bf16.msra.mxu0 %v748
  %827 = vmatprep.subr.bf16.mxu0 0
  %828 = vmatpush1.bf16.msra.mxu0 %v749
  %829 = vmatprep.subr.bf16.mxu0 0
  %830 = vmatpush1.bf16.msra.mxu0 0
  %831 = vmatprep.subr.bf16.mxu0 0
  %832 = vmatpush1.bf16.msra.mxu0 0
  %833 = vmatprep.subr.bf16.mxu0 0
  %834 = vmatpush1.bf16.msra.mxu0 0
  %835 = vmatprep.subr.bf16.mxu0 0
  %836 = vmatpush1.bf16.msra.mxu0 0
  %837 = vmatprep.subr.bf16.mxu0 0
  %838 = vmatpush1.bf16.msra.mxu0 0
  %839 = vmatprep.subr.bf16.mxu0 0
  %840 = vmatpush1.bf16.msra.mxu0 0
  %841 = vmatprep.subr.bf16.mxu0 0
  %842 = vmatpush1.bf16.msra.mxu0 0
  %843 = vmatprep.subr.bf16.mxu0 0
  %844 = vmatpush1.bf16.msra.mxu0 0
  %845 = vmatprep.subr.bf16.mxu0 0
  %846 = vmatpush1.bf16.msra.mxu0 0
  %847 = vmatprep.subr.bf16.mxu0 0
  %848 = vmatpush1.bf16.msra.mxu0 0
  %849 = vmatprep.subr.bf16.mxu0 0
  %850 = vmatpush1.bf16.msra.mxu0 0
  %851 = vmatprep.subr.bf16.mxu0 0
  %852 = vmatpush1.bf16.msra.mxu0 0
  %853 = vmatprep.subr.bf16.mxu0 0
  %854 = vmatpush1.bf16.msra.mxu0 0
  %855 = vmatprep.subr.bf16.mxu0 0
  %856 = vmatpush1.bf16.msra.mxu0 0
  %857 = vmatprep.mubr.bf16.mxu0 0
  %858 = vmatmul.mubr.bf16.gmra.mrb[0].mxu0 %v823
  %v859 = vpop.f32.mrb[0].mxu0
  %v860 = vadd.f32 0.0, %v859
  %v861 = vpop.f32.mrb[0].mxu0
  %v862 = vpop.f32.mrb[0].mxu0
  %v863 = vadd.f32 0.0, %v862
  %v864 = vpop.f32.mrb[0].mxu0
  %865 = vdwg.mxu0
  %v866 = vpow.pop %v860
  %v867 = vpow.pop %v863
  %v868 = vpack.c.bf16 %v867, %v866
  %877 = vrot.lane.b32.xlu0 %v814, 64
  %v878 = vpop.permute.xlu0 %877
  %879 = vrot.lane.b32.xlu0 %v815, 64
  %v880 = vpop.permute.xlu0 %879
  %881 = vrot.lane.b32.xlu0 %v816, 64
  %v882 = vpop.permute.xlu0 %881
  %883 = vrot.lane.b32.xlu0 %v817, 64
  %v884 = vpop.permute.xlu0 %883
  %885 = vrot.lane.b32.xlu0 %v818, 64
  %v886 = vpop.permute.xlu0 %885
  %887 = vrot.lane.b32.xlu0 %v819, 64
  %v888 = vpop.permute.xlu0 %887
  %889 = vrot.lane.b32.xlu0 %v820, 64
  %v890 = vpop.permute.xlu0 %889
  %891 = vrot.lane.b32.xlu0 %v821, 64
  %v892 = vpop.permute.xlu0 %891
  %901 = vmatprep.subr.bf16.mxu0 0
  %902 = vmatpush1.bf16.msra.mxu0 %v878
  %903 = vmatprep.subr.bf16.mxu0 0
  %904 = vmatpush1.bf16.msra.mxu0 %v880
  %905 = vmatprep.subr.bf16.mxu0 0
  %906 = vmatpush1.bf16.msra.mxu0 %v882
  %907 = vmatprep.subr.bf16.mxu0 0
  %908 = vmatpush1.bf16.msra.mxu0 %v884
  %909 = vmatprep.subr.bf16.mxu0 0
  %910 = vmatpush1.bf16.msra.mxu0 %v886
  %911 = vmatprep.subr.bf16.mxu0 0
  %912 = vmatpush1.bf16.msra.mxu0 %v888
  %913 = vmatprep.subr.bf16.mxu0 0
  %914 = vmatpush1.bf16.msra.mxu0 %v890
  %915 = vmatprep.subr.bf16.mxu0 0
  %916 = vmatpush1.bf16.msra.mxu0 %v892
  %917 = vmatprep.subr.bf16.mxu0 0
  %918 = vmatpush1.bf16.msra.mxu0 0
  %919 = vmatprep.subr.bf16.mxu0 0
  %920 = vmatpush1.bf16.msra.mxu0 0
  %921 = vmatprep.subr.bf16.mxu0 0
  %922 = vmatpush1.bf16.msra.mxu0 0
  %923 = vmatprep.subr.bf16.mxu0 0
  %924 = vmatpush1.bf16.msra.mxu0 0
  %925 = vmatprep.subr.bf16.mxu0 0
  %926 = vmatpush1.bf16.msra.mxu0 0
  %927 = vmatprep.subr.bf16.mxu0 0
  %928 = vmatpush1.bf16.msra.mxu0 0
  %929 = vmatprep.subr.bf16.mxu0 0
  %930 = vmatpush1.bf16.msra.mxu0 0
  %931 = vmatprep.subr.bf16.mxu0 0
  %932 = vmatpush1.bf16.msra.mxu0 0
  %933 = vmatprep.mubr.bf16.mxu0 0
  %934 = vmatmul.mubr.bf16.gmra.mrb[0].mxu0 %v868
  %v935 = vpop.f32.mrb[0].mxu0
  %v936 = vadd.f32 0.0, %v935
  %v937 = vpop.f32.mrb[0].mxu0
  %v938 = vpop.f32.mrb[0].mxu0
  %v939 = vadd.f32 0.0, %v938
  %v940 = vpop.f32.mrb[0].mxu0
  %941 = vdwg.mxu0
  %942 = vmatprep.subr.bf16.mxu0 0
  %943 = vmatpush1.bf16.msra.mxu0 %v550
  %944 = vmatprep.subr.bf16.mxu0 0
  %945 = vmatpush1.bf16.msra.mxu0 %v551
  %946 = vmatprep.subr.bf16.mxu0 0
  %947 = vmatpush1.bf16.msra.mxu0 %v552
  %948 = vmatprep.subr.bf16.mxu0 0
  %949 = vmatpush1.bf16.msra.mxu0 %v553
  %950 = vmatprep.subr.bf16.mxu0 0
  %951 = vmatpush1.bf16.msra.mxu0 %v554
  %952 = vmatprep.subr.bf16.mxu0 0
  %953 = vmatpush1.bf16.msra.mxu0 %v555
  %954 = vmatprep.subr.bf16.mxu0 0
  %955 = vmatpush1.bf16.msra.mxu0 %v556
  %956 = vmatprep.subr.bf16.mxu0 0
  %957 = vmatpush1.bf16.msra.mxu0 %v557
  %958 = vmatprep.subr.bf16.mxu0 0
  %959 = vmatpush1.bf16.msra.mxu0 0
  %960 = vmatprep.subr.bf16.mxu0 0
  %961 = vmatpush1.bf16.msra.mxu0 0
  %962 = vmatprep.subr.bf16.mxu0 0
  %963 = vmatpush1.bf16.msra.mxu0 0
  %964 = vmatprep.subr.bf16.mxu0 0
  %965 = vmatpush1.bf16.msra.mxu0 0
  %966 = vmatprep.subr.bf16.mxu0 0
  %967 = vmatpush1.bf16.msra.mxu0 0
  %968 = vmatprep.subr.bf16.mxu0 0
  %969 = vmatpush1.bf16.msra.mxu0 0
  %970 = vmatprep.subr.bf16.mxu0 0
  %971 = vmatpush1.bf16.msra.mxu0 0
  %972 = vmatprep.subr.bf16.mxu0 0
  %973 = vmatpush1.bf16.msra.mxu0 0
  %974 = vmatprep.mubr.bf16.mxu0 0
  %975 = vmatmul.mubr.bf16.gmra.mrb[0].mxu0 %v868
  %v976 = vpop.f32.mrb[0].mxu0
  %v977 = vadd.f32 0.0, %v976
  %v978 = vpop.f32.mrb[0].mxu0
  %v979 = vpop.f32.mrb[0].mxu0
  %v980 = vadd.f32 0.0, %v979
  %v981 = vpop.f32.mrb[0].mxu0
  %982 = vdwg.mxu0
  %v983 = vrcp.pop %v977
  %v984 = vrcp.pop %v980
  %v985 = vmul.f32 %v936, %v983
  %v986 = vmul.f32 %v939, %v984
  %v988 = vsel %vm54, %v985, 0
  %v991 = vsel %vm54, %v986, 0
  %993 = vmatprep.subr.mxu0 0.0
  %994 = vmatpush1.msra.mxu0 %v558
  %995 = vmatprep.subr.mxu0 0.0
  %996 = vmatpush1.msra.mxu0 %v559
  %997 = vmatprep.subr.mxu0 0.0
  %998 = vmatpush1.msra.mxu0 %v560
  %999 = vmatprep.subr.mxu0 0.0
  %1000 = vmatpush1.msra.mxu0 %v561
  %1001 = vmatprep.subr.mxu0 0.0
  %1002 = vmatpush1.msra.mxu0 0.0
  %1003 = vmatprep.subr.mxu0 0.0
  %1004 = vmatpush1.msra.mxu0 0.0
  %1005 = vmatprep.subr.mxu0 0.0
  %1006 = vmatpush1.msra.mxu0 0.0
  %1007 = vmatprep.subr.mxu0 0.0
  %1008 = vmatpush1.msra.mxu0 0.0
  %1009 = vmatprep.subr.mxu0 0.0
  %1010 = vmatpush1.msra.mxu0 0.0
  %1011 = vmatprep.subr.mxu0 0.0
  %1012 = vmatpush1.msra.mxu0 0.0
  %1013 = vmatprep.subr.mxu0 0.0
  %1014 = vmatpush1.msra.mxu0 0.0
  %1015 = vmatprep.subr.mxu0 0.0
  %1016 = vmatpush1.msra.mxu0 0.0
  %1017 = vmatprep.subr.mxu0 0.0
  %1018 = vmatpush1.msra.mxu0 0.0
  %1019 = vmatprep.subr.mxu0 0.0
  %1020 = vmatpush1.msra.mxu0 0.0
  %1021 = vmatprep.subr.mxu0 0.0
  %1022 = vmatpush1.msra.mxu0 0.0
  %1023 = vmatprep.subr.mxu0 0.0
  %1024 = vmatpush1.msra.mxu0 0.0
  %1025 = vmatprep.subr.mxu0 0.0
  %1026 = vmatpush1.msra.mxu0 0.0
  %1027 = vmatprep.subr.mxu0 0.0
  %1028 = vmatpush1.msra.mxu0 0.0
  %1029 = vmatprep.subr.mxu0 0.0
  %1030 = vmatpush1.msra.mxu0 0.0
  %1031 = vmatprep.subr.mxu0 0.0
  %1032 = vmatpush1.msra.mxu0 0.0
  %1033 = vmatprep.subr.mxu0 0.0
  %1034 = vmatpush1.msra.mxu0 0.0
  %1035 = vmatprep.subr.mxu0 0.0
  %1036 = vmatpush1.msra.mxu0 0.0
  %1037 = vmatprep.subr.mxu0 0.0
  %1038 = vmatpush1.msra.mxu0 0.0
  %1039 = vmatprep.subr.mxu0 0.0
  %1040 = vmatpush1.msra.mxu0 0.0
  %1041 = vmatprep.subr.mxu0 0.0
  %1042 = vmatpush1.msra.mxu0 0.0
  %1043 = vmatprep.subr.mxu0 0.0
  %1044 = vmatpush1.msra.mxu0 0.0
  %1045 = vmatprep.subr.mxu0 0.0
  %1046 = vmatpush1.msra.mxu0 0.0
  %1047 = vmatprep.subr.mxu0 0.0
  %1048 = vmatpush1.msra.mxu0 0.0
  %1049 = vmatprep.subr.mxu0 0.0
  %1050 = vmatpush1.msra.mxu0 0.0
  %1051 = vmatprep.subr.mxu0 0.0
  %1052 = vmatpush1.msra.mxu0 0.0
  %1053 = vmatprep.subr.mxu0 0.0
  %1054 = vmatpush1.msra.mxu0 0.0
  %1055 = vmatprep.subr.mxu0 0.0
  %1056 = vmatpush1.msra.mxu0 0.0
  %1057 = vmatprep.mubr.f32.mxu0 0.0
  %1058 = vmatmul.mubr.f32.gmra.mrb[0].mxu0 %v988
  %v1059 = vpop.f32.mrb[0].mxu0
  %v1060 = vadd.f32 %v567, %v1059
  %v1061 = vpop.f32.mrb[0].mxu0
  %1062 = vmatprep.mubr.f32.mxu0 0.0
  %1063 = vmatmul.mubr.f32.gmra.mrb[0].mxu0 %v991
  %v1064 = vpop.f32.mrb[0].mxu0
  %v1065 = vadd.f32 %v567, %v1064
  %v1066 = vpop.f32.mrb[0].mxu0
  %1067 = vdwg.mxu0
  %1068 = vst.msk [vmem:[%s7] sm:$0xff] %vm54, %v1060
  %1069 = vst.msk [vmem:[%s7 + $0x8] sm:$0xff] %vm54, %v1065
  %s1070 = scalar_lea.vmem [#allocation2], 16
  %v1071 = vld [vmem:[%s1070] sm:$0xff]
  %v1072 = vld [vmem:[%s1070 + $0x8] sm:$0xff]
  %v1073 = vpack.c.bf16 %v1072, %v1071
  %v1074 = vmul.f32 %v1071, %v589
  %v1075 = vmul.f32 %v1072, %v591
  %v1076 = vmul.f32 %v1071, %v593
  %v1077 = vmul.f32 %v1072, %v595
  %v1078 = vmul.f32 %v1071, %v597
  %v1079 = vmul.f32 %v1072, %v599
  %v1080 = vmul.f32 %v1071, %v601
  %v1081 = vmul.f32 %v1072, %v603
  %v1082 = vmul.f32 %v1071, %v605
  %v1083 = vmul.f32 %v1072, %v607
  %v1084 = vmul.f32 %v1071, %v609
  %v1085 = vmul.f32 %v1072, %v611
  %v1086 = vmul.f32 %v1071, %v613
  %v1087 = vmul.f32 %v1072, %v615
  %v1088 = vmul.f32 %v1071, %v617
  %v1089 = vmul.f32 %v1072, %v619
  %1106 = vrot.lane.b32.xlu0 %v1074, 96
  %v1107 = vpop.permute.xlu0 %1106
  %1108 = vrot.lane.b32.xlu0 %v1075, 96
  %v1109 = vpop.permute.xlu0 %1108
  %1110 = vrot.lane.b32.xlu0 %v1076, 96
  %v1111 = vpop.permute.xlu0 %1110
  %1112 = vrot.lane.b32.xlu0 %v1077, 96
  %v1113 = vpop.permute.xlu0 %1112
  %1114 = vrot.lane.b32.xlu0 %v1078, 96
  %v1115 = vpop.permute.xlu0 %1114
  %1116 = vrot.lane.b32.xlu0 %v1079, 96
  %v1117 = vpop.permute.xlu0 %1116
  %1118 = vrot.lane.b32.xlu0 %v1080, 96
  %v1119 = vpop.permute.xlu0 %1118
  %1120 = vrot.lane.b32.xlu0 %v1081, 96
  %v1121 = vpop.permute.xlu0 %1120
  %1122 = vrot.lane.b32.xlu0 %v1082, 96
  %v1123 = vpop.permute.xlu0 %1122
  %1124 = vrot.lane.b32.xlu0 %v1083, 96
  %v1125 = vpop.permute.xlu0 %1124
  %1126 = vrot.lane.b32.xlu0 %v1084, 96
  %v1127 = vpop.permute.xlu0 %1126
  %1128 = vrot.lane.b32.xlu0 %v1085, 96
  %v1129 = vpop.permute.xlu0 %1128
  %1130 = vrot.lane.b32.xlu0 %v1086, 96
  %v1131 = vpop.permute.xlu0 %1130
  %1132 = vrot.lane.b32.xlu0 %v1087, 96
  %v1133 = vpop.permute.xlu0 %1132
  %1134 = vrot.lane.b32.xlu0 %v1088, 96
  %v1135 = vpop.permute.xlu0 %1134
  %1136 = vrot.lane.b32.xlu0 %v1089, 96
  %v1137 = vpop.permute.xlu0 %1136
  %1154 = vxpose.xlu0.b32.start [1/16] %v1107, 128
  %1155 = vxpose.xlu0.b32.cont [2/16] %v1109, 128
  %1156 = vxpose.xlu0.b32.cont [3/16] %v1111, 128
  %1157 = vxpose.xlu0.b32.cont [4/16] %v1113, 128
  %1158 = vxpose.xlu0.b32.cont [5/16] %v1115, 128
  %1159 = vxpose.xlu0.b32.cont [6/16] %v1117, 128
  %1160 = vxpose.xlu0.b32.cont [7/16] %v1119, 128
  %1161 = vxpose.xlu0.b32.cont [8/16] %v1121, 128
  %1162 = vxpose.xlu0.b32.cont [9/16] %v1123, 128
  %1163 = vxpose.xlu0.b32.cont [10/16] %v1125, 128
  %1164 = vxpose.xlu0.b32.cont [11/16] %v1127, 128
  %1165 = vxpose.xlu0.b32.cont [12/16] %v1129, 128
  %1166 = vxpose.xlu0.b32.cont [13/16] %v1131, 128
  %1167 = vxpose.xlu0.b32.cont [14/16] %v1133, 128
  %1168 = vxpose.xlu0.b32.cont [15/16] %v1135, 128
  %1169 = vxpose.xlu0.b32.end [16/16] %v1137, 128
  %v1170 = vpop.trf.xlu0
  %v1171 = vpop.trf.xlu0
  %v1172 = vpop.trf.xlu0
  %v1173 = vpop.trf.xlu0
  %v1174 = vpop.trf.xlu0
  %v1175 = vpop.trf.xlu0
  %v1176 = vpop.trf.xlu0
  %v1177 = vpop.trf.xlu0
  %v1178 = vpop.trf.xlu0
  %v1179 = vpop.trf.xlu0
  %v1180 = vpop.trf.xlu0
  %v1181 = vpop.trf.xlu0
  %v1182 = vpop.trf.xlu0
  %v1183 = vpop.trf.xlu0
  %v1184 = vpop.trf.xlu0
  %v1185 = vpop.trf.xlu0
  %v1186 = vpack.c.bf16 %v1171, %v1170
  %v1187 = vpack.c.bf16 %v1173, %v1172
  %v1188 = vmul.f32 %v1071, %v751
  %v1189 = vmul.f32 %v1072, %v753
  %v1190 = vmul.f32 %v1071, %v755
  %v1191 = vmul.f32 %v1072, %v757
  %v1192 = vmul.f32 %v1071, %v759
  %v1193 = vmul.f32 %v1072, %v761
  %v1194 = vmul.f32 %v1071, %v763
  %v1195 = vmul.f32 %v1072, %v765
  %v1196 = vmul.f32 %v1071, %v767
  %v1197 = vmul.f32 %v1072, %v769
  %v1198 = vmul.f32 %v1071, %v771
  %v1199 = vmul.f32 %v1072, %v773
  %v1200 = vmul.f32 %v1071, %v775
  %v1201 = vmul.f32 %v1072, %v777
  %v1202 = vmul.f32 %v1071, %v779
  %v1203 = vmul.f32 %v1072, %v781
  %v1204 = vpack.c.bf16 %v1189, %v1188
  %v1205 = vpack.c.bf16 %v1191, %v1190
  %v1206 = vpack.c.bf16 %v1193, %v1192
  %v1207 = vpack.c.bf16 %v1195, %v1194
  %v1208 = vpack.c.bf16 %v1197, %v1196
  %v1209 = vpack.c.bf16 %v1199, %v1198
  %v1210 = vpack.c.bf16 %v1201, %v1200
  %v1211 = vpack.c.bf16 %v1203, %v1202
  %v1213 = vsel %vm54, %v1073, 0
  %1215 = vmatprep.subr.bf16.mxu0 0
  %1216 = vmatpush1.bf16.msra.mxu0 %v1186
  %1217 = vmatprep.subr.bf16.mxu0 0
  %1218 = vmatpush1.bf16.msra.mxu0 %v1187
  %1219 = vmatprep.subr.bf16.mxu0 0
  %1220 = vmatpush1.bf16.msra.mxu0 0
  %1221 = vmatprep.subr.bf16.mxu0 0
  %1222 = vmatpush1.bf16.msra.mxu0 0
  %1223 = vmatprep.subr.bf16.mxu0 0
  %1224 = vmatpush1.bf16.msra.mxu0 0
  %1225 = vmatprep.subr.bf16.mxu0 0
  %1226 = vmatpush1.bf16.msra.mxu0 0
  %1227 = vmatprep.subr.bf16.mxu0 0
  %1228 = vmatpush1.bf16.msra.mxu0 0
  %1229 = vmatprep.subr.bf16.mxu0 0
  %1230 = vmatpush1.bf16.msra.mxu0 0
  %1231 = vmatprep.subr.bf16.mxu0 0
  %1232 = vmatpush1.bf16.msra.mxu0 0
  %1233 = vmatprep.subr.bf16.mxu0 0
  %1234 = vmatpush1.bf16.msra.mxu0 0
  %1235 = vmatprep.subr.bf16.mxu0 0
  %1236 = vmatpush1.bf16.msra.mxu0 0
  %1237 = vmatprep.subr.bf16.mxu0 0
  %1238 = vmatpush1.bf16.msra.mxu0 0
  %1239 = vmatprep.subr.bf16.mxu0 0
  %1240 = vmatpush1.bf16.msra.mxu0 0
  %1241 = vmatprep.subr.bf16.mxu0 0
  %1242 = vmatpush1.bf16.msra.mxu0 0
  %1243 = vmatprep.subr.bf16.mxu0 0
  %1244 = vmatpush1.bf16.msra.mxu0 0
  %1245 = vmatprep.subr.bf16.mxu0 0
  %1246 = vmatpush1.bf16.msra.mxu0 0
  %1247 = vmatprep.mubr.bf16.mxu0 0
  %1248 = vmatmul.mubr.bf16.gmra.mrb[0].mxu0 %v1213
  %v1249 = vpop.f32.mrb[0].mxu0
  %v1250 = vadd.f32 0.0, %v1249
  %v1251 = vpop.f32.mrb[0].mxu0
  %v1252 = vpop.f32.mrb[0].mxu0
  %v1253 = vadd.f32 0.0, %v1252
  %v1254 = vpop.f32.mrb[0].mxu0
  %1255 = vdwg.mxu0
  %v1256 = vpow.pop %v1250
  %v1257 = vpow.pop %v1253
  %v1258 = vpack.c.bf16 %v1257, %v1256
  %1267 = vrot.lane.b32.xlu0 %v1204, 64
  %v1268 = vpop.permute.xlu0 %1267
  %1269 = vrot.lane.b32.xlu0 %v1205, 64
  %v1270 = vpop.permute.xlu0 %1269
  %1271 = vrot.lane.b32.xlu0 %v1206, 64
  %v1272 = vpop.permute.xlu0 %1271
  %1273 = vrot.lane.b32.xlu0 %v1207, 64
  %v1274 = vpop.permute.xlu0 %1273
  %1275 = vrot.lane.b32.xlu0 %v1208, 64
  %v1276 = vpop.permute.xlu0 %1275
  %1277 = vrot.lane.b32.xlu0 %v1209, 64
  %v1278 = vpop.permute.xlu0 %1277
  %1279 = vrot.lane.b32.xlu0 %v1210, 64
  %v1280 = vpop.permute.xlu0 %1279
  %1281 = vrot.lane.b32.xlu0 %v1211, 64
  %v1282 = vpop.permute.xlu0 %1281
  %1291 = vmatprep.subr.bf16.mxu0 0
  %1292 = vmatpush1.bf16.msra.mxu0 %v1268
  %1293 = vmatprep.subr.bf16.mxu0 0
  %1294 = vmatpush1.bf16.msra.mxu0 %v1270
  %1295 = vmatprep.subr.bf16.mxu0 0
  %1296 = vmatpush1.bf16.msra.mxu0 %v1272
  %1297 = vmatprep.subr.bf16.mxu0 0
  %1298 = vmatpush1.bf16.msra.mxu0 %v1274
  %1299 = vmatprep.subr.bf16.mxu0 0
  %1300 = vmatpush1.bf16.msra.mxu0 %v1276
  %1301 = vmatprep.subr.bf16.mxu0 0
  %1302 = vmatpush1.bf16.msra.mxu0 %v1278
  %1303 = vmatprep.subr.bf16.mxu0 0
  %1304 = vmatpush1.bf16.msra.mxu0 %v1280
  %1305 = vmatprep.subr.bf16.mxu0 0
  %1306 = vmatpush1.bf16.msra.mxu0 %v1282
  %1307 = vmatprep.subr.bf16.mxu0 0
  %1308 = vmatpush1.bf16.msra.mxu0 0
  %1309 = vmatprep.subr.bf16.mxu0 0
  %1310 = vmatpush1.bf16.msra.mxu0 0
  %1311 = vmatprep.subr.bf16.mxu0 0
  %1312 = vmatpush1.bf16.msra.mxu0 0
  %1313 = vmatprep.subr.bf16.mxu0 0
  %1314 = vmatpush1.bf16.msra.mxu0 0
  %1315 = vmatprep.subr.bf16.mxu0 0
  %1316 = vmatpush1.bf16.msra.mxu0 0
  %1317 = vmatprep.subr.bf16.mxu0 0
  %1318 = vmatpush1.bf16.msra.mxu0 0
  %1319 = vmatprep.subr.bf16.mxu0 0
  %1320 = vmatpush1.bf16.msra.mxu0 0
  %1321 = vmatprep.subr.bf16.mxu0 0
  %1322 = vmatpush1.bf16.msra.mxu0 0
  %1323 = vmatprep.mubr.bf16.mxu0 0
  %1324 = vmatmul.mubr.bf16.gmra.mrb[0].mxu0 %v1258
  %v1325 = vpop.f32.mrb[0].mxu0
  %v1326 = vadd.f32 0.0, %v1325
  %v1327 = vpop.f32.mrb[0].mxu0
  %v1328 = vpop.f32.mrb[0].mxu0
  %v1329 = vadd.f32 0.0, %v1328
  %v1330 = vpop.f32.mrb[0].mxu0
  %1331 = vdwg.mxu0
  %1332 = vmatprep.subr.bf16.mxu0 0
  %1333 = vmatpush1.bf16.msra.mxu0 %v550
  %1334 = vmatprep.subr.bf16.mxu0 0
  %1335 = vmatpush1.bf16.msra.mxu0 %v551
  %1336 = vmatprep.subr.bf16.mxu0 0
  %1337 = vmatpush1.bf16.msra.mxu0 %v552
  %1338 = vmatprep.subr.bf16.mxu0 0
  %1339 = vmatpush1.bf16.msra.mxu0 %v553
  %1340 = vmatprep.subr.bf16.mxu0 0
  %1341 = vmatpush1.bf16.msra.mxu0 %v554
  %1342 = vmatprep.subr.bf16.mxu0 0
  %1343 = vmatpush1.bf16.msra.mxu0 %v555
  %1344 = vmatprep.subr.bf16.mxu0 0
  %1345 = vmatpush1.bf16.msra.mxu0 %v556
  %1346 = vmatprep.subr.bf16.mxu0 0
  %1347 = vmatpush1.bf16.msra.mxu0 %v557
  %1348 = vmatprep.subr.bf16.mxu0 0
  %1349 = vmatpush1.bf16.msra.mxu0 0
  %1350 = vmatprep.subr.bf16.mxu0 0
  %1351 = vmatpush1.bf16.msra.mxu0 0
  %1352 = vmatprep.subr.bf16.mxu0 0
  %1353 = vmatpush1.bf16.msra.mxu0 0
  %1354 = vmatprep.subr.bf16.mxu0 0
  %1355 = vmatpush1.bf16.msra.mxu0 0
  %1356 = vmatprep.subr.bf16.mxu0 0
  %1357 = vmatpush1.bf16.msra.mxu0 0
  %1358 = vmatprep.subr.bf16.mxu0 0
  %1359 = vmatpush1.bf16.msra.mxu0 0
  %1360 = vmatprep.subr.bf16.mxu0 0
  %1361 = vmatpush1.bf16.msra.mxu0 0
  %1362 = vmatprep.subr.bf16.mxu0 0
  %1363 = vmatpush1.bf16.msra.mxu0 0
  %1364 = vmatprep.mubr.bf16.mxu0 0
  %1365 = vmatmul.mubr.bf16.gmra.mrb[0].mxu0 %v1258
  %v1366 = vpop.f32.mrb[0].mxu0
  %v1367 = vadd.f32 0.0, %v1366
  %v1368 = vpop.f32.mrb[0].mxu0
  %v1369 = vpop.f32.mrb[0].mxu0
  %v1370 = vadd.f32 0.0, %v1369
  %v1371 = vpop.f32.mrb[0].mxu0
  %1372 = vdwg.mxu0
  %v1373 = vrcp.pop %v1367
  %v1374 = vrcp.pop %v1370
  %v1375 = vmul.f32 %v1326, %v1373
  %v1376 = vmul.f32 %v1329, %v1374
  %v1378 = vsel %vm54, %v1375, 0
  %v1381 = vsel %vm54, %v1376, 0
  %1383 = vmatprep.subr.mxu0 0.0
  %1384 = vmatpush1.msra.mxu0 %v558
  %1385 = vmatprep.subr.mxu0 0.0
  %1386 = vmatpush1.msra.mxu0 %v559
  %1387 = vmatprep.subr.mxu0 0.0
  %1388 = vmatpush1.msra.mxu0 %v560
  %1389 = vmatprep.subr.mxu0 0.0
  %1390 = vmatpush1.msra.mxu0 %v561
  %1391 = vmatprep.subr.mxu0 0.0
  %1392 = vmatpush1.msra.mxu0 0.0
  %1393 = vmatprep.subr.mxu0 0.0
  %1394 = vmatpush1.msra.mxu0 0.0
  %1395 = vmatprep.subr.mxu0 0.0
  %1396 = vmatpush1.msra.mxu0 0.0
  %1397 = vmatprep.subr.mxu0 0.0
  %1398 = vmatpush1.msra.mxu0 0.0
  %1399 = vmatprep.subr.mxu0 0.0
  %1400 = vmatpush1.msra.mxu0 0.0
  %1401 = vmatprep.subr.mxu0 0.0
  %1402 = vmatpush1.msra.mxu0 0.0
  %1403 = vmatprep.subr.mxu0 0.0
  %1404 = vmatpush1.msra.mxu0 0.0
  %1405 = vmatprep.subr.mxu0 0.0
  %1406 = vmatpush1.msra.mxu0 0.0
  %1407 = vmatprep.subr.mxu0 0.0
  %1408 = vmatpush1.msra.mxu0 0.0
  %1409 = vmatprep.subr.mxu0 0.0
  %1410 = vmatpush1.msra.mxu0 0.0
  %1411 = vmatprep.subr.mxu0 0.0
  %1412 = vmatpush1.msra.mxu0 0.0
  %1413 = vmatprep.subr.mxu0 0.0
  %1414 = vmatpush1.msra.mxu0 0.0
  %1415 = vmatprep.subr.mxu0 0.0
  %1416 = vmatpush1.msra.mxu0 0.0
  %1417 = vmatprep.subr.mxu0 0.0
  %1418 = vmatpush1.msra.mxu0 0.0
  %1419 = vmatprep.subr.mxu0 0.0
  %1420 = vmatpush1.msra.mxu0 0.0
  %1421 = vmatprep.subr.mxu0 0.0
  %1422 = vmatpush1.msra.mxu0 0.0
  %1423 = vmatprep.subr.mxu0 0.0
  %1424 = vmatpush1.msra.mxu0 0.0
  %1425 = vmatprep.subr.mxu0 0.0
  %1426 = vmatpush1.msra.mxu0 0.0
  %1427 = vmatprep.subr.mxu0 0.0
  %1428 = vmatpush1.msra.mxu0 0.0
  %1429 = vmatprep.subr.mxu0 0.0
  %1430 = vmatpush1.msra.mxu0 0.0
  %1431 = vmatprep.subr.mxu0 0.0
  %1432 = vmatpush1.msra.mxu0 0.0
  %1433 = vmatprep.subr.mxu0 0.0
  %1434 = vmatpush1.msra.mxu0 0.0
  %1435 = vmatprep.subr.mxu0 0.0
  %1436 = vmatpush1.msra.mxu0 0.0
  %1437 = vmatprep.subr.mxu0 0.0
  %1438 = vmatpush1.msra.mxu0 0.0
  %1439 = vmatprep.subr.mxu0 0.0
  %1440 = vmatpush1.msra.mxu0 0.0
  %1441 = vmatprep.subr.mxu0 0.0
  %1442 = vmatpush1.msra.mxu0 0.0
  %1443 = vmatprep.subr.mxu0 0.0
  %1444 = vmatpush1.msra.mxu0 0.0
  %1445 = vmatprep.subr.mxu0 0.0
  %1446 = vmatpush1.msra.mxu0 0.0
  %1447 = vmatprep.mubr.f32.mxu0 0.0
  %1448 = vmatmul.mubr.f32.gmra.mrb[0].mxu0 %v1378
  %v1449 = vpop.f32.mrb[0].mxu0
  %v1450 = vadd.f32 %v567, %v1449
  %v1451 = vpop.f32.mrb[0].mxu0
  %1452 = vmatprep.mubr.f32.mxu0 0.0
  %1453 = vmatmul.mubr.f32.gmra.mrb[0].mxu0 %v1381
  %v1454 = vpop.f32.mrb[0].mxu0
  %v1455 = vadd.f32 %v567, %v1454
  %v1456 = vpop.f32.mrb[0].mxu0
  %1457 = vdwg.mxu0
  %s1458 = scalar_lea.vmem %s7, 16
  %1459 = vst.msk [vmem:[%s1458] sm:$0xff] %vm54, %v1450
  %1460 = vst.msk [vmem:[%s1458 + $0x8] sm:$0xff] %vm54, %v1455
  %s1461 = scalar_lea.vmem [#allocation2], 32
  %v1462 = vld [vmem:[%s1461] sm:$0xff]
  %v1463 = vld [vmem:[%s1461 + $0x8] sm:$0xff]
  %v1464 = vpack.c.bf16 %v1463, %v1462
  %v1465 = vmul.f32 %v1462, %v589
  %v1466 = vmul.f32 %v1463, %v591
  %v1467 = vmul.f32 %v1462, %v593
  %v1468 = vmul.f32 %v1463, %v595
  %v1469 = vmul.f32 %v1462, %v597
  %v1470 = vmul.f32 %v1463, %v599
  %v1471 = vmul.f32 %v1462, %v601
  %v1472 = vmul.f32 %v1463, %v603
  %v1473 = vmul.f32 %v1462, %v605
  %v1474 = vmul.f32 %v1463, %v607
  %v1475 = vmul.f32 %v1462, %v609
  %v1476 = vmul.f32 %v1463, %v611
  %v1477 = vmul.f32 %v1462, %v613
  %v1478 = vmul.f32 %v1463, %v615
  %v1479 = vmul.f32 %v1462, %v617
  %v1480 = vmul.f32 %v1463, %v619
  %1497 = vrot.lane.b32.xlu0 %v1465, 96
  %v1498 = vpop.permute.xlu0 %1497
  %1499 = vrot.lane.b32.xlu0 %v1466, 96
  %v1500 = vpop.permute.xlu0 %1499
  %1501 = vrot.lane.b32.xlu0 %v1467, 96
  %v1502 = vpop.permute.xlu0 %1501
  %1503 = vrot.lane.b32.xlu0 %v1468, 96
  %v1504 = vpop.permute.xlu0 %1503
  %1505 = vrot.lane.b32.xlu0 %v1469, 96
  %v1506 = vpop.permute.xlu0 %1505
  %1507 = vrot.lane.b32.xlu0 %v1470, 96
  %v1508 = vpop.permute.xlu0 %1507
  %1509 = vrot.lane.b32.xlu0 %v1471, 96
  %v1510 = vpop.permute.xlu0 %1509
  %1511 = vrot.lane.b32.xlu0 %v1472, 96
  %v1512 = vpop.permute.xlu0 %1511
  %1513 = vrot.lane.b32.xlu0 %v1473, 96
  %v1514 = vpop.permute.xlu0 %1513
  %1515 = vrot.lane.b32.xlu0 %v1474, 96
  %v1516 = vpop.permute.xlu0 %1515
  %1517 = vrot.lane.b32.xlu0 %v1475, 96
  %v1518 = vpop.permute.xlu0 %1517
  %1519 = vrot.lane.b32.xlu0 %v1476, 96
  %v1520 = vpop.permute.xlu0 %1519
  %1521 = vrot.lane.b32.xlu0 %v1477, 96
  %v1522 = vpop.permute.xlu0 %1521
  %1523 = vrot.lane.b32.xlu0 %v1478, 96
  %v1524 = vpop.permute.xlu0 %1523
  %1525 = vrot.lane.b32.xlu0 %v1479, 96
  %v1526 = vpop.permute.xlu0 %1525
  %1527 = vrot.lane.b32.xlu0 %v1480, 96
  %v1528 = vpop.permute.xlu0 %1527
  %1545 = vxpose.xlu0.b32.start [1/16] %v1498, 128
  %1546 = vxpose.xlu0.b32.cont [2/16] %v1500, 128
  %1547 = vxpose.xlu0.b32.cont [3/16] %v1502, 128
  %1548 = vxpose.xlu0.b32.cont [4/16] %v1504, 128
  %1549 = vxpose.xlu0.b32.cont [5/16] %v1506, 128
  %1550 = vxpose.xlu0.b32.cont [6/16] %v1508, 128
  %1551 = vxpose.xlu0.b32.cont [7/16] %v1510, 128
  %1552 = vxpose.xlu0.b32.cont [8/16] %v1512, 128
  %1553 = vxpose.xlu0.b32.cont [9/16] %v1514, 128
  %1554 = vxpose.xlu0.b32.cont [10/16] %v1516, 128
  %1555 = vxpose.xlu0.b32.cont [11/16] %v1518, 128
  %1556 = vxpose.xlu0.b32.cont [12/16] %v1520, 128
  %1557 = vxpose.xlu0.b32.cont [13/16] %v1522, 128
  %1558 = vxpose.xlu0.b32.cont [14/16] %v1524, 128
  %1559 = vxpose.xlu0.b32.cont [15/16] %v1526, 128
  %1560 = vxpose.xlu0.b32.end [16/16] %v1528, 128
  %v1561 = vpop.trf.xlu0
  %v1562 = vpop.trf.xlu0
  %v1563 = vpop.trf.xlu0
  %v1564 = vpop.trf.xlu0
  %v1565 = vpop.trf.xlu0
  %v1566 = vpop.trf.xlu0
  %v1567 = vpop.trf.xlu0
  %v1568 = vpop.trf.xlu0
  %v1569 = vpop.trf.xlu0
  %v1570 = vpop.trf.xlu0
  %v1571 = vpop.trf.xlu0
  %v1572 = vpop.trf.xlu0
  %v1573 = vpop.trf.xlu0
  %v1574 = vpop.trf.xlu0
  %v1575 = vpop.trf.xlu0
  %v1576 = vpop.trf.xlu0
  %v1577 = vpack.c.bf16 %v1562, %v1561
  %v1578 = vpack.c.bf16 %v1564, %v1563
  %v1579 = vmul.f32 %v1462, %v751
  %v1580 = vmul.f32 %v1463, %v753
  %v1581 = vmul.f32 %v1462, %v755
  %v1582 = vmul.f32 %v1463, %v757
  %v1583 = vmul.f32 %v1462, %v759
  %v1584 = vmul.f32 %v1463, %v761
  %v1585 = vmul.f32 %v1462, %v763
  %v1586 = vmul.f32 %v1463, %v765
  %v1587 = vmul.f32 %v1462, %v767
  %v1588 = vmul.f32 %v1463, %v769
  %v1589 = vmul.f32 %v1462, %v771
  %v1590 = vmul.f32 %v1463, %v773
  %v1591 = vmul.f32 %v1462, %v775
  %v1592 = vmul.f32 %v1463, %v777
  %v1593 = vmul.f32 %v1462, %v779
  %v1594 = vmul.f32 %v1463, %v781
  %v1595 = vpack.c.bf16 %v1580, %v1579
  %v1596 = vpack.c.bf16 %v1582, %v1581
  %v1597 = vpack.c.bf16 %v1584, %v1583
  %v1598 = vpack.c.bf16 %v1586, %v1585
  %v1599 = vpack.c.bf16 %v1588, %v1587
  %v1600 = vpack.c.bf16 %v1590, %v1589
  %v1601 = vpack.c.bf16 %v1592, %v1591
  %v1602 = vpack.c.bf16 %v1594, %v1593
  %v1604 = vsel %vm54, %v1464, 0
  %1606 = vmatprep.subr.bf16.mxu0 0
  %1607 = vmatpush1.bf16.msra.mxu0 %v1577
  %1608 = vmatprep.subr.bf16.mxu0 0
  %1609 = vmatpush1.bf16.msra.mxu0 %v1578
  %1610 = vmatprep.subr.bf16.mxu0 0
  %1611 = vmatpush1.bf16.msra.mxu0 0
  %1612 = vmatprep.subr.bf16.mxu0 0
  %1613 = vmatpush1.bf16.msra.mxu0 0
  %1614 = vmatprep.subr.bf16.mxu0 0
  %1615 = vmatpush1.bf16.msra.mxu0 0
  %1616 = vmatprep.subr.bf16.mxu0 0
  %1617 = vmatpush1.bf16.msra.mxu0 0
  %1618 = vmatprep.subr.bf16.mxu0 0
  %1619 = vmatpush1.bf16.msra.mxu0 0
  %1620 = vmatprep.subr.bf16.mxu0 0
  %1621 = vmatpush1.bf16.msra.mxu0 0
  %1622 = vmatprep.subr.bf16.mxu0 0
  %1623 = vmatpush1.bf16.msra.mxu0 0
  %1624 = vmatprep.subr.bf16.mxu0 0
  %1625 = vmatpush1.bf16.msra.mxu0 0
  %1626 = vmatprep.subr.bf16.mxu0 0
  %1627 = vmatpush1.bf16.msra.mxu0 0
  %1628 = vmatprep.subr.bf16.mxu0 0
  %1629 = vmatpush1.bf16.msra.mxu0 0
  %1630 = vmatprep.subr.bf16.mxu0 0
  %1631 = vmatpush1.bf16.msra.mxu0 0
  %1632 = vmatprep.subr.bf16.mxu0 0
  %1633 = vmatpush1.bf16.msra.mxu0 0
  %1634 = vmatprep.subr.bf16.mxu0 0
  %1635 = vmatpush1.bf16.msra.mxu0 0
  %1636 = vmatprep.subr.bf16.mxu0 0
  %1637 = vmatpush1.bf16.msra.mxu0 0
  %1638 = vmatprep.mubr.bf16.mxu0 0
  %1639 = vmatmul.mubr.bf16.gmra.mrb[0].mxu0 %v1604
  %v1640 = vpop.f32.mrb[0].mxu0
  %v1641 = vadd.f32 0.0, %v1640
  %v1642 = vpop.f32.mrb[0].mxu0
  %v1643 = vpop.f32.mrb[0].mxu0
  %v1644 = vadd.f32 0.0, %v1643
  %v1645 = vpop.f32.mrb[0].mxu0
  %1646 = vdwg.mxu0
  %v1647 = vpow.pop %v1641
  %v1648 = vpow.pop %v1644
  %v1649 = vpack.c.bf16 %v1648, %v1647
  %1658 = vrot.lane.b32.xlu0 %v1595, 64
  %v1659 = vpop.permute.xlu0 %1658
  %1660 = vrot.lane.b32.xlu0 %v1596, 64
  %v1661 = vpop.permute.xlu0 %1660
  %1662 = vrot.lane.b32.xlu0 %v1597, 64
  %v1663 = vpop.permute.xlu0 %1662
  %1664 = vrot.lane.b32.xlu0 %v1598, 64
  %v1665 = vpop.permute.xlu0 %1664
  %1666 = vrot.lane.b32.xlu0 %v1599, 64
  %v1667 = vpop.permute.xlu0 %1666
  %1668 = vrot.lane.b32.xlu0 %v1600, 64
  %v1669 = vpop.permute.xlu0 %1668
  %1670 = vrot.lane.b32.xlu0 %v1601, 64
  %v1671 = vpop.permute.xlu0 %1670
  %1672 = vrot.lane.b32.xlu0 %v1602, 64
  %v1673 = vpop.permute.xlu0 %1672
  %1682 = vmatprep.subr.bf16.mxu0 0
  %1683 = vmatpush1.bf16.msra.mxu0 %v1659
  %1684 = vmatprep.subr.bf16.mxu0 0
  %1685 = vmatpush1.bf16.msra.mxu0 %v1661
  %1686 = vmatprep.subr.bf16.mxu0 0
  %1687 = vmatpush1.bf16.msra.mxu0 %v1663
  %1688 = vmatprep.subr.bf16.mxu0 0
  %1689 = vmatpush1.bf16.msra.mxu0 %v1665
  %1690 = vmatprep.subr.bf16.mxu0 0
  %1691 = vmatpush1.bf16.msra.mxu0 %v1667
  %1692 = vmatprep.subr.bf16.mxu0 0
  %1693 = vmatpush1.bf16.msra.mxu0 %v1669
  %1694 = vmatprep.subr.bf16.mxu0 0
  %1695 = vmatpush1.bf16.msra.mxu0 %v1671
  %1696 = vmatprep.subr.bf16.mxu0 0
  %1697 = vmatpush1.bf16.msra.mxu0 %v1673
  %1698 = vmatprep.subr.bf16.mxu0 0
  %1699 = vmatpush1.bf16.msra.mxu0 0
  %1700 = vmatprep.subr.bf16.mxu0 0
  %1701 = vmatpush1.bf16.msra.mxu0 0
  %1702 = vmatprep.subr.bf16.mxu0 0
  %1703 = vmatpush1.bf16.msra.mxu0 0
  %1704 = vmatprep.subr.bf16.mxu0 0
  %1705 = vmatpush1.bf16.msra.mxu0 0
  %1706 = vmatprep.subr.bf16.mxu0 0
  %1707 = vmatpush1.bf16.msra.mxu0 0
  %1708 = vmatprep.subr.bf16.mxu0 0
  %1709 = vmatpush1.bf16.msra.mxu0 0
  %1710 = vmatprep.subr.bf16.mxu0 0
  %1711 = vmatpush1.bf16.msra.mxu0 0
  %1712 = vmatprep.subr.bf16.mxu0 0
  %1713 = vmatpush1.bf16.msra.mxu0 0
  %1714 = vmatprep.mubr.bf16.mxu0 0
  %1715 = vmatmul.mubr.bf16.gmra.mrb[0].mxu0 %v1649
  %v1716 = vpop.f32.mrb[0].mxu0
  %v1717 = vadd.f32 0.0, %v1716
  %v1718 = vpop.f32.mrb[0].mxu0
  %v1719 = vpop.f32.mrb[0].mxu0
  %v1720 = vadd.f32 0.0, %v1719
  %v1721 = vpop.f32.mrb[0].mxu0
  %1722 = vdwg.mxu0
  %1723 = vmatprep.subr.bf16.mxu0 0
  %1724 = vmatpush1.bf16.msra.mxu0 %v550
  %1725 = vmatprep.subr.bf16.mxu0 0
  %1726 = vmatpush1.bf16.msra.mxu0 %v551
  %1727 = vmatprep.subr.bf16.mxu0 0
  %1728 = vmatpush1.bf16.msra.mxu0 %v552
  %1729 = vmatprep.subr.bf16.mxu0 0
  %1730 = vmatpush1.bf16.msra.mxu0 %v553
  %1731 = vmatprep.subr.bf16.mxu0 0
  %1732 = vmatpush1.bf16.msra.mxu0 %v554
  %1733 = vmatprep.subr.bf16.mxu0 0
  %1734 = vmatpush1.bf16.msra.mxu0 %v555
  %1735 = vmatprep.subr.bf16.mxu0 0
  %1736 = vmatpush1.bf16.msra.mxu0 %v556
  %1737 = vmatprep.subr.bf16.mxu0 0
  %1738 = vmatpush1.bf16.msra.mxu0 %v557
  %1739 = vmatprep.subr.bf16.mxu0 0
  %1740 = vmatpush1.bf16.msra.mxu0 0
  %1741 = vmatprep.subr.bf16.mxu0 0
  %1742 = vmatpush1.bf16.msra.mxu0 0
  %1743 = vmatprep.subr.bf16.mxu0 0
  %1744 = vmatpush1.bf16.msra.mxu0 0
  %1745 = vmatprep.subr.bf16.mxu0 0
  %1746 = vmatpush1.bf16.msra.mxu0 0
  %1747 = vmatprep.subr.bf16.mxu0 0
  %1748 = vmatpush1.bf16.msra.mxu0 0
  %1749 = vmatprep.subr.bf16.mxu0 0
  %1750 = vmatpush1.bf16.msra.mxu0 0
  %1751 = vmatprep.subr.bf16.mxu0 0
  %1752 = vmatpush1.bf16.msra.mxu0 0
  %1753 = vmatprep.subr.bf16.mxu0 0
  %1754 = vmatpush1.bf16.msra.mxu0 0
  %1755 = vmatprep.mubr.bf16.mxu0 0
  %1756 = vmatmul.mubr.bf16.gmra.mrb[0].mxu0 %v1649
  %v1757 = vpop.f32.mrb[0].mxu0
  %v1758 = vadd.f32 0.0, %v1757
  %v1759 = vpop.f32.mrb[0].mxu0
  %v1760 = vpop.f32.mrb[0].mxu0
  %v1761 = vadd.f32 0.0, %v1760
  %v1762 = vpop.f32.mrb[0].mxu0
  %1763 = vdwg.mxu0
  %v1764 = vrcp.pop %v1758
  %v1765 = vrcp.pop %v1761
  %v1766 = vmul.f32 %v1717, %v1764
  %v1767 = vmul.f32 %v1720, %v1765
  %v1769 = vsel %vm54, %v1766, 0
  %v1772 = vsel %vm54, %v1767, 0
  %1774 = vmatprep.subr.mxu0 0.0
  %1775 = vmatpush1.msra.mxu0 %v558
  %1776 = vmatprep.subr.mxu0 0.0
  %1777 = vmatpush1.msra.mxu0 %v559
  %1778 = vmatprep.subr.mxu0 0.0
  %1779 = vmatpush1.msra.mxu0 %v560
  %1780 = vmatprep.subr.mxu0 0.0
  %1781 = vmatpush1.msra.mxu0 %v561
  %1782 = vmatprep.subr.mxu0 0.0
  %1783 = vmatpush1.msra.mxu0 0.0
  %1784 = vmatprep.subr.mxu0 0.0
  %1785 = vmatpush1.msra.mxu0 0.0
  %1786 = vmatprep.subr.mxu0 0.0
  %1787 = vmatpush1.msra.mxu0 0.0
  %1788 = vmatprep.subr.mxu0 0.0
  %1789 = vmatpush1.msra.mxu0 0.0
  %1790 = vmatprep.subr.mxu0 0.0
  %1791 = vmatpush1.msra.mxu0 0.0
  %1792 = vmatprep.subr.mxu0 0.0
  %1793 = vmatpush1.msra.mxu0 0.0
  %1794 = vmatprep.subr.mxu0 0.0
  %1795 = vmatpush1.msra.mxu0 0.0
  %1796 = vmatprep.subr.mxu0 0.0
  %1797 = vmatpush1.msra.mxu0 0.0
  %1798 = vmatprep.subr.mxu0 0.0
  %1799 = vmatpush1.msra.mxu0 0.0
  %1800 = vmatprep.subr.mxu0 0.0
  %1801 = vmatpush1.msra.mxu0 0.0
  %1802 = vmatprep.subr.mxu0 0.0
  %1803 = vmatpush1.msra.mxu0 0.0
  %1804 = vmatprep.subr.mxu0 0.0
  %1805 = vmatpush1.msra.mxu0 0.0
  %1806 = vmatprep.subr.mxu0 0.0
  %1807 = vmatpush1.msra.mxu0 0.0
  %1808 = vmatprep.subr.mxu0 0.0
  %1809 = vmatpush1.msra.mxu0 0.0
  %1810 = vmatprep.subr.mxu0 0.0
  %1811 = vmatpush1.msra.mxu0 0.0
  %1812 = vmatprep.subr.mxu0 0.0
  %1813 = vmatpush1.msra.mxu0 0.0
  %1814 = vmatprep.subr.mxu0 0.0
  %1815 = vmatpush1.msra.mxu0 0.0
  %1816 = vmatprep.subr.mxu0 0.0
  %1817 = vmatpush1.msra.mxu0 0.0
  %1818 = vmatprep.subr.mxu0 0.0
  %1819 = vmatpush1.msra.mxu0 0.0
  %1820 = vmatprep.subr.mxu0 0.0
  %1821 = vmatpush1.msra.mxu0 0.0
  %1822 = vmatprep.subr.mxu0 0.0
  %1823 = vmatpush1.msra.mxu0 0.0
  %1824 = vmatprep.subr.mxu0 0.0
  %1825 = vmatpush1.msra.mxu0 0.0
  %1826 = vmatprep.subr.mxu0 0.0
  %1827 = vmatpush1.msra.mxu0 0.0
  %1828 = vmatprep.subr.mxu0 0.0
  %1829 = vmatpush1.msra.mxu0 0.0
  %1830 = vmatprep.subr.mxu0 0.0
  %1831 = vmatpush1.msra.mxu0 0.0
  %1832 = vmatprep.subr.mxu0 0.0
  %1833 = vmatpush1.msra.mxu0 0.0
  %1834 = vmatprep.subr.mxu0 0.0
  %1835 = vmatpush1.msra.mxu0 0.0
  %1836 = vmatprep.subr.mxu0 0.0
  %1837 = vmatpush1.msra.mxu0 0.0
  %1838 = vmatprep.mubr.f32.mxu0 0.0
  %1839 = vmatmul.mubr.f32.gmra.mrb[0].mxu0 %v1769
  %v1840 = vpop.f32.mrb[0].mxu0
  %v1841 = vadd.f32 %v567, %v1840
  %v1842 = vpop.f32.mrb[0].mxu0
  %1843 = vmatprep.mubr.f32.mxu0 0.0
  %1844 = vmatmul.mubr.f32.gmra.mrb[0].mxu0 %v1772
  %v1845 = vpop.f32.mrb[0].mxu0
  %v1846 = vadd.f32 %v567, %v1845
  %v1847 = vpop.f32.mrb[0].mxu0
  %1848 = vdwg.mxu0
  %s1849 = scalar_lea.vmem %s7, 32
  %1850 = vst.msk [vmem:[%s1849] sm:$0xff] %vm54, %v1841
  %1851 = vst.msk [vmem:[%s1849 + $0x8] sm:$0xff] %vm54, %v1846
  %s1852 = scalar_lea.vmem [#allocation2], 48
  %v1853 = vld [vmem:[%s1852] sm:$0xff]
  %v1854 = vld [vmem:[%s1852 + $0x8] sm:$0xff]
  %v1855 = vpack.c.bf16 %v1854, %v1853
  %v1856 = vmul.f32 %v1853, %v589
  %v1857 = vmul.f32 %v1854, %v591
  %v1858 = vmul.f32 %v1853, %v593
  %v1859 = vmul.f32 %v1854, %v595
  %v1860 = vmul.f32 %v1853, %v597
  %v1861 = vmul.f32 %v1854, %v599
  %v1862 = vmul.f32 %v1853, %v601
  %v1863 = vmul.f32 %v1854, %v603
  %v1864 = vmul.f32 %v1853, %v605
  %v1865 = vmul.f32 %v1854, %v607
  %v1866 = vmul.f32 %v1853, %v609
  %v1867 = vmul.f32 %v1854, %v611
  %v1868 = vmul.f32 %v1853, %v613
  %v1869 = vmul.f32 %v1854, %v615
  %v1870 = vmul.f32 %v1853, %v617
  %v1871 = vmul.f32 %v1854, %v619
  %1888 = vrot.lane.b32.xlu0 %v1856, 96
  %v1889 = vpop.permute.xlu0 %1888
  %1890 = vrot.lane.b32.xlu0 %v1857, 96
  %v1891 = vpop.permute.xlu0 %1890
  %1892 = vrot.lane.b32.xlu0 %v1858, 96
  %v1893 = vpop.permute.xlu0 %1892
  %1894 = vrot.lane.b32.xlu0 %v1859, 96
  %v1895 = vpop.permute.xlu0 %1894
  %1896 = vrot.lane.b32.xlu0 %v1860, 96
  %v1897 = vpop.permute.xlu0 %1896
  %1898 = vrot.lane.b32.xlu0 %v1861, 96
  %v1899 = vpop.permute.xlu0 %1898
  %1900 = vrot.lane.b32.xlu0 %v1862, 96
  %v1901 = vpop.permute.xlu0 %1900
  %1902 = vrot.lane.b32.xlu0 %v1863, 96
  %v1903 = vpop.permute.xlu0 %1902
  %1904 = vrot.lane.b32.xlu0 %v1864, 96
  %v1905 = vpop.permute.xlu0 %1904
  %1906 = vrot.lane.b32.xlu0 %v1865, 96
  %v1907 = vpop.permute.xlu0 %1906
  %1908 = vrot.lane.b32.xlu0 %v1866, 96
  %v1909 = vpop.permute.xlu0 %1908
  %1910 = vrot.lane.b32.xlu0 %v1867, 96
  %v1911 = vpop.permute.xlu0 %1910
  %1912 = vrot.lane.b32.xlu0 %v1868, 96
  %v1913 = vpop.permute.xlu0 %1912
  %1914 = vrot.lane.b32.xlu0 %v1869, 96
  %v1915 = vpop.permute.xlu0 %1914
  %1916 = vrot.lane.b32.xlu0 %v1870, 96
  %v1917 = vpop.permute.xlu0 %1916
  %1918 = vrot.lane.b32.xlu0 %v1871, 96
  %v1919 = vpop.permute.xlu0 %1918
  %1936 = vxpose.xlu0.b32.start [1/16] %v1889, 128
  %1937 = vxpose.xlu0.b32.cont [2/16] %v1891, 128
  %1938 = vxpose.xlu0.b32.cont [3/16] %v1893, 128
  %1939 = vxpose.xlu0.b32.cont [4/16] %v1895, 128
  %1940 = vxpose.xlu0.b32.cont [5/16] %v1897, 128
  %1941 = vxpose.xlu0.b32.cont [6/16] %v1899, 128
  %1942 = vxpose.xlu0.b32.cont [7/16] %v1901, 128
  %1943 = vxpose.xlu0.b32.cont [8/16] %v1903, 128
  %1944 = vxpose.xlu0.b32.cont [9/16] %v1905, 128
  %1945 = vxpose.xlu0.b32.cont [10/16] %v1907, 128
  %1946 = vxpose.xlu0.b32.cont [11/16] %v1909, 128
  %1947 = vxpose.xlu0.b32.cont [12/16] %v1911, 128
  %1948 = vxpose.xlu0.b32.cont [13/16] %v1913, 128
  %1949 = vxpose.xlu0.b32.cont [14/16] %v1915, 128
  %1950 = vxpose.xlu0.b32.cont [15/16] %v1917, 128
  %1951 = vxpose.xlu0.b32.end [16/16] %v1919, 128
  %v1952 = vpop.trf.xlu0
  %v1953 = vpop.trf.xlu0
  %v1954 = vpop.trf.xlu0
  %v1955 = vpop.trf.xlu0
  %v1956 = vpop.trf.xlu0
  %v1957 = vpop.trf.xlu0
  %v1958 = vpop.trf.xlu0
  %v1959 = vpop.trf.xlu0
  %v1960 = vpop.trf.xlu0
  %v1961 = vpop.trf.xlu0
  %v1962 = vpop.trf.xlu0
  %v1963 = vpop.trf.xlu0
  %v1964 = vpop.trf.xlu0
  %v1965 = vpop.trf.xlu0
  %v1966 = vpop.trf.xlu0
  %v1967 = vpop.trf.xlu0
  %v1968 = vpack.c.bf16 %v1953, %v1952
  %v1969 = vpack.c.bf16 %v1955, %v1954
  %v1970 = vmul.f32 %v1853, %v751
  %v1971 = vmul.f32 %v1854, %v753
  %v1972 = vmul.f32 %v1853, %v755
  %v1973 = vmul.f32 %v1854, %v757
  %v1974 = vmul.f32 %v1853, %v759
  %v1975 = vmul.f32 %v1854, %v761
  %v1976 = vmul.f32 %v1853, %v763
  %v1977 = vmul.f32 %v1854, %v765
  %v1978 = vmul.f32 %v1853, %v767
  %v1979 = vmul.f32 %v1854, %v769
  %v1980 = vmul.f32 %v1853, %v771
  %v1981 = vmul.f32 %v1854, %v773
  %v1982 = vmul.f32 %v1853, %v775
  %v1983 = vmul.f32 %v1854, %v777
  %v1984 = vmul.f32 %v1853, %v779
  %v1985 = vmul.f32 %v1854, %v781
  %v1986 = vpack.c.bf16 %v1971, %v1970
  %v1987 = vpack.c.bf16 %v1973, %v1972
  %v1988 = vpack.c.bf16 %v1975, %v1974
  %v1989 = vpack.c.bf16 %v1977, %v1976
  %v1990 = vpack.c.bf16 %v1979, %v1978
  %v1991 = vpack.c.bf16 %v1981, %v1980
  %v1992 = vpack.c.bf16 %v1983, %v1982
  %v1993 = vpack.c.bf16 %v1985, %v1984
  %v1995 = vsel %vm54, %v1855, 0
  %1997 = vmatprep.subr.bf16.mxu0 0
  %1998 = vmatpush1.bf16.msra.mxu0 %v1968
  %1999 = vmatprep.subr.bf16.mxu0 0
  %2000 = vmatpush1.bf16.msra.mxu0 %v1969
  %2001 = vmatprep.subr.bf16.mxu0 0
  %2002 = vmatpush1.bf16.msra.mxu0 0
  %2003 = vmatprep.subr.bf16.mxu0 0
  %2004 = vmatpush1.bf16.msra.mxu0 0
  %2005 = vmatprep.subr.bf16.mxu0 0
  %2006 = vmatpush1.bf16.msra.mxu0 0
  %2007 = vmatprep.subr.bf16.mxu0 0
  %2008 = vmatpush1.bf16.msra.mxu0 0
  %2009 = vmatprep.subr.bf16.mxu0 0
  %2010 = vmatpush1.bf16.msra.mxu0 0
  %2011 = vmatprep.subr.bf16.mxu0 0
  %2012 = vmatpush1.bf16.msra.mxu0 0
  %2013 = vmatprep.subr.bf16.mxu0 0
  %2014 = vmatpush1.bf16.msra.mxu0 0
  %2015 = vmatprep.subr.bf16.mxu0 0
  %2016 = vmatpush1.bf16.msra.mxu0 0
  %2017 = vmatprep.subr.bf16.mxu0 0
  %2018 = vmatpush1.bf16.msra.mxu0 0
  %2019 = vmatprep.subr.bf16.mxu0 0
  %2020 = vmatpush1.bf16.msra.mxu0 0
  %2021 = vmatprep.subr.bf16.mxu0 0
  %2022 = vmatpush1.bf16.msra.mxu0 0
  %2023 = vmatprep.subr.bf16.mxu0 0
  %2024 = vmatpush1.bf16.msra.mxu0 0
  %2025 = vmatprep.subr.bf16.mxu0 0
  %2026 = vmatpush1.bf16.msra.mxu0 0
  %2027 = vmatprep.subr.bf16.mxu0 0
  %2028 = vmatpush1.bf16.msra.mxu0 0
  %2029 = vmatprep.mubr.bf16.mxu0 0
  %2030 = vmatmul.mubr.bf16.gmra.mrb[0].mxu0 %v1995
  %v2031 = vpop.f32.mrb[0].mxu0
  %v2032 = vadd.f32 0.0, %v2031
  %v2033 = vpop.f32.mrb[0].mxu0
  %v2034 = vpop.f32.mrb[0].mxu0
  %v2035 = vadd.f32 0.0, %v2034
  %v2036 = vpop.f32.mrb[0].mxu0
  %2037 = vdwg.mxu0
  %v2038 = vpow.pop %v2032
  %v2039 = vpow.pop %v2035
  %v2040 = vpack.c.bf16 %v2039, %v2038
  %2049 = vrot.lane.b32.xlu0 %v1986, 64
  %v2050 = vpop.permute.xlu0 %2049
  %2051 = vrot.lane.b32.xlu0 %v1987, 64
  %v2052 = vpop.permute.xlu0 %2051
  %2053 = vrot.lane.b32.xlu0 %v1988, 64
  %v2054 = vpop.permute.xlu0 %2053
  %2055 = vrot.lane.b32.xlu0 %v1989, 64
  %v2056 = vpop.permute.xlu0 %2055
  %2057 = vrot.lane.b32.xlu0 %v1990, 64
  %v2058 = vpop.permute.xlu0 %2057
  %2059 = vrot.lane.b32.xlu0 %v1991, 64
  %v2060 = vpop.permute.xlu0 %2059
  %2061 = vrot.lane.b32.xlu0 %v1992, 64
  %v2062 = vpop.permute.xlu0 %2061
  %2063 = vrot.lane.b32.xlu0 %v1993, 64
  %v2064 = vpop.permute.xlu0 %2063
  %2073 = vmatprep.subr.bf16.mxu0 0
  %2074 = vmatpush1.bf16.msra.mxu0 %v2050
  %2075 = vmatprep.subr.bf16.mxu0 0
  %2076 = vmatpush1.bf16.msra.mxu0 %v2052
  %2077 = vmatprep.subr.bf16.mxu0 0
  %2078 = vmatpush1.bf16.msra.mxu0 %v2054
  %2079 = vmatprep.subr.bf16.mxu0 0
  %2080 = vmatpush1.bf16.msra.mxu0 %v2056
  %2081 = vmatprep.subr.bf16.mxu0 0
  %2082 = vmatpush1.bf16.msra.mxu0 %v2058
  %2083 = vmatprep.subr.bf16.mxu0 0
  %2084 = vmatpush1.bf16.msra.mxu0 %v2060
  %2085 = vmatprep.subr.bf16.mxu0 0
  %2086 = vmatpush1.bf16.msra.mxu0 %v2062
  %2087 = vmatprep.subr.bf16.mxu0 0
  %2088 = vmatpush1.bf16.msra.mxu0 %v2064
  %2089 = vmatprep.subr.bf16.mxu0 0
  %2090 = vmatpush1.bf16.msra.mxu0 0
  %2091 = vmatprep.subr.bf16.mxu0 0
  %2092 = vmatpush1.bf16.msra.mxu0 0
  %2093 = vmatprep.subr.bf16.mxu0 0
  %2094 = vmatpush1.bf16.msra.mxu0 0
  %2095 = vmatprep.subr.bf16.mxu0 0
  %2096 = vmatpush1.bf16.msra.mxu0 0
  %2097 = vmatprep.subr.bf16.mxu0 0
  %2098 = vmatpush1.bf16.msra.mxu0 0
  %2099 = vmatprep.subr.bf16.mxu0 0
  %2100 = vmatpush1.bf16.msra.mxu0 0
  %2101 = vmatprep.subr.bf16.mxu0 0
  %2102 = vmatpush1.bf16.msra.mxu0 0
  %2103 = vmatprep.subr.bf16.mxu0 0
  %2104 = vmatpush1.bf16.msra.mxu0 0
  %2105 = vmatprep.mubr.bf16.mxu0 0
  %2106 = vmatmul.mubr.bf16.gmra.mrb[0].mxu0 %v2040
  %v2107 = vpop.f32.mrb[0].mxu0
  %v2108 = vadd.f32 0.0, %v2107
  %v2109 = vpop.f32.mrb[0].mxu0
  %v2110 = vpop.f32.mrb[0].mxu0
  %v2111 = vadd.f32 0.0, %v2110
  %v2112 = vpop.f32.mrb[0].mxu0
  %2113 = vdwg.mxu0
  %2114 = vmatprep.subr.bf16.mxu0 0
  %2115 = vmatpush1.bf16.msra.mxu0 %v550
  %2116 = vmatprep.subr.bf16.mxu0 0
  %2117 = vmatpush1.bf16.msra.mxu0 %v551
  %2118 = vmatprep.subr.bf16.mxu0 0
  %2119 = vmatpush1.bf16.msra.mxu0 %v552
  %2120 = vmatprep.subr.bf16.mxu0 0
  %2121 = vmatpush1.bf16.msra.mxu0 %v553
  %2122 = vmatprep.subr.bf16.mxu0 0
  %2123 = vmatpush1.bf16.msra.mxu0 %v554
  %2124 = vmatprep.subr.bf16.mxu0 0
  %2125 = vmatpush1.bf16.msra.mxu0 %v555
  %2126 = vmatprep.subr.bf16.mxu0 0
  %2127 = vmatpush1.bf16.msra.mxu0 %v556
  %2128 = vmatprep.subr.bf16.mxu0 0
  %2129 = vmatpush1.bf16.msra.mxu0 %v557
  %2130 = vmatprep.subr.bf16.mxu0 0
  %2131 = vmatpush1.bf16.msra.mxu0 0
  %2132 = vmatprep.subr.bf16.mxu0 0
  %2133 = vmatpush1.bf16.msra.mxu0 0
  %2134 = vmatprep.subr.bf16.mxu0 0
  %2135 = vmatpush1.bf16.msra.mxu0 0
  %2136 = vmatprep.subr.bf16.mxu0 0
  %2137 = vmatpush1.bf16.msra.mxu0 0
  %2138 = vmatprep.subr.bf16.mxu0 0
  %2139 = vmatpush1.bf16.msra.mxu0 0
  %2140 = vmatprep.subr.bf16.mxu0 0
  %2141 = vmatpush1.bf16.msra.mxu0 0
  %2142 = vmatprep.subr.bf16.mxu0 0
  %2143 = vmatpush1.bf16.msra.mxu0 0
  %2144 = vmatprep.subr.bf16.mxu0 0
  %2145 = vmatpush1.bf16.msra.mxu0 0
  %2146 = vmatprep.mubr.bf16.mxu0 0
  %2147 = vmatmul.mubr.bf16.gmra.mrb[0].mxu0 %v2040
  %v2148 = vpop.f32.mrb[0].mxu0
  %v2149 = vadd.f32 0.0, %v2148
  %v2150 = vpop.f32.mrb[0].mxu0
  %v2151 = vpop.f32.mrb[0].mxu0
  %v2152 = vadd.f32 0.0, %v2151
  %v2153 = vpop.f32.mrb[0].mxu0
  %2154 = vdwg.mxu0
  %v2155 = vrcp.pop %v2149
  %v2156 = vrcp.pop %v2152
  %v2157 = vmul.f32 %v2108, %v2155
  %v2158 = vmul.f32 %v2111, %v2156
  %v2160 = vsel %vm54, %v2157, 0
  %v2163 = vsel %vm54, %v2158, 0
  %2165 = vmatprep.subr.mxu0 0.0
  %2166 = vmatpush1.msra.mxu0 %v558
  %2167 = vmatprep.subr.mxu0 0.0
  %2168 = vmatpush1.msra.mxu0 %v559
  %2169 = vmatprep.subr.mxu0 0.0
  %2170 = vmatpush1.msra.mxu0 %v560
  %2171 = vmatprep.subr.mxu0 0.0
  %2172 = vmatpush1.msra.mxu0 %v561
  %2173 = vmatprep.subr.mxu0 0.0
  %2174 = vmatpush1.msra.mxu0 0.0
  %2175 = vmatprep.subr.mxu0 0.0
  %2176 = vmatpush1.msra.mxu0 0.0
  %2177 = vmatprep.subr.mxu0 0.0
  %2178 = vmatpush1.msra.mxu0 0.0
  %2179 = vmatprep.subr.mxu0 0.0
  %2180 = vmatpush1.msra.mxu0 0.0
  %2181 = vmatprep.subr.mxu0 0.0
  %2182 = vmatpush1.msra.mxu0 0.0
  %2183 = vmatprep.subr.mxu0 0.0
  %2184 = vmatpush1.msra.mxu0 0.0
  %2185 = vmatprep.subr.mxu0 0.0
  %2186 = vmatpush1.msra.mxu0 0.0
  %2187 = vmatprep.subr.mxu0 0.0
  %2188 = vmatpush1.msra.mxu0 0.0
  %2189 = vmatprep.subr.mxu0 0.0
  %2190 = vmatpush1.msra.mxu0 0.0
  %2191 = vmatprep.subr.mxu0 0.0
  %2192 = vmatpush1.msra.mxu0 0.0
  %2193 = vmatprep.subr.mxu0 0.0
  %2194 = vmatpush1.msra.mxu0 0.0
  %2195 = vmatprep.subr.mxu0 0.0
  %2196 = vmatpush1.msra.mxu0 0.0
  %2197 = vmatprep.subr.mxu0 0.0
  %2198 = vmatpush1.msra.mxu0 0.0
  %2199 = vmatprep.subr.mxu0 0.0
  %2200 = vmatpush1.msra.mxu0 0.0
  %2201 = vmatprep.subr.mxu0 0.0
  %2202 = vmatpush1.msra.mxu0 0.0
  %2203 = vmatprep.subr.mxu0 0.0
  %2204 = vmatpush1.msra.mxu0 0.0
  %2205 = vmatprep.subr.mxu0 0.0
  %2206 = vmatpush1.msra.mxu0 0.0
  %2207 = vmatprep.subr.mxu0 0.0
  %2208 = vmatpush1.msra.mxu0 0.0
  %2209 = vmatprep.subr.mxu0 0.0
  %2210 = vmatpush1.msra.mxu0 0.0
  %2211 = vmatprep.subr.mxu0 0.0
  %2212 = vmatpush1.msra.mxu0 0.0
  %2213 = vmatprep.subr.mxu0 0.0
  %2214 = vmatpush1.msra.mxu0 0.0
  %2215 = vmatprep.subr.mxu0 0.0
  %2216 = vmatpush1.msra.mxu0 0.0
  %2217 = vmatprep.subr.mxu0 0.0
  %2218 = vmatpush1.msra.mxu0 0.0
  %2219 = vmatprep.subr.mxu0 0.0
  %2220 = vmatpush1.msra.mxu0 0.0
  %2221 = vmatprep.subr.mxu0 0.0
  %2222 = vmatpush1.msra.mxu0 0.0
  %2223 = vmatprep.subr.mxu0 0.0
  %2224 = vmatpush1.msra.mxu0 0.0
  %2225 = vmatprep.subr.mxu0 0.0
  %2226 = vmatpush1.msra.mxu0 0.0
  %2227 = vmatprep.subr.mxu0 0.0
  %2228 = vmatpush1.msra.mxu0 0.0
  %2229 = vmatprep.mubr.f32.mxu0 0.0
  %2230 = vmatmul.mubr.f32.gmra.mrb[0].mxu0 %v2160
  %v2231 = vpop.f32.mrb[0].mxu0
  %v2232 = vadd.f32 %v567, %v2231
  %v2233 = vpop.f32.mrb[0].mxu0
  %2234 = vmatprep.mubr.f32.mxu0 0.0
  %2235 = vmatmul.mubr.f32.gmra.mrb[0].mxu0 %v2163
  %v2236 = vpop.f32.mrb[0].mxu0
  %v2237 = vadd.f32 %v567, %v2236
  %v2238 = vpop.f32.mrb[0].mxu0
  %2239 = vdwg.mxu0
  %s2240 = scalar_lea.vmem %s7, 48
  %2241 = vst.msk [vmem:[%s2240] sm:$0xff] %vm54, %v2232
  %2242 = vst.msk [vmem:[%s2240 + $0x8] sm:$0xff] %vm54, %v2237
  %s2243 = scalar_lea.vmem [#allocation2], 64
  %v2244 = vld [vmem:[%s2243] sm:$0xff]
  %v2245 = vld [vmem:[%s2243 + $0x8] sm:$0xff]
  %v2246 = vpack.c.bf16 %v2245, %v2244
  %v2247 = vmul.f32 %v2244, %v589
  %v2248 = vmul.f32 %v2245, %v591
  %v2249 = vmul.f32 %v2244, %v593
  %v2250 = vmul.f32 %v2245, %v595
  %v2251 = vmul.f32 %v2244, %v597
  %v2252 = vmul.f32 %v2245, %v599
  %v2253 = vmul.f32 %v2244, %v601
  %v2254 = vmul.f32 %v2245, %v603
  %v2255 = vmul.f32 %v2244, %v605
  %v2256 = vmul.f32 %v2245, %v607
  %v2257 = vmul.f32 %v2244, %v609
  %v2258 = vmul.f32 %v2245, %v611
  %v2259 = vmul.f32 %v2244, %v613
  %v2260 = vmul.f32 %v2245, %v615
  %v2261 = vmul.f32 %v2244, %v617
  %v2262 = vmul.f32 %v2245, %v619
  %2279 = vrot.lane.b32.xlu0 %v2247, 96
  %v2280 = vpop.permute.xlu0 %2279
  %2281 = vrot.lane.b32.xlu0 %v2248, 96
  %v2282 = vpop.permute.xlu0 %2281
  %2283 = vrot.lane.b32.xlu0 %v2249, 96
  %v2284 = vpop.permute.xlu0 %2283
  %2285 = vrot.lane.b32.xlu0 %v2250, 96
  %v2286 = vpop.permute.xlu0 %2285
  %2287 = vrot.lane.b32.xlu0 %v2251, 96
  %v2288 = vpop.permute.xlu0 %2287
  %2289 = vrot.lane.b32.xlu0 %v2252, 96
  %v2290 = vpop.permute.xlu0 %2289
  %2291 = vrot.lane.b32.xlu0 %v2253, 96
  %v2292 = vpop.permute.xlu0 %2291
  %2293 = vrot.lane.b32.xlu0 %v2254, 96
  %v2294 = vpop.permute.xlu0 %2293
  %2295 = vrot.lane.b32.xlu0 %v2255, 96
  %v2296 = vpop.permute.xlu0 %2295
  %2297 = vrot.lane.b32.xlu0 %v2256, 96
  %v2298 = vpop.permute.xlu0 %2297
  %2299 = vrot.lane.b32.xlu0 %v2257, 96
  %v2300 = vpop.permute.xlu0 %2299
  %2301 = vrot.lane.b32.xlu0 %v2258, 96
  %v2302 = vpop.permute.xlu0 %2301
  %2303 = vrot.lane.b32.xlu0 %v2259, 96
  %v2304 = vpop.permute.xlu0 %2303
  %2305 = vrot.lane.b32.xlu0 %v2260, 96
  %v2306 = vpop.permute.xlu0 %2305
  %2307 = vrot.lane.b32.xlu0 %v2261, 96
  %v2308 = vpop.permute.xlu0 %2307
  %2309 = vrot.lane.b32.xlu0 %v2262, 96
  %v2310 = vpop.permute.xlu0 %2309
  %2327 = vxpose.xlu0.b32.start [1/16] %v2280, 128
  %2328 = vxpose.xlu0.b32.cont [2/16] %v2282, 128
  %2329 = vxpose.xlu0.b32.cont [3/16] %v2284, 128
  %2330 = vxpose.xlu0.b32.cont [4/16] %v2286, 128
  %2331 = vxpose.xlu0.b32.cont [5/16] %v2288, 128
  %2332 = vxpose.xlu0.b32.cont [6/16] %v2290, 128
  %2333 = vxpose.xlu0.b32.cont [7/16] %v2292, 128
  %2334 = vxpose.xlu0.b32.cont [8/16] %v2294, 128
  %2335 = vxpose.xlu0.b32.cont [9/16] %v2296, 128
  %2336 = vxpose.xlu0.b32.cont [10/16] %v2298, 128
  %2337 = vxpose.xlu0.b32.cont [11/16] %v2300, 128
  %2338 = vxpose.xlu0.b32.cont [12/16] %v2302, 128
  %2339 = vxpose.xlu0.b32.cont [13/16] %v2304, 128
  %2340 = vxpose.xlu0.b32.cont [14/16] %v2306, 128
  %2341 = vxpose.xlu0.b32.cont [15/16] %v2308, 128
  %2342 = vxpose.xlu0.b32.end [16/16] %v2310, 128
  %v2343 = vpop.trf.xlu0
  %v2344 = vpop.trf.xlu0
  %v2345 = vpop.trf.xlu0
  %v2346 = vpop.trf.xlu0
  %v2347 = vpop.trf.xlu0
  %v2348 = vpop.trf.xlu0
  %v2349 = vpop.trf.xlu0
  %v2350 = vpop.trf.xlu0
  %v2351 = vpop.trf.xlu0
  %v2352 = vpop.trf.xlu0
  %v2353 = vpop.trf.xlu0
  %v2354 = vpop.trf.xlu0
  %v2355 = vpop.trf.xlu0
  %v2356 = vpop.trf.xlu0
  %v2357 = vpop.trf.xlu0
  %v2358 = vpop.trf.xlu0
  %v2359 = vpack.c.bf16 %v2344, %v2343
  %v2360 = vpack.c.bf16 %v2346, %v2345
  %v2361 = vmul.f32 %v2244, %v751
  %v2362 = vmul.f32 %v2245, %v753
  %v2363 = vmul.f32 %v2244, %v755
  %v2364 = vmul.f32 %v2245, %v757
  %v2365 = vmul.f32 %v2244, %v759
  %v2366 = vmul.f32 %v2245, %v761
  %v2367 = vmul.f32 %v2244, %v763
  %v2368 = vmul.f32 %v2245, %v765
  %v2369 = vmul.f32 %v2244, %v767
  %v2370 = vmul.f32 %v2245, %v769
  %v2371 = vmul.f32 %v2244, %v771
  %v2372 = vmul.f32 %v2245, %v773
  %v2373 = vmul.f32 %v2244, %v775
  %v2374 = vmul.f32 %v2245, %v777
  %v2375 = vmul.f32 %v2244, %v779
  %v2376 = vmul.f32 %v2245, %v781
  %v2377 = vpack.c.bf16 %v2362, %v2361
  %v2378 = vpack.c.bf16 %v2364, %v2363
  %v2379 = vpack.c.bf16 %v2366, %v2365
  %v2380 = vpack.c.bf16 %v2368, %v2367
  %v2381 = vpack.c.bf16 %v2370, %v2369
  %v2382 = vpack.c.bf16 %v2372, %v2371
  %v2383 = vpack.c.bf16 %v2374, %v2373
  %v2384 = vpack.c.bf16 %v2376, %v2375
  %v2386 = vsel %vm54, %v2246, 0
  %2388 = vmatprep.subr.bf16.mxu0 0
  %2389 = vmatpush1.bf16.msra.mxu0 %v2359
  %2390 = vmatprep.subr.bf16.mxu0 0
  %2391 = vmatpush1.bf16.msra.mxu0 %v2360
  %2392 = vmatprep.subr.bf16.mxu0 0
  %2393 = vmatpush1.bf16.msra.mxu0 0
  %2394 = vmatprep.subr.bf16.mxu0 0
  %2395 = vmatpush1.bf16.msra.mxu0 0
  %2396 = vmatprep.subr.bf16.mxu0 0
  %2397 = vmatpush1.bf16.msra.mxu0 0
  %2398 = vmatprep.subr.bf16.mxu0 0
  %2399 = vmatpush1.bf16.msra.mxu0 0
  %2400 = vmatprep.subr.bf16.mxu0 0
  %2401 = vmatpush1.bf16.msra.mxu0 0
  %2402 = vmatprep.subr.bf16.mxu0 0
  %2403 = vmatpush1.bf16.msra.mxu0 0
  %2404 = vmatprep.subr.bf16.mxu0 0
  %2405 = vmatpush1.bf16.msra.mxu0 0
  %2406 = vmatprep.subr.bf16.mxu0 0
  %2407 = vmatpush1.bf16.msra.mxu0 0
  %2408 = vmatprep.subr.bf16.mxu0 0
  %2409 = vmatpush1.bf16.msra.mxu0 0
  %2410 = vmatprep.subr.bf16.mxu0 0
  %2411 = vmatpush1.bf16.msra.mxu0 0
  %2412 = vmatprep.subr.bf16.mxu0 0
  %2413 = vmatpush1.bf16.msra.mxu0 0
  %2414 = vmatprep.subr.bf16.mxu0 0
  %2415 = vmatpush1.bf16.msra.mxu0 0
  %2416 = vmatprep.subr.bf16.mxu0 0
  %2417 = vmatpush1.bf16.msra.mxu0 0
  %2418 = vmatprep.subr.bf16.mxu0 0
  %2419 = vmatpush1.bf16.msra.mxu0 0
  %2420 = vmatprep.mubr.bf16.mxu0 0
  %2421 = vmatmul.mubr.bf16.gmra.mrb[0].mxu0 %v2386
  %v2422 = vpop.f32.mrb[0].mxu0
  %v2423 = vadd.f32 0.0, %v2422
  %v2424 = vpop.f32.mrb[0].mxu0
  %v2425 = vpop.f32.mrb[0].mxu0
  %v2426 = vadd.f32 0.0, %v2425
  %v2427 = vpop.f32.mrb[0].mxu0
  %2428 = vdwg.mxu0
  %v2429 = vpow.pop %v2423
  %v2430 = vpow.pop %v2426
  %v2431 = vpack.c.bf16 %v2430, %v2429
  %2440 = vrot.lane.b32.xlu0 %v2377, 64
  %v2441 = vpop.permute.xlu0 %2440
  %2442 = vrot.lane.b32.xlu0 %v2378, 64
  %v2443 = vpop.permute.xlu0 %2442
  %2444 = vrot.lane.b32.xlu0 %v2379, 64
  %v2445 = vpop.permute.xlu0 %2444
  %2446 = vrot.lane.b32.xlu0 %v2380, 64
  %v2447 = vpop.permute.xlu0 %2446
  %2448 = vrot.lane.b32.xlu0 %v2381, 64
  %v2449 = vpop.permute.xlu0 %2448
  %2450 = vrot.lane.b32.xlu0 %v2382, 64
  %v2451 = vpop.permute.xlu0 %2450
  %2452 = vrot.lane.b32.xlu0 %v2383, 64
  %v2453 = vpop.permute.xlu0 %2452
  %2454 = vrot.lane.b32.xlu0 %v2384, 64
  %v2455 = vpop.permute.xlu0 %2454
  %2464 = vmatprep.subr.bf16.mxu0 0
  %2465 = vmatpush1.bf16.msra.mxu0 %v2441
  %2466 = vmatprep.subr.bf16.mxu0 0
  %2467 = vmatpush1.bf16.msra.mxu0 %v2443
  %2468 = vmatprep.subr.bf16.mxu0 0
  %2469 = vmatpush1.bf16.msra.mxu0 %v2445
  %2470 = vmatprep.subr.bf16.mxu0 0
  %2471 = vmatpush1.bf16.msra.mxu0 %v2447
  %2472 = vmatprep.subr.bf16.mxu0 0
  %2473 = vmatpush1.bf16.msra.mxu0 %v2449
  %2474 = vmatprep.subr.bf16.mxu0 0
  %2475 = vmatpush1.bf16.msra.mxu0 %v2451
  %2476 = vmatprep.subr.bf16.mxu0 0
  %2477 = vmatpush1.bf16.msra.mxu0 %v2453
  %2478 = vmatprep.subr.bf16.mxu0 0
  %2479 = vmatpush1.bf16.msra.mxu0 %v2455
  %2480 = vmatprep.subr.bf16.mxu0 0
  %2481 = vmatpush1.bf16.msra.mxu0 0
  %2482 = vmatprep.subr.bf16.mxu0 0
  %2483 = vmatpush1.bf16.msra.mxu0 0
  %2484 = vmatprep.subr.bf16.mxu0 0
  %2485 = vmatpush1.bf16.msra.mxu0 0
  %2486 = vmatprep.subr.bf16.mxu0 0
  %2487 = vmatpush1.bf16.msra.mxu0 0
  %2488 = vmatprep.subr.bf16.mxu0 0
  %2489 = vmatpush1.bf16.msra.mxu0 0
  %2490 = vmatprep.subr.bf16.mxu0 0
  %2491 = vmatpush1.bf16.msra.mxu0 0
  %2492 = vmatprep.subr.bf16.mxu0 0
  %2493 = vmatpush1.bf16.msra.mxu0 0
  %2494 = vmatprep.subr.bf16.mxu0 0
  %2495 = vmatpush1.bf16.msra.mxu0 0
  %2496 = vmatprep.mubr.bf16.mxu0 0
  %2497 = vmatmul.mubr.bf16.gmra.mrb[0].mxu0 %v2431
  %v2498 = vpop.f32.mrb[0].mxu0
  %v2499 = vadd.f32 0.0, %v2498
  %v2500 = vpop.f32.mrb[0].mxu0
  %v2501 = vpop.f32.mrb[0].mxu0
  %v2502 = vadd.f32 0.0, %v2501
  %v2503 = vpop.f32.mrb[0].mxu0
  %2504 = vdwg.mxu0
  %2505 = vmatprep.subr.bf16.mxu0 0
  %2506 = vmatpush1.bf16.msra.mxu0 %v550
  %2507 = vmatprep.subr.bf16.mxu0 0
  %2508 = vmatpush1.bf16.msra.mxu0 %v551
  %2509 = vmatprep.subr.bf16.mxu0 0
  %2510 = vmatpush1.bf16.msra.mxu0 %v552
  %2511 = vmatprep.subr.bf16.mxu0 0
  %2512 = vmatpush1.bf16.msra.mxu0 %v553
  %2513 = vmatprep.subr.bf16.mxu0 0
  %2514 = vmatpush1.bf16.msra.mxu0 %v554
  %2515 = vmatprep.subr.bf16.mxu0 0
  %2516 = vmatpush1.bf16.msra.mxu0 %v555
  %2517 = vmatprep.subr.bf16.mxu0 0
  %2518 = vmatpush1.bf16.msra.mxu0 %v556
  %2519 = vmatprep.subr.bf16.mxu0 0
  %2520 = vmatpush1.bf16.msra.mxu0 %v557
  %2521 = vmatprep.subr.bf16.mxu0 0
  %2522 = vmatpush1.bf16.msra.mxu0 0
  %2523 = vmatprep.subr.bf16.mxu0 0
  %2524 = vmatpush1.bf16.msra.mxu0 0
  %2525 = vmatprep.subr.bf16.mxu0 0
  %2526 = vmatpush1.bf16.msra.mxu0 0
  %2527 = vmatprep.subr.bf16.mxu0 0
  %2528 = vmatpush1.bf16.msra.mxu0 0
  %2529 = vmatprep.subr.bf16.mxu0 0
  %2530 = vmatpush1.bf16.msra.mxu0 0
  %2531 = vmatprep.subr.bf16.mxu0 0
  %2532 = vmatpush1.bf16.msra.mxu0 0
  %2533 = vmatprep.subr.bf16.mxu0 0
  %2534 = vmatpush1.bf16.msra.mxu0 0
  %2535 = vmatprep.subr.bf16.mxu0 0
  %2536 = vmatpush1.bf16.msra.mxu0 0
  %2537 = vmatprep.mubr.bf16.mxu0 0
  %2538 = vmatmul.mubr.bf16.gmra.mrb[0].mxu0 %v2431
  %v2539 = vpop.f32.mrb[0].mxu0
  %v2540 = vadd.f32 0.0, %v2539
  %v2541 = vpop.f32.mrb[0].mxu0
  %v2542 = vpop.f32.mrb[0].mxu0
  %v2543 = vadd.f32 0.0, %v2542
  %v2544 = vpop.f32.mrb[0].mxu0
  %2545 = vdwg.mxu0
  %v2546 = vrcp.pop %v2540
  %v2547 = vrcp.pop %v2543
  %v2548 = vmul.f32 %v2499, %v2546
  %v2549 = vmul.f32 %v2502, %v2547
  %v2551 = vsel %vm54, %v2548, 0
  %v2554 = vsel %vm54, %v2549, 0
  %2556 = vmatprep.subr.mxu0 0.0
  %2557 = vmatpush1.msra.mxu0 %v558
  %2558 = vmatprep.subr.mxu0 0.0
  %2559 = vmatpush1.msra.mxu0 %v559
  %2560 = vmatprep.subr.mxu0 0.0
  %2561 = vmatpush1.msra.mxu0 %v560
  %2562 = vmatprep.subr.mxu0 0.0
  %2563 = vmatpush1.msra.mxu0 %v561
  %2564 = vmatprep.subr.mxu0 0.0
  %2565 = vmatpush1.msra.mxu0 0.0
  %2566 = vmatprep.subr.mxu0 0.0
  %2567 = vmatpush1.msra.mxu0 0.0
  %2568 = vmatprep.subr.mxu0 0.0
  %2569 = vmatpush1.msra.mxu0 0.0
  %2570 = vmatprep.subr.mxu0 0.0
  %2571 = vmatpush1.msra.mxu0 0.0
  %2572 = vmatprep.subr.mxu0 0.0
  %2573 = vmatpush1.msra.mxu0 0.0
  %2574 = vmatprep.subr.mxu0 0.0
  %2575 = vmatpush1.msra.mxu0 0.0
  %2576 = vmatprep.subr.mxu0 0.0
  %2577 = vmatpush1.msra.mxu0 0.0
  %2578 = vmatprep.subr.mxu0 0.0
  %2579 = vmatpush1.msra.mxu0 0.0
  %2580 = vmatprep.subr.mxu0 0.0
  %2581 = vmatpush1.msra.mxu0 0.0
  %2582 = vmatprep.subr.mxu0 0.0
  %2583 = vmatpush1.msra.mxu0 0.0
  %2584 = vmatprep.subr.mxu0 0.0
  %2585 = vmatpush1.msra.mxu0 0.0
  %2586 = vmatprep.subr.mxu0 0.0
  %2587 = vmatpush1.msra.mxu0 0.0
  %2588 = vmatprep.subr.mxu0 0.0
  %2589 = vmatpush1.msra.mxu0 0.0
  %2590 = vmatprep.subr.mxu0 0.0
  %2591 = vmatpush1.msra.mxu0 0.0
  %2592 = vmatprep.subr.mxu0 0.0
  %2593 = vmatpush1.msra.mxu0 0.0
  %2594 = vmatprep.subr.mxu0 0.0
  %2595 = vmatpush1.msra.mxu0 0.0
  %2596 = vmatprep.subr.mxu0 0.0
  %2597 = vmatpush1.msra.mxu0 0.0
  %2598 = vmatprep.subr.mxu0 0.0
  %2599 = vmatpush1.msra.mxu0 0.0
  %2600 = vmatprep.subr.mxu0 0.0
  %2601 = vmatpush1.msra.mxu0 0.0
  %2602 = vmatprep.subr.mxu0 0.0
  %2603 = vmatpush1.msra.mxu0 0.0
  %2604 = vmatprep.subr.mxu0 0.0
  %2605 = vmatpush1.msra.mxu0 0.0
  %2606 = vmatprep.subr.mxu0 0.0
  %2607 = vmatpush1.msra.mxu0 0.0
  %2608 = vmatprep.subr.mxu0 0.0
  %2609 = vmatpush1.msra.mxu0 0.0
  %2610 = vmatprep.subr.mxu0 0.0
  %2611 = vmatpush1.msra.mxu0 0.0
  %2612 = vmatprep.subr.mxu0 0.0
  %2613 = vmatpush1.msra.mxu0 0.0
  %2614 = vmatprep.subr.mxu0 0.0
  %2615 = vmatpush1.msra.mxu0 0.0
  %2616 = vmatprep.subr.mxu0 0.0
  %2617 = vmatpush1.msra.mxu0 0.0
  %2618 = vmatprep.subr.mxu0 0.0
  %2619 = vmatpush1.msra.mxu0 0.0
  %2620 = vmatprep.mubr.f32.mxu0 0.0
  %2621 = vmatmul.mubr.f32.gmra.mrb[0].mxu0 %v2551
  %v2622 = vpop.f32.mrb[0].mxu0
  %v2623 = vadd.f32 %v567, %v2622
  %v2624 = vpop.f32.mrb[0].mxu0
  %2625 = vmatprep.mubr.f32.mxu0 0.0
  %2626 = vmatmul.mubr.f32.gmra.mrb[0].mxu0 %v2554
  %v2627 = vpop.f32.mrb[0].mxu0
  %v2628 = vadd.f32 %v567, %v2627
  %v2629 = vpop.f32.mrb[0].mxu0
  %2630 = vdwg.mxu0
  %s2631 = scalar_lea.vmem %s7, 64
  %2632 = vst.msk [vmem:[%s2631] sm:$0xff] %vm54, %v2623
  %2633 = vst.msk [vmem:[%s2631 + $0x8] sm:$0xff] %vm54, %v2628
  %s2634 = scalar_lea.vmem [#allocation2], 80
  %v2635 = vld [vmem:[%s2634] sm:$0xff]
  %v2636 = vld [vmem:[%s2634 + $0x8] sm:$0xff]
  %v2637 = vpack.c.bf16 %v2636, %v2635
  %v2638 = vmul.f32 %v2635, %v589
  %v2639 = vmul.f32 %v2636, %v591
  %v2640 = vmul.f32 %v2635, %v593
  %v2641 = vmul.f32 %v2636, %v595
  %v2642 = vmul.f32 %v2635, %v597
  %v2643 = vmul.f32 %v2636, %v599
  %v2644 = vmul.f32 %v2635, %v601
  %v2645 = vmul.f32 %v2636, %v603
  %v2646 = vmul.f32 %v2635, %v605
  %v2647 = vmul.f32 %v2636, %v607
  %v2648 = vmul.f32 %v2635, %v609
  %v2649 = vmul.f32 %v2636, %v611
  %v2650 = vmul.f32 %v2635, %v613
  %v2651 = vmul.f32 %v2636, %v615
  %v2652 = vmul.f32 %v2635, %v617
  %v2653 = vmul.f32 %v2636, %v619
  %2670 = vrot.lane.b32.xlu0 %v2638, 96
  %v2671 = vpop.permute.xlu0 %2670
  %2672 = vrot.lane.b32.xlu0 %v2639, 96
  %v2673 = vpop.permute.xlu0 %2672
  %2674 = vrot.lane.b32.xlu0 %v2640, 96
  %v2675 = vpop.permute.xlu0 %2674
  %2676 = vrot.lane.b32.xlu0 %v2641, 96
  %v2677 = vpop.permute.xlu0 %2676
  %2678 = vrot.lane.b32.xlu0 %v2642, 96
  %v2679 = vpop.permute.xlu0 %2678
  %2680 = vrot.lane.b32.xlu0 %v2643, 96
  %v2681 = vpop.permute.xlu0 %2680
  %2682 = vrot.lane.b32.xlu0 %v2644, 96
  %v2683 = vpop.permute.xlu0 %2682
  %2684 = vrot.lane.b32.xlu0 %v2645, 96
  %v2685 = vpop.permute.xlu0 %2684
  %2686 = vrot.lane.b32.xlu0 %v2646, 96
  %v2687 = vpop.permute.xlu0 %2686
  %2688 = vrot.lane.b32.xlu0 %v2647, 96
  %v2689 = vpop.permute.xlu0 %2688
  %2690 = vrot.lane.b32.xlu0 %v2648, 96
  %v2691 = vpop.permute.xlu0 %2690
  %2692 = vrot.lane.b32.xlu0 %v2649, 96
  %v2693 = vpop.permute.xlu0 %2692
  %2694 = vrot.lane.b32.xlu0 %v2650, 96
  %v2695 = vpop.permute.xlu0 %2694
  %2696 = vrot.lane.b32.xlu0 %v2651, 96
  %v2697 = vpop.permute.xlu0 %2696
  %2698 = vrot.lane.b32.xlu0 %v2652, 96
  %v2699 = vpop.permute.xlu0 %2698
  %2700 = vrot.lane.b32.xlu0 %v2653, 96
  %v2701 = vpop.permute.xlu0 %2700
  %2718 = vxpose.xlu0.b32.start [1/16] %v2671, 128
  %2719 = vxpose.xlu0.b32.cont [2/16] %v2673, 128
  %2720 = vxpose.xlu0.b32.cont [3/16] %v2675, 128
  %2721 = vxpose.xlu0.b32.cont [4/16] %v2677, 128
  %2722 = vxpose.xlu0.b32.cont [5/16] %v2679, 128
  %2723 = vxpose.xlu0.b32.cont [6/16] %v2681, 128
  %2724 = vxpose.xlu0.b32.cont [7/16] %v2683, 128
  %2725 = vxpose.xlu0.b32.cont [8/16] %v2685, 128
  %2726 = vxpose.xlu0.b32.cont [9/16] %v2687, 128
  %2727 = vxpose.xlu0.b32.cont [10/16] %v2689, 128
  %2728 = vxpose.xlu0.b32.cont [11/16] %v2691, 128
  %2729 = vxpose.xlu0.b32.cont [12/16] %v2693, 128
  %2730 = vxpose.xlu0.b32.cont [13/16] %v2695, 128
  %2731 = vxpose.xlu0.b32.cont [14/16] %v2697, 128
  %2732 = vxpose.xlu0.b32.cont [15/16] %v2699, 128
  %2733 = vxpose.xlu0.b32.end [16/16] %v2701, 128
  %v2734 = vpop.trf.xlu0
  %v2735 = vpop.trf.xlu0
  %v2736 = vpop.trf.xlu0
  %v2737 = vpop.trf.xlu0
  %v2738 = vpop.trf.xlu0
  %v2739 = vpop.trf.xlu0
  %v2740 = vpop.trf.xlu0
  %v2741 = vpop.trf.xlu0
  %v2742 = vpop.trf.xlu0
  %v2743 = vpop.trf.xlu0
  %v2744 = vpop.trf.xlu0
  %v2745 = vpop.trf.xlu0
  %v2746 = vpop.trf.xlu0
  %v2747 = vpop.trf.xlu0
  %v2748 = vpop.trf.xlu0
  %v2749 = vpop.trf.xlu0
  %v2750 = vpack.c.bf16 %v2735, %v2734
  %v2751 = vpack.c.bf16 %v2737, %v2736
  %v2752 = vmul.f32 %v2635, %v751
  %v2753 = vmul.f32 %v2636, %v753
  %v2754 = vmul.f32 %v2635, %v755
  %v2755 = vmul.f32 %v2636, %v757
  %v2756 = vmul.f32 %v2635, %v759
  %v2757 = vmul.f32 %v2636, %v761
  %v2758 = vmul.f32 %v2635, %v763
  %v2759 = vmul.f32 %v2636, %v765
  %v2760 = vmul.f32 %v2635, %v767
  %v2761 = vmul.f32 %v2636, %v769
  %v2762 = vmul.f32 %v2635, %v771
  %v2763 = vmul.f32 %v2636, %v773
  %v2764 = vmul.f32 %v2635, %v775
  %v2765 = vmul.f32 %v2636, %v777
  %v2766 = vmul.f32 %v2635, %v779
  %v2767 = vmul.f32 %v2636, %v781
  %v2768 = vpack.c.bf16 %v2753, %v2752
  %v2769 = vpack.c.bf16 %v2755, %v2754
  %v2770 = vpack.c.bf16 %v2757, %v2756
  %v2771 = vpack.c.bf16 %v2759, %v2758
  %v2772 = vpack.c.bf16 %v2761, %v2760
  %v2773 = vpack.c.bf16 %v2763, %v2762
  %v2774 = vpack.c.bf16 %v2765, %v2764
  %v2775 = vpack.c.bf16 %v2767, %v2766
  %v2777 = vsel %vm54, %v2637, 0
  %2779 = vmatprep.subr.bf16.mxu0 0
  %2780 = vmatpush1.bf16.msra.mxu0 %v2750
  %2781 = vmatprep.subr.bf16.mxu0 0
  %2782 = vmatpush1.bf16.msra.mxu0 %v2751
  %2783 = vmatprep.subr.bf16.mxu0 0
  %2784 = vmatpush1.bf16.msra.mxu0 0
  %2785 = vmatprep.subr.bf16.mxu0 0
  %2786 = vmatpush1.bf16.msra.mxu0 0
  %2787 = vmatprep.subr.bf16.mxu0 0
  %2788 = vmatpush1.bf16.msra.mxu0 0
  %2789 = vmatprep.subr.bf16.mxu0 0
  %2790 = vmatpush1.bf16.msra.mxu0 0
  %2791 = vmatprep.subr.bf16.mxu0 0
  %2792 = vmatpush1.bf16.msra.mxu0 0
  %2793 = vmatprep.subr.bf16.mxu0 0
  %2794 = vmatpush1.bf16.msra.mxu0 0
  %2795 = vmatprep.subr.bf16.mxu0 0
  %2796 = vmatpush1.bf16.msra.mxu0 0
  %2797 = vmatprep.subr.bf16.mxu0 0
  %2798 = vmatpush1.bf16.msra.mxu0 0
  %2799 = vmatprep.subr.bf16.mxu0 0
  %2800 = vmatpush1.bf16.msra.mxu0 0
  %2801 = vmatprep.subr.bf16.mxu0 0
  %2802 = vmatpush1.bf16.msra.mxu0 0
  %2803 = vmatprep.subr.bf16.mxu0 0
  %2804 = vmatpush1.bf16.msra.mxu0 0
  %2805 = vmatprep.subr.bf16.mxu0 0
  %2806 = vmatpush1.bf16.msra.mxu0 0
  %2807 = vmatprep.subr.bf16.mxu0 0
  %2808 = vmatpush1.bf16.msra.mxu0 0
  %2809 = vmatprep.subr.bf16.mxu0 0
  %2810 = vmatpush1.bf16.msra.mxu0 0
  %2811 = vmatprep.mubr.bf16.mxu0 0
  %2812 = vmatmul.mubr.bf16.gmra.mrb[0].mxu0 %v2777
  %v2813 = vpop.f32.mrb[0].mxu0
  %v2814 = vadd.f32 0.0, %v2813
  %v2815 = vpop.f32.mrb[0].mxu0
  %v2816 = vpop.f32.mrb[0].mxu0
  %v2817 = vadd.f32 0.0, %v2816
  %v2818 = vpop.f32.mrb[0].mxu0
  %2819 = vdwg.mxu0
  %v2820 = vpow.pop %v2814
  %v2821 = vpow.pop %v2817
  %v2822 = vpack.c.bf16 %v2821, %v2820
  %2831 = vrot.lane.b32.xlu0 %v2768, 64
  %v2832 = vpop.permute.xlu0 %2831
  %2833 = vrot.lane.b32.xlu0 %v2769, 64
  %v2834 = vpop.permute.xlu0 %2833
  %2835 = vrot.lane.b32.xlu0 %v2770, 64
  %v2836 = vpop.permute.xlu0 %2835
  %2837 = vrot.lane.b32.xlu0 %v2771, 64
  %v2838 = vpop.permute.xlu0 %2837
  %2839 = vrot.lane.b32.xlu0 %v2772, 64
  %v2840 = vpop.permute.xlu0 %2839
  %2841 = vrot.lane.b32.xlu0 %v2773, 64
  %v2842 = vpop.permute.xlu0 %2841
  %2843 = vrot.lane.b32.xlu0 %v2774, 64
  %v2844 = vpop.permute.xlu0 %2843
  %2845 = vrot.lane.b32.xlu0 %v2775, 64
  %v2846 = vpop.permute.xlu0 %2845
  %2855 = vmatprep.subr.bf16.mxu0 0
  %2856 = vmatpush1.bf16.msra.mxu0 %v2832
  %2857 = vmatprep.subr.bf16.mxu0 0
  %2858 = vmatpush1.bf16.msra.mxu0 %v2834
  %2859 = vmatprep.subr.bf16.mxu0 0
  %2860 = vmatpush1.bf16.msra.mxu0 %v2836
  %2861 = vmatprep.subr.bf16.mxu0 0
  %2862 = vmatpush1.bf16.msra.mxu0 %v2838
  %2863 = vmatprep.subr.bf16.mxu0 0
  %2864 = vmatpush1.bf16.msra.mxu0 %v2840
  %2865 = vmatprep.subr.bf16.mxu0 0
  %2866 = vmatpush1.bf16.msra.mxu0 %v2842
  %2867 = vmatprep.subr.bf16.mxu0 0
  %2868 = vmatpush1.bf16.msra.mxu0 %v2844
  %2869 = vmatprep.subr.bf16.mxu0 0
  %2870 = vmatpush1.bf16.msra.mxu0 %v2846
  %2871 = vmatprep.subr.bf16.mxu0 0
  %2872 = vmatpush1.bf16.msra.mxu0 0
  %2873 = vmatprep.subr.bf16.mxu0 0
  %2874 = vmatpush1.bf16.msra.mxu0 0
  %2875 = vmatprep.subr.bf16.mxu0 0
  %2876 = vmatpush1.bf16.msra.mxu0 0
  %2877 = vmatprep.subr.bf16.mxu0 0
  %2878 = vmatpush1.bf16.msra.mxu0 0
  %2879 = vmatprep.subr.bf16.mxu0 0
  %2880 = vmatpush1.bf16.msra.mxu0 0
  %2881 = vmatprep.subr.bf16.mxu0 0
  %2882 = vmatpush1.bf16.msra.mxu0 0
  %2883 = vmatprep.subr.bf16.mxu0 0
  %2884 = vmatpush1.bf16.msra.mxu0 0
  %2885 = vmatprep.subr.bf16.mxu0 0
  %2886 = vmatpush1.bf16.msra.mxu0 0
  %2887 = vmatprep.mubr.bf16.mxu0 0
  %2888 = vmatmul.mubr.bf16.gmra.mrb[0].mxu0 %v2822
  %v2889 = vpop.f32.mrb[0].mxu0
  %v2890 = vadd.f32 0.0, %v2889
  %v2891 = vpop.f32.mrb[0].mxu0
  %v2892 = vpop.f32.mrb[0].mxu0
  %v2893 = vadd.f32 0.0, %v2892
  %v2894 = vpop.f32.mrb[0].mxu0
  %2895 = vdwg.mxu0
  %2896 = vmatprep.subr.bf16.mxu0 0
  %2897 = vmatpush1.bf16.msra.mxu0 %v550
  %2898 = vmatprep.subr.bf16.mxu0 0
  %2899 = vmatpush1.bf16.msra.mxu0 %v551
  %2900 = vmatprep.subr.bf16.mxu0 0
  %2901 = vmatpush1.bf16.msra.mxu0 %v552
  %2902 = vmatprep.subr.bf16.mxu0 0
  %2903 = vmatpush1.bf16.msra.mxu0 %v553
  %2904 = vmatprep.subr.bf16.mxu0 0
  %2905 = vmatpush1.bf16.msra.mxu0 %v554
  %2906 = vmatprep.subr.bf16.mxu0 0
  %2907 = vmatpush1.bf16.msra.mxu0 %v555
  %2908 = vmatprep.subr.bf16.mxu0 0
  %2909 = vmatpush1.bf16.msra.mxu0 %v556
  %2910 = vmatprep.subr.bf16.mxu0 0
  %2911 = vmatpush1.bf16.msra.mxu0 %v557
  %2912 = vmatprep.subr.bf16.mxu0 0
  %2913 = vmatpush1.bf16.msra.mxu0 0
  %2914 = vmatprep.subr.bf16.mxu0 0
  %2915 = vmatpush1.bf16.msra.mxu0 0
  %2916 = vmatprep.subr.bf16.mxu0 0
  %2917 = vmatpush1.bf16.msra.mxu0 0
  %2918 = vmatprep.subr.bf16.mxu0 0
  %2919 = vmatpush1.bf16.msra.mxu0 0
  %2920 = vmatprep.subr.bf16.mxu0 0
  %2921 = vmatpush1.bf16.msra.mxu0 0
  %2922 = vmatprep.subr.bf16.mxu0 0
  %2923 = vmatpush1.bf16.msra.mxu0 0
  %2924 = vmatprep.subr.bf16.mxu0 0
  %2925 = vmatpush1.bf16.msra.mxu0 0
  %2926 = vmatprep.subr.bf16.mxu0 0
  %2927 = vmatpush1.bf16.msra.mxu0 0
  %2928 = vmatprep.mubr.bf16.mxu0 0
  %2929 = vmatmul.mubr.bf16.gmra.mrb[0].mxu0 %v2822
  %v2930 = vpop.f32.mrb[0].mxu0
  %v2931 = vadd.f32 0.0, %v2930
  %v2932 = vpop.f32.mrb[0].mxu0
  %v2933 = vpop.f32.mrb[0].mxu0
  %v2934 = vadd.f32 0.0, %v2933
  %v2935 = vpop.f32.mrb[0].mxu0
  %2936 = vdwg.mxu0
  %v2937 = vrcp.pop %v2931
  %v2938 = vrcp.pop %v2934
  %v2939 = vmul.f32 %v2890, %v2937
  %v2940 = vmul.f32 %v2893, %v2938
  %v2942 = vsel %vm54, %v2939, 0
  %v2945 = vsel %vm54, %v2940, 0
  %2947 = vmatprep.subr.mxu0 0.0
  %2948 = vmatpush1.msra.mxu0 %v558
  %2949 = vmatprep.subr.mxu0 0.0
  %2950 = vmatpush1.msra.mxu0 %v559
  %2951 = vmatprep.subr.mxu0 0.0
  %2952 = vmatpush1.msra.mxu0 %v560
  %2953 = vmatprep.subr.mxu0 0.0
  %2954 = vmatpush1.msra.mxu0 %v561
  %2955 = vmatprep.subr.mxu0 0.0
  %2956 = vmatpush1.msra.mxu0 0.0
  %2957 = vmatprep.subr.mxu0 0.0
  %2958 = vmatpush1.msra.mxu0 0.0
  %2959 = vmatprep.subr.mxu0 0.0
  %2960 = vmatpush1.msra.mxu0 0.0
  %2961 = vmatprep.subr.mxu0 0.0
  %2962 = vmatpush1.msra.mxu0 0.0
  %2963 = vmatprep.subr.mxu0 0.0
  %2964 = vmatpush1.msra.mxu0 0.0
  %2965 = vmatprep.subr.mxu0 0.0
  %2966 = vmatpush1.msra.mxu0 0.0
  %2967 = vmatprep.subr.mxu0 0.0
  %2968 = vmatpush1.msra.mxu0 0.0
  %2969 = vmatprep.subr.mxu0 0.0
  %2970 = vmatpush1.msra.mxu0 0.0
  %2971 = vmatprep.subr.mxu0 0.0
  %2972 = vmatpush1.msra.mxu0 0.0
  %2973 = vmatprep.subr.mxu0 0.0
  %2974 = vmatpush1.msra.mxu0 0.0
  %2975 = vmatprep.subr.mxu0 0.0
  %2976 = vmatpush1.msra.mxu0 0.0
  %2977 = vmatprep.subr.mxu0 0.0
  %2978 = vmatpush1.msra.mxu0 0.0
  %2979 = vmatprep.subr.mxu0 0.0
  %2980 = vmatpush1.msra.mxu0 0.0
  %2981 = vmatprep.subr.mxu0 0.0
  %2982 = vmatpush1.msra.mxu0 0.0
  %2983 = vmatprep.subr.mxu0 0.0
  %2984 = vmatpush1.msra.mxu0 0.0
  %2985 = vmatprep.subr.mxu0 0.0
  %2986 = vmatpush1.msra.mxu0 0.0
  %2987 = vmatprep.subr.mxu0 0.0
  %2988 = vmatpush1.msra.mxu0 0.0
  %2989 = vmatprep.subr.mxu0 0.0
  %2990 = vmatpush1.msra.mxu0 0.0
  %2991 = vmatprep.subr.mxu0 0.0
  %2992 = vmatpush1.msra.mxu0 0.0
  %2993 = vmatprep.subr.mxu0 0.0
  %2994 = vmatpush1.msra.mxu0 0.0
  %2995 = vmatprep.subr.mxu0 0.0
  %2996 = vmatpush1.msra.mxu0 0.0
  %2997 = vmatprep.subr.mxu0 0.0
  %2998 = vmatpush1.msra.mxu0 0.0
  %2999 = vmatprep.subr.mxu0 0.0
  %3000 = vmatpush1.msra.mxu0 0.0
  %3001 = vmatprep.subr.mxu0 0.0
  %3002 = vmatpush1.msra.mxu0 0.0
  %3003 = vmatprep.subr.mxu0 0.0
  %3004 = vmatpush1.msra.mxu0 0.0
  %3005 = vmatprep.subr.mxu0 0.0
  %3006 = vmatpush1.msra.mxu0 0.0
  %3007 = vmatprep.subr.mxu0 0.0
  %3008 = vmatpush1.msra.mxu0 0.0
  %3009 = vmatprep.subr.mxu0 0.0
  %3010 = vmatpush1.msra.mxu0 0.0
  %3011 = vmatprep.mubr.f32.mxu0 0.0
  %3012 = vmatmul.mubr.f32.gmra.mrb[0].mxu0 %v2942
  %v3013 = vpop.f32.mrb[0].mxu0
  %v3014 = vadd.f32 %v567, %v3013
  %v3015 = vpop.f32.mrb[0].mxu0
  %3016 = vmatprep.mubr.f32.mxu0 0.0
  %3017 = vmatmul.mubr.f32.gmra.mrb[0].mxu0 %v2945
  %v3018 = vpop.f32.mrb[0].mxu0
  %v3019 = vadd.f32 %v567, %v3018
  %v3020 = vpop.f32.mrb[0].mxu0
  %3021 = vdwg.mxu0
  %s3022 = scalar_lea.vmem %s7, 80
  %3023 = vst.msk [vmem:[%s3022] sm:$0xff] %vm54, %v3014
  %3024 = vst.msk [vmem:[%s3022 + $0x8] sm:$0xff] %vm54, %v3019
  %s3025 = scalar_lea.vmem [#allocation2], 96
  %v3026 = vld [vmem:[%s3025] sm:$0xff]
  %v3027 = vld [vmem:[%s3025 + $0x8] sm:$0xff]
  %v3028 = vpack.c.bf16 %v3027, %v3026
  %v3029 = vmul.f32 %v3026, %v589
  %v3030 = vmul.f32 %v3027, %v591
  %v3031 = vmul.f32 %v3026, %v593
  %v3032 = vmul.f32 %v3027, %v595
  %v3033 = vmul.f32 %v3026, %v597
  %v3034 = vmul.f32 %v3027, %v599
  %v3035 = vmul.f32 %v3026, %v601
  %v3036 = vmul.f32 %v3027, %v603
  %v3037 = vmul.f32 %v3026, %v605
  %v3038 = vmul.f32 %v3027, %v607
  %v3039 = vmul.f32 %v3026, %v609
  %v3040 = vmul.f32 %v3027, %v611
  %v3041 = vmul.f32 %v3026, %v613
  %v3042 = vmul.f32 %v3027, %v615
  %v3043 = vmul.f32 %v3026, %v617
  %v3044 = vmul.f32 %v3027, %v619
  %3061 = vrot.lane.b32.xlu0 %v3029, 96
  %v3062 = vpop.permute.xlu0 %3061
  %3063 = vrot.lane.b32.xlu0 %v3030, 96
  %v3064 = vpop.permute.xlu0 %3063
  %3065 = vrot.lane.b32.xlu0 %v3031, 96
  %v3066 = vpop.permute.xlu0 %3065
  %3067 = vrot.lane.b32.xlu0 %v3032, 96
  %v3068 = vpop.permute.xlu0 %3067
  %3069 = vrot.lane.b32.xlu0 %v3033, 96
  %v3070 = vpop.permute.xlu0 %3069
  %3071 = vrot.lane.b32.xlu0 %v3034, 96
  %v3072 = vpop.permute.xlu0 %3071
  %3073 = vrot.lane.b32.xlu0 %v3035, 96
  %v3074 = vpop.permute.xlu0 %3073
  %3075 = vrot.lane.b32.xlu0 %v3036, 96
  %v3076 = vpop.permute.xlu0 %3075
  %3077 = vrot.lane.b32.xlu0 %v3037, 96
  %v3078 = vpop.permute.xlu0 %3077
  %3079 = vrot.lane.b32.xlu0 %v3038, 96
  %v3080 = vpop.permute.xlu0 %3079
  %3081 = vrot.lane.b32.xlu0 %v3039, 96
  %v3082 = vpop.permute.xlu0 %3081
  %3083 = vrot.lane.b32.xlu0 %v3040, 96
  %v3084 = vpop.permute.xlu0 %3083
  %3085 = vrot.lane.b32.xlu0 %v3041, 96
  %v3086 = vpop.permute.xlu0 %3085
  %3087 = vrot.lane.b32.xlu0 %v3042, 96
  %v3088 = vpop.permute.xlu0 %3087
  %3089 = vrot.lane.b32.xlu0 %v3043, 96
  %v3090 = vpop.permute.xlu0 %3089
  %3091 = vrot.lane.b32.xlu0 %v3044, 96
  %v3092 = vpop.permute.xlu0 %3091
  %3109 = vxpose.xlu0.b32.start [1/16] %v3062, 128
  %3110 = vxpose.xlu0.b32.cont [2/16] %v3064, 128
  %3111 = vxpose.xlu0.b32.cont [3/16] %v3066, 128
  %3112 = vxpose.xlu0.b32.cont [4/16] %v3068, 128
  %3113 = vxpose.xlu0.b32.cont [5/16] %v3070, 128
  %3114 = vxpose.xlu0.b32.cont [6/16] %v3072, 128
  %3115 = vxpose.xlu0.b32.cont [7/16] %v3074, 128
  %3116 = vxpose.xlu0.b32.cont [8/16] %v3076, 128
  %3117 = vxpose.xlu0.b32.cont [9/16] %v3078, 128
  %3118 = vxpose.xlu0.b32.cont [10/16] %v3080, 128
  %3119 = vxpose.xlu0.b32.cont [11/16] %v3082, 128
  %3120 = vxpose.xlu0.b32.cont [12/16] %v3084, 128
  %3121 = vxpose.xlu0.b32.cont [13/16] %v3086, 128
  %3122 = vxpose.xlu0.b32.cont [14/16] %v3088, 128
  %3123 = vxpose.xlu0.b32.cont [15/16] %v3090, 128
  %3124 = vxpose.xlu0.b32.end [16/16] %v3092, 128
  %v3125 = vpop.trf.xlu0
  %v3126 = vpop.trf.xlu0
  %v3127 = vpop.trf.xlu0
  %v3128 = vpop.trf.xlu0
  %v3129 = vpop.trf.xlu0
  %v3130 = vpop.trf.xlu0
  %v3131 = vpop.trf.xlu0
  %v3132 = vpop.trf.xlu0
  %v3133 = vpop.trf.xlu0
  %v3134 = vpop.trf.xlu0
  %v3135 = vpop.trf.xlu0
  %v3136 = vpop.trf.xlu0
  %v3137 = vpop.trf.xlu0
  %v3138 = vpop.trf.xlu0
  %v3139 = vpop.trf.xlu0
  %v3140 = vpop.trf.xlu0
  %v3141 = vpack.c.bf16 %v3126, %v3125
  %v3142 = vpack.c.bf16 %v3128, %v3127
  %v3143 = vmul.f32 %v3026, %v751
  %v3144 = vmul.f32 %v3027, %v753
  %v3145 = vmul.f32 %v3026, %v755
  %v3146 = vmul.f32 %v3027, %v757
  %v3147 = vmul.f32 %v3026, %v759
  %v3148 = vmul.f32 %v3027, %v761
  %v3149 = vmul.f32 %v3026, %v763
  %v3150 = vmul.f32 %v3027, %v765
  %v3151 = vmul.f32 %v3026, %v767
  %v3152 = vmul.f32 %v3027, %v769
  %v3153 = vmul.f32 %v3026, %v771
  %v3154 = vmul.f32 %v3027, %v773
  %v3155 = vmul.f32 %v3026, %v775
  %v3156 = vmul.f32 %v3027, %v777
  %v3157 = vmul.f32 %v3026, %v779
  %v3158 = vmul.f32 %v3027, %v781
  %v3159 = vpack.c.bf16 %v3144, %v3143
  %v3160 = vpack.c.bf16 %v3146, %v3145
  %v3161 = vpack.c.bf16 %v3148, %v3147
  %v3162 = vpack.c.bf16 %v3150, %v3149
  %v3163 = vpack.c.bf16 %v3152, %v3151
  %v3164 = vpack.c.bf16 %v3154, %v3153
  %v3165 = vpack.c.bf16 %v3156, %v3155
  %v3166 = vpack.c.bf16 %v3158, %v3157
  %v3168 = vsel %vm54, %v3028, 0
  %3170 = vmatprep.subr.bf16.mxu0 0
  %3171 = vmatpush1.bf16.msra.mxu0 %v3141
  %3172 = vmatprep.subr.bf16.mxu0 0
  %3173 = vmatpush1.bf16.msra.mxu0 %v3142
  %3174 = vmatprep.subr.bf16.mxu0 0
  %3175 = vmatpush1.bf16.msra.mxu0 0
  %3176 = vmatprep.subr.bf16.mxu0 0
  %3177 = vmatpush1.bf16.msra.mxu0 0
  %3178 = vmatprep.subr.bf16.mxu0 0
  %3179 = vmatpush1.bf16.msra.mxu0 0
  %3180 = vmatprep.subr.bf16.mxu0 0
  %3181 = vmatpush1.bf16.msra.mxu0 0
  %3182 = vmatprep.subr.bf16.mxu0 0
  %3183 = vmatpush1.bf16.msra.mxu0 0
  %3184 = vmatprep.subr.bf16.mxu0 0
  %3185 = vmatpush1.bf16.msra.mxu0 0
  %3186 = vmatprep.subr.bf16.mxu0 0
  %3187 = vmatpush1.bf16.msra.mxu0 0
  %3188 = vmatprep.subr.bf16.mxu0 0
  %3189 = vmatpush1.bf16.msra.mxu0 0
  %3190 = vmatprep.subr.bf16.mxu0 0
  %3191 = vmatpush1.bf16.msra.mxu0 0
  %3192 = vmatprep.subr.bf16.mxu0 0
  %3193 = vmatpush1.bf16.msra.mxu0 0
  %3194 = vmatprep.subr.bf16.mxu0 0
  %3195 = vmatpush1.bf16.msra.mxu0 0
  %3196 = vmatprep.subr.bf16.mxu0 0
  %3197 = vmatpush1.bf16.msra.mxu0 0
  %3198 = vmatprep.subr.bf16.mxu0 0
  %3199 = vmatpush1.bf16.msra.mxu0 0
  %3200 = vmatprep.subr.bf16.mxu0 0
  %3201 = vmatpush1.bf16.msra.mxu0 0
  %3202 = vmatprep.mubr.bf16.mxu0 0
  %3203 = vmatmul.mubr.bf16.gmra.mrb[0].mxu0 %v3168
  %v3204 = vpop.f32.mrb[0].mxu0
  %v3205 = vadd.f32 0.0, %v3204
  %v3206 = vpop.f32.mrb[0].mxu0
  %v3207 = vpop.f32.mrb[0].mxu0
  %v3208 = vadd.f32 0.0, %v3207
  %v3209 = vpop.f32.mrb[0].mxu0
  %3210 = vdwg.mxu0
  %v3211 = vpow.pop %v3205
  %v3212 = vpow.pop %v3208
  %v3213 = vpack.c.bf16 %v3212, %v3211
  %3222 = vrot.lane.b32.xlu0 %v3159, 64
  %v3223 = vpop.permute.xlu0 %3222
  %3224 = vrot.lane.b32.xlu0 %v3160, 64
  %v3225 = vpop.permute.xlu0 %3224
  %3226 = vrot.lane.b32.xlu0 %v3161, 64
  %v3227 = vpop.permute.xlu0 %3226
  %3228 = vrot.lane.b32.xlu0 %v3162, 64
  %v3229 = vpop.permute.xlu0 %3228
  %3230 = vrot.lane.b32.xlu0 %v3163, 64
  %v3231 = vpop.permute.xlu0 %3230
  %3232 = vrot.lane.b32.xlu0 %v3164, 64
  %v3233 = vpop.permute.xlu0 %3232
  %3234 = vrot.lane.b32.xlu0 %v3165, 64
  %v3235 = vpop.permute.xlu0 %3234
  %3236 = vrot.lane.b32.xlu0 %v3166, 64
  %v3237 = vpop.permute.xlu0 %3236
  %3246 = vmatprep.subr.bf16.mxu0 0
  %3247 = vmatpush1.bf16.msra.mxu0 %v3223
  %3248 = vmatprep.subr.bf16.mxu0 0
  %3249 = vmatpush1.bf16.msra.mxu0 %v3225
  %3250 = vmatprep.subr.bf16.mxu0 0
  %3251 = vmatpush1.bf16.msra.mxu0 %v3227
  %3252 = vmatprep.subr.bf16.mxu0 0
  %3253 = vmatpush1.bf16.msra.mxu0 %v3229
  %3254 = vmatprep.subr.bf16.mxu0 0
  %3255 = vmatpush1.bf16.msra.mxu0 %v3231
  %3256 = vmatprep.subr.bf16.mxu0 0
  %3257 = vmatpush1.bf16.msra.mxu0 %v3233
  %3258 = vmatprep.subr.bf16.mxu0 0
  %3259 = vmatpush1.bf16.msra.mxu0 %v3235
  %3260 = vmatprep.subr.bf16.mxu0 0
  %3261 = vmatpush1.bf16.msra.mxu0 %v3237
  %3262 = vmatprep.subr.bf16.mxu0 0
  %3263 = vmatpush1.bf16.msra.mxu0 0
  %3264 = vmatprep.subr.bf16.mxu0 0
  %3265 = vmatpush1.bf16.msra.mxu0 0
  %3266 = vmatprep.subr.bf16.mxu0 0
  %3267 = vmatpush1.bf16.msra.mxu0 0
  %3268 = vmatprep.subr.bf16.mxu0 0
  %3269 = vmatpush1.bf16.msra.mxu0 0
  %3270 = vmatprep.subr.bf16.mxu0 0
  %3271 = vmatpush1.bf16.msra.mxu0 0
  %3272 = vmatprep.subr.bf16.mxu0 0
  %3273 = vmatpush1.bf16.msra.mxu0 0
  %3274 = vmatprep.subr.bf16.mxu0 0
  %3275 = vmatpush1.bf16.msra.mxu0 0
  %3276 = vmatprep.subr.bf16.mxu0 0
  %3277 = vmatpush1.bf16.msra.mxu0 0
  %3278 = vmatprep.mubr.bf16.mxu0 0
  %3279 = vmatmul.mubr.bf16.gmra.mrb[0].mxu0 %v3213
  %v3280 = vpop.f32.mrb[0].mxu0
  %v3281 = vadd.f32 0.0, %v3280
  %v3282 = vpop.f32.mrb[0].mxu0
  %v3283 = vpop.f32.mrb[0].mxu0
  %v3284 = vadd.f32 0.0, %v3283
  %v3285 = vpop.f32.mrb[0].mxu0
  %3286 = vdwg.mxu0
  %3287 = vmatprep.subr.bf16.mxu0 0
  %3288 = vmatpush1.bf16.msra.mxu0 %v550
  %3289 = vmatprep.subr.bf16.mxu0 0
  %3290 = vmatpush1.bf16.msra.mxu0 %v551
  %3291 = vmatprep.subr.bf16.mxu0 0
  %3292 = vmatpush1.bf16.msra.mxu0 %v552
  %3293 = vmatprep.subr.bf16.mxu0 0
  %3294 = vmatpush1.bf16.msra.mxu0 %v553
  %3295 = vmatprep.subr.bf16.mxu0 0
  %3296 = vmatpush1.bf16.msra.mxu0 %v554
  %3297 = vmatprep.subr.bf16.mxu0 0
  %3298 = vmatpush1.bf16.msra.mxu0 %v555
  %3299 = vmatprep.subr.bf16.mxu0 0
  %3300 = vmatpush1.bf16.msra.mxu0 %v556
  %3301 = vmatprep.subr.bf16.mxu0 0
  %3302 = vmatpush1.bf16.msra.mxu0 %v557
  %3303 = vmatprep.subr.bf16.mxu0 0
  %3304 = vmatpush1.bf16.msra.mxu0 0
  %3305 = vmatprep.subr.bf16.mxu0 0
  %3306 = vmatpush1.bf16.msra.mxu0 0
  %3307 = vmatprep.subr.bf16.mxu0 0
  %3308 = vmatpush1.bf16.msra.mxu0 0
  %3309 = vmatprep.subr.bf16.mxu0 0
  %3310 = vmatpush1.bf16.msra.mxu0 0
  %3311 = vmatprep.subr.bf16.mxu0 0
  %3312 = vmatpush1.bf16.msra.mxu0 0
  %3313 = vmatprep.subr.bf16.mxu0 0
  %3314 = vmatpush1.bf16.msra.mxu0 0
  %3315 = vmatprep.subr.bf16.mxu0 0
  %3316 = vmatpush1.bf16.msra.mxu0 0
  %3317 = vmatprep.subr.bf16.mxu0 0
  %3318 = vmatpush1.bf16.msra.mxu0 0
  %3319 = vmatprep.mubr.bf16.mxu0 0
  %3320 = vmatmul.mubr.bf16.gmra.mrb[0].mxu0 %v3213
  %v3321 = vpop.f32.mrb[0].mxu0
  %v3322 = vadd.f32 0.0, %v3321
  %v3323 = vpop.f32.mrb[0].mxu0
  %v3324 = vpop.f32.mrb[0].mxu0
  %v3325 = vadd.f32 0.0, %v3324
  %v3326 = vpop.f32.mrb[0].mxu0
  %3327 = vdwg.mxu0
  %v3328 = vrcp.pop %v3322
  %v3329 = vrcp.pop %v3325
  %v3330 = vmul.f32 %v3281, %v3328
  %v3331 = vmul.f32 %v3284, %v3329
  %v3333 = vsel %vm54, %v3330, 0
  %v3336 = vsel %vm54, %v3331, 0
  %3338 = vmatprep.subr.mxu0 0.0
  %3339 = vmatpush1.msra.mxu0 %v558
  %3340 = vmatprep.subr.mxu0 0.0
  %3341 = vmatpush1.msra.mxu0 %v559
  %3342 = vmatprep.subr.mxu0 0.0
  %3343 = vmatpush1.msra.mxu0 %v560
  %3344 = vmatprep.subr.mxu0 0.0
  %3345 = vmatpush1.msra.mxu0 %v561
  %3346 = vmatprep.subr.mxu0 0.0
  %3347 = vmatpush1.msra.mxu0 0.0
  %3348 = vmatprep.subr.mxu0 0.0
  %3349 = vmatpush1.msra.mxu0 0.0
  %3350 = vmatprep.subr.mxu0 0.0
  %3351 = vmatpush1.msra.mxu0 0.0
  %3352 = vmatprep.subr.mxu0 0.0
  %3353 = vmatpush1.msra.mxu0 0.0
  %3354 = vmatprep.subr.mxu0 0.0
  %3355 = vmatpush1.msra.mxu0 0.0
  %3356 = vmatprep.subr.mxu0 0.0
  %3357 = vmatpush1.msra.mxu0 0.0
  %3358 = vmatprep.subr.mxu0 0.0
  %3359 = vmatpush1.msra.mxu0 0.0
  %3360 = vmatprep.subr.mxu0 0.0
  %3361 = vmatpush1.msra.mxu0 0.0
  %3362 = vmatprep.subr.mxu0 0.0
  %3363 = vmatpush1.msra.mxu0 0.0
  %3364 = vmatprep.subr.mxu0 0.0
  %3365 = vmatpush1.msra.mxu0 0.0
  %3366 = vmatprep.subr.mxu0 0.0
  %3367 = vmatpush1.msra.mxu0 0.0
  %3368 = vmatprep.subr.mxu0 0.0
  %3369 = vmatpush1.msra.mxu0 0.0
  %3370 = vmatprep.subr.mxu0 0.0
  %3371 = vmatpush1.msra.mxu0 0.0
  %3372 = vmatprep.subr.mxu0 0.0
  %3373 = vmatpush1.msra.mxu0 0.0
  %3374 = vmatprep.subr.mxu0 0.0
  %3375 = vmatpush1.msra.mxu0 0.0
  %3376 = vmatprep.subr.mxu0 0.0
  %3377 = vmatpush1.msra.mxu0 0.0
  %3378 = vmatprep.subr.mxu0 0.0
  %3379 = vmatpush1.msra.mxu0 0.0
  %3380 = vmatprep.subr.mxu0 0.0
  %3381 = vmatpush1.msra.mxu0 0.0
  %3382 = vmatprep.subr.mxu0 0.0
  %3383 = vmatpush1.msra.mxu0 0.0
  %3384 = vmatprep.subr.mxu0 0.0
  %3385 = vmatpush1.msra.mxu0 0.0
  %3386 = vmatprep.subr.mxu0 0.0
  %3387 = vmatpush1.msra.mxu0 0.0
  %3388 = vmatprep.subr.mxu0 0.0
  %3389 = vmatpush1.msra.mxu0 0.0
  %3390 = vmatprep.subr.mxu0 0.0
  %3391 = vmatpush1.msra.mxu0 0.0
  %3392 = vmatprep.subr.mxu0 0.0
  %3393 = vmatpush1.msra.mxu0 0.0
  %3394 = vmatprep.subr.mxu0 0.0
  %3395 = vmatpush1.msra.mxu0 0.0
  %3396 = vmatprep.subr.mxu0 0.0
  %3397 = vmatpush1.msra.mxu0 0.0
  %3398 = vmatprep.subr.mxu0 0.0
  %3399 = vmatpush1.msra.mxu0 0.0
  %3400 = vmatprep.subr.mxu0 0.0
  %3401 = vmatpush1.msra.mxu0 0.0
  %3402 = vmatprep.mubr.f32.mxu0 0.0
  %3403 = vmatmul.mubr.f32.gmra.mrb[0].mxu0 %v3333
  %v3404 = vpop.f32.mrb[0].mxu0
  %v3405 = vadd.f32 %v567, %v3404
  %v3406 = vpop.f32.mrb[0].mxu0
  %3407 = vmatprep.mubr.f32.mxu0 0.0
  %3408 = vmatmul.mubr.f32.gmra.mrb[0].mxu0 %v3336
  %v3409 = vpop.f32.mrb[0].mxu0
  %v3410 = vadd.f32 %v567, %v3409
  %v3411 = vpop.f32.mrb[0].mxu0
  %3412 = vdwg.mxu0
  %s3413 = scalar_lea.vmem %s7, 96
  %3414 = vst.msk [vmem:[%s3413] sm:$0xff] %vm54, %v3405
  %3415 = vst.msk [vmem:[%s3413 + $0x8] sm:$0xff] %vm54, %v3410
  %s3416 = scalar_lea.vmem [#allocation2], 112
  %v3417 = vld [vmem:[%s3416] sm:$0xff]
  %v3418 = vld [vmem:[%s3416 + $0x8] sm:$0xff]
  %v3419 = vpack.c.bf16 %v3418, %v3417
  %v3420 = vmul.f32 %v3417, %v589
  %v3421 = vmul.f32 %v3418, %v591
  %v3422 = vmul.f32 %v3417, %v593
  %v3423 = vmul.f32 %v3418, %v595
  %v3424 = vmul.f32 %v3417, %v597
  %v3425 = vmul.f32 %v3418, %v599
  %v3426 = vmul.f32 %v3417, %v601
  %v3427 = vmul.f32 %v3418, %v603
  %v3428 = vmul.f32 %v3417, %v605
  %v3429 = vmul.f32 %v3418, %v607
  %v3430 = vmul.f32 %v3417, %v609
  %v3431 = vmul.f32 %v3418, %v611
  %v3432 = vmul.f32 %v3417, %v613
  %v3433 = vmul.f32 %v3418, %v615
  %v3434 = vmul.f32 %v3417, %v617
  %v3435 = vmul.f32 %v3418, %v619
  %3452 = vrot.lane.b32.xlu0 %v3420, 96
  %v3453 = vpop.permute.xlu0 %3452
  %3454 = vrot.lane.b32.xlu0 %v3421, 96
  %v3455 = vpop.permute.xlu0 %3454
  %3456 = vrot.lane.b32.xlu0 %v3422, 96
  %v3457 = vpop.permute.xlu0 %3456
  %3458 = vrot.lane.b32.xlu0 %v3423, 96
  %v3459 = vpop.permute.xlu0 %3458
  %3460 = vrot.lane.b32.xlu0 %v3424, 96
  %v3461 = vpop.permute.xlu0 %3460
  %3462 = vrot.lane.b32.xlu0 %v3425, 96
  %v3463 = vpop.permute.xlu0 %3462
  %3464 = vrot.lane.b32.xlu0 %v3426, 96
  %v3465 = vpop.permute.xlu0 %3464
  %3466 = vrot.lane.b32.xlu0 %v3427, 96
  %v3467 = vpop.permute.xlu0 %3466
  %3468 = vrot.lane.b32.xlu0 %v3428, 96
  %v3469 = vpop.permute.xlu0 %3468
  %3470 = vrot.lane.b32.xlu0 %v3429, 96
  %v3471 = vpop.permute.xlu0 %3470
  %3472 = vrot.lane.b32.xlu0 %v3430, 96
  %v3473 = vpop.permute.xlu0 %3472
  %3474 = vrot.lane.b32.xlu0 %v3431, 96
  %v3475 = vpop.permute.xlu0 %3474
  %3476 = vrot.lane.b32.xlu0 %v3432, 96
  %v3477 = vpop.permute.xlu0 %3476
  %3478 = vrot.lane.b32.xlu0 %v3433, 96
  %v3479 = vpop.permute.xlu0 %3478
  %3480 = vrot.lane.b32.xlu0 %v3434, 96
  %v3481 = vpop.permute.xlu0 %3480
  %3482 = vrot.lane.b32.xlu0 %v3435, 96
  %v3483 = vpop.permute.xlu0 %3482
  %3500 = vxpose.xlu0.b32.start [1/16] %v3453, 128
  %3501 = vxpose.xlu0.b32.cont [2/16] %v3455, 128
  %3502 = vxpose.xlu0.b32.cont [3/16] %v3457, 128
  %3503 = vxpose.xlu0.b32.cont [4/16] %v3459, 128
  %3504 = vxpose.xlu0.b32.cont [5/16] %v3461, 128
  %3505 = vxpose.xlu0.b32.cont [6/16] %v3463, 128
  %3506 = vxpose.xlu0.b32.cont [7/16] %v3465, 128
  %3507 = vxpose.xlu0.b32.cont [8/16] %v3467, 128
  %3508 = vxpose.xlu0.b32.cont [9/16] %v3469, 128
  %3509 = vxpose.xlu0.b32.cont [10/16] %v3471, 128
  %3510 = vxpose.xlu0.b32.cont [11/16] %v3473, 128
  %3511 = vxpose.xlu0.b32.cont [12/16] %v3475, 128
  %3512 = vxpose.xlu0.b32.cont [13/16] %v3477, 128
  %3513 = vxpose.xlu0.b32.cont [14/16] %v3479, 128
  %3514 = vxpose.xlu0.b32.cont [15/16] %v3481, 128
  %3515 = vxpose.xlu0.b32.end [16/16] %v3483, 128
  %v3516 = vpop.trf.xlu0
  %v3517 = vpop.trf.xlu0
  %v3518 = vpop.trf.xlu0
  %v3519 = vpop.trf.xlu0
  %v3520 = vpop.trf.xlu0
  %v3521 = vpop.trf.xlu0
  %v3522 = vpop.trf.xlu0
  %v3523 = vpop.trf.xlu0
  %v3524 = vpop.trf.xlu0
  %v3525 = vpop.trf.xlu0
  %v3526 = vpop.trf.xlu0
  %v3527 = vpop.trf.xlu0
  %v3528 = vpop.trf.xlu0
  %v3529 = vpop.trf.xlu0
  %v3530 = vpop.trf.xlu0
  %v3531 = vpop.trf.xlu0
  %v3532 = vpack.c.bf16 %v3517, %v3516
  %v3533 = vpack.c.bf16 %v3519, %v3518
  %v3534 = vmul.f32 %v3417, %v751
  %v3535 = vmul.f32 %v3418, %v753
  %v3536 = vmul.f32 %v3417, %v755
  %v3537 = vmul.f32 %v3418, %v757
  %v3538 = vmul.f32 %v3417, %v759
  %v3539 = vmul.f32 %v3418, %v761
  %v3540 = vmul.f32 %v3417, %v763
  %v3541 = vmul.f32 %v3418, %v765
  %v3542 = vmul.f32 %v3417, %v767
  %v3543 = vmul.f32 %v3418, %v769
  %v3544 = vmul.f32 %v3417, %v771
  %v3545 = vmul.f32 %v3418, %v773
  %v3546 = vmul.f32 %v3417, %v775
  %v3547 = vmul.f32 %v3418, %v777
  %v3548 = vmul.f32 %v3417, %v779
  %v3549 = vmul.f32 %v3418, %v781
  %v3550 = vpack.c.bf16 %v3535, %v3534
  %v3551 = vpack.c.bf16 %v3537, %v3536
  %v3552 = vpack.c.bf16 %v3539, %v3538
  %v3553 = vpack.c.bf16 %v3541, %v3540
  %v3554 = vpack.c.bf16 %v3543, %v3542
  %v3555 = vpack.c.bf16 %v3545, %v3544
  %v3556 = vpack.c.bf16 %v3547, %v3546
  %v3557 = vpack.c.bf16 %v3549, %v3548
  %v3559 = vsel %vm54, %v3419, 0
  %3561 = vmatprep.subr.bf16.mxu0 0
  %3562 = vmatpush1.bf16.msra.mxu0 %v3532
  %3563 = vmatprep.subr.bf16.mxu0 0
  %3564 = vmatpush1.bf16.msra.mxu0 %v3533
  %3565 = vmatprep.subr.bf16.mxu0 0
  %3566 = vmatpush1.bf16.msra.mxu0 0
  %3567 = vmatprep.subr.bf16.mxu0 0
  %3568 = vmatpush1.bf16.msra.mxu0 0
  %3569 = vmatprep.subr.bf16.mxu0 0
  %3570 = vmatpush1.bf16.msra.mxu0 0
  %3571 = vmatprep.subr.bf16.mxu0 0
  %3572 = vmatpush1.bf16.msra.mxu0 0
  %3573 = vmatprep.subr.bf16.mxu0 0
  %3574 = vmatpush1.bf16.msra.mxu0 0
  %3575 = vmatprep.subr.bf16.mxu0 0
  %3576 = vmatpush1.bf16.msra.mxu0 0
  %3577 = vmatprep.subr.bf16.mxu0 0
  %3578 = vmatpush1.bf16.msra.mxu0 0
  %3579 = vmatprep.subr.bf16.mxu0 0
  %3580 = vmatpush1.bf16.msra.mxu0 0
  %3581 = vmatprep.subr.bf16.mxu0 0
  %3582 = vmatpush1.bf16.msra.mxu0 0
  %3583 = vmatprep.subr.bf16.mxu0 0
  %3584 = vmatpush1.bf16.msra.mxu0 0
  %3585 = vmatprep.subr.bf16.mxu0 0
  %3586 = vmatpush1.bf16.msra.mxu0 0
  %3587 = vmatprep.subr.bf16.mxu0 0
  %3588 = vmatpush1.bf16.msra.mxu0 0
  %3589 = vmatprep.subr.bf16.mxu0 0
  %3590 = vmatpush1.bf16.msra.mxu0 0
  %3591 = vmatprep.subr.bf16.mxu0 0
  %3592 = vmatpush1.bf16.msra.mxu0 0
  %3593 = vmatprep.mubr.bf16.mxu0 0
  %3594 = vmatmul.mubr.bf16.gmra.mrb[0].mxu0 %v3559
  %v3595 = vpop.f32.mrb[0].mxu0
  %v3596 = vadd.f32 0.0, %v3595
  %v3597 = vpop.f32.mrb[0].mxu0
  %v3598 = vpop.f32.mrb[0].mxu0
  %v3599 = vadd.f32 0.0, %v3598
  %v3600 = vpop.f32.mrb[0].mxu0
  %3601 = vdwg.mxu0
  %v3602 = vpow.pop %v3596
  %v3603 = vpow.pop %v3599
  %v3604 = vpack.c.bf16 %v3603, %v3602
  %3613 = vrot.lane.b32.xlu0 %v3550, 64
  %v3614 = vpop.permute.xlu0 %3613
  %3615 = vrot.lane.b32.xlu0 %v3551, 64
  %v3616 = vpop.permute.xlu0 %3615
  %3617 = vrot.lane.b32.xlu0 %v3552, 64
  %v3618 = vpop.permute.xlu0 %3617
  %3619 = vrot.lane.b32.xlu0 %v3553, 64
  %v3620 = vpop.permute.xlu0 %3619
  %3621 = vrot.lane.b32.xlu0 %v3554, 64
  %v3622 = vpop.permute.xlu0 %3621
  %3623 = vrot.lane.b32.xlu0 %v3555, 64
  %v3624 = vpop.permute.xlu0 %3623
  %3625 = vrot.lane.b32.xlu0 %v3556, 64
  %v3626 = vpop.permute.xlu0 %3625
  %3627 = vrot.lane.b32.xlu0 %v3557, 64
  %v3628 = vpop.permute.xlu0 %3627
  %3637 = vmatprep.subr.bf16.mxu0 0
  %3638 = vmatpush1.bf16.msra.mxu0 %v3614
  %3639 = vmatprep.subr.bf16.mxu0 0
  %3640 = vmatpush1.bf16.msra.mxu0 %v3616
  %3641 = vmatprep.subr.bf16.mxu0 0
  %3642 = vmatpush1.bf16.msra.mxu0 %v3618
  %3643 = vmatprep.subr.bf16.mxu0 0
  %3644 = vmatpush1.bf16.msra.mxu0 %v3620
  %3645 = vmatprep.subr.bf16.mxu0 0
  %3646 = vmatpush1.bf16.msra.mxu0 %v3622
  %3647 = vmatprep.subr.bf16.mxu0 0
  %3648 = vmatpush1.bf16.msra.mxu0 %v3624
  %3649 = vmatprep.subr.bf16.mxu0 0
  %3650 = vmatpush1.bf16.msra.mxu0 %v3626
  %3651 = vmatprep.subr.bf16.mxu0 0
  %3652 = vmatpush1.bf16.msra.mxu0 %v3628
  %3653 = vmatprep.subr.bf16.mxu0 0
  %3654 = vmatpush1.bf16.msra.mxu0 0
  %3655 = vmatprep.subr.bf16.mxu0 0
  %3656 = vmatpush1.bf16.msra.mxu0 0
  %3657 = vmatprep.subr.bf16.mxu0 0
  %3658 = vmatpush1.bf16.msra.mxu0 0
  %3659 = vmatprep.subr.bf16.mxu0 0
  %3660 = vmatpush1.bf16.msra.mxu0 0
  %3661 = vmatprep.subr.bf16.mxu0 0
  %3662 = vmatpush1.bf16.msra.mxu0 0
  %3663 = vmatprep.subr.bf16.mxu0 0
  %3664 = vmatpush1.bf16.msra.mxu0 0
  %3665 = vmatprep.subr.bf16.mxu0 0
  %3666 = vmatpush1.bf16.msra.mxu0 0
  %3667 = vmatprep.subr.bf16.mxu0 0
  %3668 = vmatpush1.bf16.msra.mxu0 0
  %3669 = vmatprep.mubr.bf16.mxu0 0
  %3670 = vmatmul.mubr.bf16.gmra.mrb[0].mxu0 %v3604
  %v3671 = vpop.f32.mrb[0].mxu0
  %v3672 = vadd.f32 0.0, %v3671
  %v3673 = vpop.f32.mrb[0].mxu0
  %v3674 = vpop.f32.mrb[0].mxu0
  %v3675 = vadd.f32 0.0, %v3674
  %v3676 = vpop.f32.mrb[0].mxu0
  %3677 = vdwg.mxu0
  %3678 = vmatprep.subr.bf16.mxu0 0
  %3679 = vmatpush1.bf16.msra.mxu0 %v550
  %3680 = vmatprep.subr.bf16.mxu0 0
  %3681 = vmatpush1.bf16.msra.mxu0 %v551
  %3682 = vmatprep.subr.bf16.mxu0 0
  %3683 = vmatpush1.bf16.msra.mxu0 %v552
  %3684 = vmatprep.subr.bf16.mxu0 0
  %3685 = vmatpush1.bf16.msra.mxu0 %v553
  %3686 = vmatprep.subr.bf16.mxu0 0
  %3687 = vmatpush1.bf16.msra.mxu0 %v554
  %3688 = vmatprep.subr.bf16.mxu0 0
  %3689 = vmatpush1.bf16.msra.mxu0 %v555
  %3690 = vmatprep.subr.bf16.mxu0 0
  %3691 = vmatpush1.bf16.msra.mxu0 %v556
  %3692 = vmatprep.subr.bf16.mxu0 0
  %3693 = vmatpush1.bf16.msra.mxu0 %v557
  %3694 = vmatprep.subr.bf16.mxu0 0
  %3695 = vmatpush1.bf16.msra.mxu0 0
  %3696 = vmatprep.subr.bf16.mxu0 0
  %3697 = vmatpush1.bf16.msra.mxu0 0
  %3698 = vmatprep.subr.bf16.mxu0 0
  %3699 = vmatpush1.bf16.msra.mxu0 0
  %3700 = vmatprep.subr.bf16.mxu0 0
  %3701 = vmatpush1.bf16.msra.mxu0 0
  %3702 = vmatprep.subr.bf16.mxu0 0
  %3703 = vmatpush1.bf16.msra.mxu0 0
  %3704 = vmatprep.subr.bf16.mxu0 0
  %3705 = vmatpush1.bf16.msra.mxu0 0
  %3706 = vmatprep.subr.bf16.mxu0 0
  %3707 = vmatpush1.bf16.msra.mxu0 0
  %3708 = vmatprep.subr.bf16.mxu0 0
  %3709 = vmatpush1.bf16.msra.mxu0 0
  %3710 = vmatprep.mubr.bf16.mxu0 0
  %3711 = vmatmul.mubr.bf16.gmra.mrb[0].mxu0 %v3604
  %v3712 = vpop.f32.mrb[0].mxu0
  %v3713 = vadd.f32 0.0, %v3712
  %v3714 = vpop.f32.mrb[0].mxu0
  %v3715 = vpop.f32.mrb[0].mxu0
  %v3716 = vadd.f32 0.0, %v3715
  %v3717 = vpop.f32.mrb[0].mxu0
  %3718 = vdwg.mxu0
  %v3719 = vrcp.pop %v3713
  %v3720 = vrcp.pop %v3716
  %v3721 = vmul.f32 %v3672, %v3719
  %v3722 = vmul.f32 %v3675, %v3720
  %v3724 = vsel %vm54, %v3721, 0
  %v3727 = vsel %vm54, %v3722, 0
  %3729 = vmatprep.subr.mxu0 0.0
  %3730 = vmatpush1.msra.mxu0 %v558
  %3731 = vmatprep.subr.mxu0 0.0
  %3732 = vmatpush1.msra.mxu0 %v559
  %3733 = vmatprep.subr.mxu0 0.0
  %3734 = vmatpush1.msra.mxu0 %v560
  %3735 = vmatprep.subr.mxu0 0.0
  %3736 = vmatpush1.msra.mxu0 %v561
  %3737 = vmatprep.subr.mxu0 0.0
  %3738 = vmatpush1.msra.mxu0 0.0
  %3739 = vmatprep.subr.mxu0 0.0
  %3740 = vmatpush1.msra.mxu0 0.0
  %3741 = vmatprep.subr.mxu0 0.0
  %3742 = vmatpush1.msra.mxu0 0.0
  %3743 = vmatprep.subr.mxu0 0.0
  %3744 = vmatpush1.msra.mxu0 0.0
  %3745 = vmatprep.subr.mxu0 0.0
  %3746 = vmatpush1.msra.mxu0 0.0
  %3747 = vmatprep.subr.mxu0 0.0
  %3748 = vmatpush1.msra.mxu0 0.0
  %3749 = vmatprep.subr.mxu0 0.0
  %3750 = vmatpush1.msra.mxu0 0.0
  %3751 = vmatprep.subr.mxu0 0.0
  %3752 = vmatpush1.msra.mxu0 0.0
  %3753 = vmatprep.subr.mxu0 0.0
  %3754 = vmatpush1.msra.mxu0 0.0
  %3755 = vmatprep.subr.mxu0 0.0
  %3756 = vmatpush1.msra.mxu0 0.0
  %3757 = vmatprep.subr.mxu0 0.0
  %3758 = vmatpush1.msra.mxu0 0.0
  %3759 = vmatprep.subr.mxu0 0.0
  %3760 = vmatpush1.msra.mxu0 0.0
  %3761 = vmatprep.subr.mxu0 0.0
  %3762 = vmatpush1.msra.mxu0 0.0
  %3763 = vmatprep.subr.mxu0 0.0
  %3764 = vmatpush1.msra.mxu0 0.0
  %3765 = vmatprep.subr.mxu0 0.0
  %3766 = vmatpush1.msra.mxu0 0.0
  %3767 = vmatprep.subr.mxu0 0.0
  %3768 = vmatpush1.msra.mxu0 0.0
  %3769 = vmatprep.subr.mxu0 0.0
  %3770 = vmatpush1.msra.mxu0 0.0
  %3771 = vmatprep.subr.mxu0 0.0
  %3772 = vmatpush1.msra.mxu0 0.0
  %3773 = vmatprep.subr.mxu0 0.0
  %3774 = vmatpush1.msra.mxu0 0.0
  %3775 = vmatprep.subr.mxu0 0.0
  %3776 = vmatpush1.msra.mxu0 0.0
  %3777 = vmatprep.subr.mxu0 0.0
  %3778 = vmatpush1.msra.mxu0 0.0
  %3779 = vmatprep.subr.mxu0 0.0
  %3780 = vmatpush1.msra.mxu0 0.0
  %3781 = vmatprep.subr.mxu0 0.0
  %3782 = vmatpush1.msra.mxu0 0.0
  %3783 = vmatprep.subr.mxu0 0.0
  %3784 = vmatpush1.msra.mxu0 0.0
  %3785 = vmatprep.subr.mxu0 0.0
  %3786 = vmatpush1.msra.mxu0 0.0
  %3787 = vmatprep.subr.mxu0 0.0
  %3788 = vmatpush1.msra.mxu0 0.0
  %3789 = vmatprep.subr.mxu0 0.0
  %3790 = vmatpush1.msra.mxu0 0.0
  %3791 = vmatprep.subr.mxu0 0.0
  %3792 = vmatpush1.msra.mxu0 0.0
  %3793 = vmatprep.mubr.f32.mxu0 0.0
  %3794 = vmatmul.mubr.f32.gmra.mrb[0].mxu0 %v3724
  %v3795 = vpop.f32.mrb[0].mxu0
  %v3796 = vadd.f32 %v567, %v3795
  %v3797 = vpop.f32.mrb[0].mxu0
  %3798 = vmatprep.mubr.f32.mxu0 0.0
  %3799 = vmatmul.mubr.f32.gmra.mrb[0].mxu0 %v3727
  %v3800 = vpop.f32.mrb[0].mxu0
  %v3801 = vadd.f32 %v567, %v3800
  %v3802 = vpop.f32.mrb[0].mxu0
  %3803 = vdwg.mxu0
  %s3804 = scalar_lea.vmem %s7, 112
  %3805 = vst.msk [vmem:[%s3804] sm:$0xff] %vm54, %v3796
  %3806 = vst.msk [vmem:[%s3804 + $0x8] sm:$0xff] %vm54, %v3801
  // Predicated region
  $region30: #{tpu_custom_call.1} parent=0 // pred_check
    _
  $region31: #{tpu_custom_call.1} parent=0 // pred_check_branch
    %3808 = sbr.rel (0) target = $region33
  $region32: #{tpu_custom_call.1} parent=0 // pred_region
    _
  $region33: #{tpu_custom_call.1} parent=0 // pred_fallthru
    _
  // Predicated region
  $region34: #{tpu_custom_call.1} parent=0 // pred_check
    _
  $region35: #{tpu_custom_call.1} parent=0 // pred_check_branch
    %3810 = sbr.rel (0) target = $region37
  $region36: #{tpu_custom_call.1} parent=0 // pred_region
    _
  $region37: #{tpu_custom_call.1} parent=0 // pred_fallthru
    _

</llo_original>
